<compile_context>
chip_gen: v6e
topology: v6e:2x2x1
jax: 0.10.0
libtpu: 0.0.40
codegen_flags: <defaults>
</compile_context>

<pallas_src>
import math
import numpy as np
import jax
import jax.numpy as jnp
from jax.experimental import pallas as pl
from jax.experimental.pallas import tpu as pltpu

VN_EPS = 1e-6       # EPS used by vn_layers.VNLeakyReLU
BN_EPS = 1e-5       # nn.BatchNorm3d default eps
NEG_SLOPE = 0.2     # VNLeakyReLU negative_slope


def decoder_block_kernel(xp_ref, wf1_ref, b1_ref, wf2_ref, b2_ref,
                         g1_ref, be1_ref, g2_ref, be2_ref,
                         wd_ref, bsum_ref, c2l_ref, l2c_ref,
                         rhw_ref, ld_ref, out_ref):
    B, Dp, _ = xp_ref.shape
    D = Dp - 2
    K = wf1_ref.shape[2]                    # H*W*Cout (lane width of working slabs)
    BD = B * D
    C = g1_ref.shape[1]
    inv_n = 1.0 / float(BD * (K // C))      # 1 / (B*D*H*W)

    def conv(xpad, wf_ref, bias):
        # xpad: [B, D+2, Kin] value. 3 depth-tap matmuls; (kh,kw) taps and H/W zero
        # padding are folded into wf_ref[kd] ([Kin, K]).
        acc = jnp.zeros((BD, K), jnp.float32)
        for kd in range(3):
            sl = xpad[:, kd:kd + D, :].reshape(BD, -1)
            acc = acc + jnp.dot(sl, wf_ref[kd], preferred_element_type=jnp.float32)
        return acc + bias

    def batchnorm(y, g_ref, be_ref):
        # Training-mode BatchNorm3d: per-channel batch stats over (B,D,H,W), biased var.
        mean_c = jnp.sum(jnp.dot(y, l2c_ref[...], preferred_element_type=jnp.float32),
                         axis=0, keepdims=True) * inv_n                        # [1, C]
        centered = y - jnp.dot(mean_c, c2l_ref[...],
                               preferred_element_type=jnp.float32)             # [BD, K]
        var_c = jnp.sum(jnp.dot(centered * centered, l2c_ref[...],
                                preferred_element_type=jnp.float32),
                        axis=0, keepdims=True) * inv_n                         # [1, C]
        scale_l = jnp.dot(g_ref[...] * jax.lax.rsqrt(var_c + BN_EPS), c2l_ref[...],
                          preferred_element_type=jnp.float32)                  # [1, K]
        shift_l = jnp.dot(be_ref[...], c2l_ref[...],
                          preferred_element_type=jnp.float32)                  # [1, K]
        return centered * scale_l + shift_l

    def vn_leaky_relu(y):
        # VNLeakyReLU(share_nonlinearity=True): d = Linear(C,1) over channels (wd_ref
        # also re-broadcasts it to every channel lane); depth-axis reductions are the
        # block-sum matmul bsum = kron(I_B, ones(D,D)).
        d = jnp.dot(y, wd_ref[...], preferred_element_type=jnp.float32)        # [BD, K]
        dot_full = jnp.dot(bsum_ref[...], y * d, preferred_element_type=jnp.float32)
        dnsq_full = jnp.dot(bsum_ref[...], d * d, preferred_element_type=jnp.float32)
        proj = y - (dot_full / (dnsq_full + VN_EPS)) * d
        return NEG_SLOPE * y + (1.0 - NEG_SLOPE) * jnp.where(dot_full >= 0.0, y, proj)

    # conv1 -> bn1 -> VN act      (Dropout3d(0) == identity)
    a1 = vn_leaky_relu(batchnorm(conv(xp_ref[...], wf1_ref, b1_ref[...]), g1_ref, be1_ref))

    # depth zero-padding for conv2 as a value-level concat (no padded-scratch passes).
    zrow = jnp.zeros((B, 1, K), jnp.float32)
    a1p = jnp.concatenate([zrow, a1.reshape(B, D, K), zrow], axis=1)

    # conv2 -> bn2 -> VN act (same shared map_to_dir weight)
    a2 = vn_leaky_relu(batchnorm(conv(a1p, wf2_ref, b2_ref[...]), g2_ref, be2_ref))

    # trilinear 2x upsample (align_corners=True) as two matmuls; single lane-dense store.
    z = jnp.dot(a2, rhw_ref[...], preferred_element_type=jnp.float32)          # [BD, 4K]
    out_ref[...] = jnp.dot(ld_ref[...], z, preferred_element_type=jnp.float32)  # [B*2D, 4K]


# ---------------- trace-time constant builders (host / numpy) ----------------

def _shift_matrix(n, k):
    """S[j, i] = 1 where j = i + k - 1 (zero padding outside [0, n))."""
    s = np.zeros((n, n), np.float32)
    for i in range(n):
        j = i + k - 1
        if 0 <= j < n:
            s[j, i] = 1.0
    return s


def _fold_conv_weight(w, H, W):
    """w: [3,3,3,Cin,Cout] -> [3, H*W*Cin, H*W*Cout], (kh,kw) taps + H/W zero-pad folded."""
    w = np.asarray(w, np.float32)
    Cin, Cout = w.shape[3], w.shape[4]
    out = np.zeros((3, H * W * Cin, H * W * Cout), np.float32)
    for kd in range(3):
        for kh in range(3):
            sh = _shift_matrix(H, kh)
            for kw in range(3):
                sw = _shift_matrix(W, kw)
                out[kd] += np.kron(sh, np.kron(sw, w[kd, kh, kw]))
    return out


def _upsample_matrix(n):
    """U[2n, n]: 1-D linear interpolation, scale 2, align_corners=True (PyTorch)."""
    m = np.zeros((2 * n, n), np.float32)
    if n == 1:
        m[:, 0] = 1.0
        return m
    for o in range(2 * n):
        c = o * (n - 1) / (2 * n - 1)
        i0 = min(int(math.floor(c)), n - 2)
        f = c - i0
        m[o, i0] += 1.0 - f
        m[o, i0 + 1] += f
    return m


def decoder_block_forward(x_ncdhw, params):
    """x_ncdhw: [B, Cin, D, H, W] float32 (PyTorch layout). Returns [B, Cout, 2D, 2H, 2W]."""
    B, Cin, D, H, W = x_ncdhw.shape
    w1 = np.asarray(params["w1"], np.float32)      # [3,3,3,Cin,C]
    w2 = np.asarray(params["w2"], np.float32)      # [3,3,3,C,C]
    C = w1.shape[-1]
    HW, HWC, HWCi, BD = H * W, H * W * C, H * W * Cin, B * D

    # ---- trace-time constant matrices ----
    wf1 = _fold_conv_weight(w1, H, W)                                    # [3, HWCi, HWC]
    wf2 = _fold_conv_weight(w2, H, W)                                    # [3, HWC, HWC]
    eye_c = np.eye(C, dtype=np.float32)
    c2l = np.kron(np.ones((1, HW), np.float32), eye_c)                   # [C, HWC] chan->lane
    l2c = np.ascontiguousarray(c2l.T)                                    # [HWC, C] lane->chan
    wdir = np.asarray(params["wdir"], np.float32).reshape(C, 1)
    wd_mat = np.kron(np.eye(HW, dtype=np.float32),
                     wdir @ np.ones((1, C), np.float32))                 # [HWC, HWC]
    bsum = np.kron(np.eye(B, dtype=np.float32),
                   np.ones((D, D), np.float32))                          # [BD, BD]
    r_hw = np.kron(_upsample_matrix(H).T,
                   np.kron(_upsample_matrix(W).T, eye_c))                # [HWC, 4*HWC]
    l_d = np.kron(np.eye(B, dtype=np.float32), _upsample_matrix(D))      # [2*BD, BD]
    b1l = np.tile(np.asarray(params["b1"], np.float32).reshape(1, C), (1, HW))   # [1, HWC]
    b2l = np.tile(np.asarray(params["b2"], np.float32).reshape(1, C), (1, HW))   # [1, HWC]

    # ---- input: NCDHW -> NDHWC -> [B, D, H*W*Cin] -> depth zero-pad ----
    x = jnp.transpose(x_ncdhw, (0, 2, 3, 4, 1)).astype(jnp.float32)
    xp = jnp.pad(x.reshape(B, D, HWCi), ((0, 0), (1, 1), (0, 0)))

    vspec = pl.BlockSpec(memory_space=pltpu.MemorySpace.VMEM)
    out2d = pl.pallas_call(
        decoder_block_kernel,
        out_shape=jax.ShapeDtypeStruct((2 * BD, 4 * HWC), jnp.float32),
        in_specs=[vspec] * 15,
        out_specs=vspec,
        # Actual VMEM footprint is a few MiB; request 32 MiB (ample headroom on v5e/v6e,
        # and only half of v7x's 64 MiB physical VMEM).
        compiler_params=pltpu.CompilerParams(vmem_limit_bytes=32 * 1024 * 1024),
    )(xp,
      jnp.asarray(wf1), jnp.asarray(b1l), jnp.asarray(wf2), jnp.asarray(b2l),
      jnp.asarray(params["g1"], jnp.float32).reshape(1, C),
      jnp.asarray(params["be1"], jnp.float32).reshape(1, C),
      jnp.asarray(params["g2"], jnp.float32).reshape(1, C),
      jnp.asarray(params["be2"], jnp.float32).reshape(1, C),
      jnp.asarray(wd_mat), jnp.asarray(bsum), jnp.asarray(c2l), jnp.asarray(l2c),
      jnp.asarray(r_hw), jnp.asarray(l_d))

    out = out2d.reshape(B, 2 * D, 2 * H, 2 * W, C)       # rows=(b,od); lanes=(oh,ow,c)
    return jnp.transpose(out, (0, 4, 1, 2, 3))           # back to NCDHW


if __name__ == "__main__":
    key = jax.random.PRNGKey(0)
    B, Cin, Cout, D, H, W = 2, 4, 4, 8, 8, 8
    kx, kw1, kw2, kd = jax.random.split(key, 4)

    x = jax.random.normal(kx, (B, Cin, D, H, W), jnp.float32)

    # Conv weights: xavier_normal_; biases zero (DecoderBlock.init_model).
    std1 = math.sqrt(2.0 / (Cin * 27 + Cout * 27))
    w1 = std1 * jax.random.normal(kw1, (3, 3, 3, Cin, Cout), jnp.float32)
    std2 = math.sqrt(2.0 / (Cout * 27 + Cout * 27))
    w2 = std2 * jax.random.normal(kw2, (3, 3, 3, Cout, Cout), jnp.float32)
    # Shared VNLeakyReLU map_to_dir weight: Linear(Cout, 1, bias=False).
    wdir = jax.random.normal(kd, (1, Cout), jnp.float32) / math.sqrt(Cout)

    params = dict(
        w1=w1, b1=jnp.zeros((1, Cout), jnp.float32),
        w2=w2, b2=jnp.zeros((1, Cout), jnp.float32),
        wdir=wdir,
        g1=jnp.ones((1, Cout), jnp.float32), be1=jnp.zeros((1, Cout), jnp.float32),
        g2=jnp.ones((1, Cout), jnp.float32), be2=jnp.zeros((1, Cout), jnp.float32),
    )

    out = jax.block_until_ready(decoder_block_forward(x, params))
    assert out.shape == (B, Cout, 2 * D, 2 * H, 2 * W), out.shape
    assert bool(jnp.all(jnp.isfinite(out)))
    print("KERNEL_OK")
</pallas_src>

<mosaic_0001>
module attributes {stable_mosaic.version = 11 : i64} {
  func.func @decoder_block_kernel(%arg0: memref<2x10x256xf32, #tpu.memory_space<vmem>>, %arg1: memref<3x256x256xf32, #tpu.memory_space<vmem>>, %arg2: memref<1x256xf32, #tpu.memory_space<vmem>>, %arg3: memref<3x256x256xf32, #tpu.memory_space<vmem>>, %arg4: memref<1x256xf32, #tpu.memory_space<vmem>>, %arg5: memref<1x4xf32, #tpu.memory_space<vmem>>, %arg6: memref<1x4xf32, #tpu.memory_space<vmem>>, %arg7: memref<1x4xf32, #tpu.memory_space<vmem>>, %arg8: memref<1x4xf32, #tpu.memory_space<vmem>>, %arg9: memref<256x256xf32, #tpu.memory_space<vmem>>, %arg10: memref<16x16xf32, #tpu.memory_space<vmem>>, %arg11: memref<4x256xf32, #tpu.memory_space<vmem>>, %arg12: memref<256x4xf32, #tpu.memory_space<vmem>>, %arg13: memref<256x1024xf32, #tpu.memory_space<vmem>>, %arg14: memref<32x16xf32, #tpu.memory_space<vmem>>, %arg15: memref<32x1024xf32, #tpu.memory_space<vmem>>) attributes {dimension_semantics = [], scalar_prefetch = 0 : i64, scratch_operands = 0 : i64, tpu.core_type = #tpu.core_type<tc>} {
    %c0 = arith.constant 0 : index
    %c0_0 = arith.constant 0 : index
    %c0_1 = arith.constant 0 : index
    %0 = vector.load %arg0[%c0, %c0_0, %c0_1] : memref<2x10x256xf32, #tpu.memory_space<vmem>>, vector<2x10x256xf32>
    %c0_2 = arith.constant 0 : index
    %c0_3 = arith.constant 0 : index
    %1 = vector.load %arg2[%c0_2, %c0_3] : memref<1x256xf32, #tpu.memory_space<vmem>>, vector<1x256xf32>
    %cst = arith.constant 0.000000e+00 : f32
    %2 = vector.broadcast %cst : f32 to vector<16x256xf32>
    %3 = vector.extract_strided_slice %0 {offsets = [0, 0, 0], sizes = [2, 8, 256], strides = [1, 1, 1]} : vector<2x10x256xf32> to vector<2x8x256xf32>
    %4 = vector.shape_cast %3 : vector<2x8x256xf32> to vector<16x256xf32>
    %c0_4 = arith.constant 0 : index
    %c0_5 = arith.constant 0 : index
    %c0_6 = arith.constant 0 : index
    %5 = vector.load %arg1[%c0_4, %c0_5, %c0_6] : memref<3x256x256xf32, #tpu.memory_space<vmem>>, vector<1x256x256xf32>
    %6 = vector.shape_cast %5 : vector<1x256x256xf32> to vector<256x256xf32>
    %cst_7 = arith.constant dense<0.000000e+00> : vector<16x256xf32>
    %7 = tpu.matmul %4, %6, %cst_7 {dimension_numbers = #tpu.dot_dimension_numbers<[1], [0], [0], [1], [0, 0, 1, 1], [], []>} : vector<16x256xf32>, vector<256x256xf32>, vector<16x256xf32> -> vector<16x256xf32>
    %8 = arith.addf %2, %7 : vector<16x256xf32>
    %9 = vector.extract_strided_slice %0 {offsets = [0, 1, 0], sizes = [2, 8, 256], strides = [1, 1, 1]} : vector<2x10x256xf32> to vector<2x8x256xf32>
    %10 = vector.shape_cast %9 : vector<2x8x256xf32> to vector<16x256xf32>
    %c1 = arith.constant 1 : index
    %c0_8 = arith.constant 0 : index
    %c0_9 = arith.constant 0 : index
    %11 = vector.load %arg1[%c1, %c0_8, %c0_9] : memref<3x256x256xf32, #tpu.memory_space<vmem>>, vector<1x256x256xf32>
    %12 = vector.shape_cast %11 : vector<1x256x256xf32> to vector<256x256xf32>
    %cst_10 = arith.constant dense<0.000000e+00> : vector<16x256xf32>
    %13 = tpu.matmul %10, %12, %cst_10 {dimension_numbers = #tpu.dot_dimension_numbers<[1], [0], [0], [1], [0, 0, 1, 1], [], []>} : vector<16x256xf32>, vector<256x256xf32>, vector<16x256xf32> -> vector<16x256xf32>
    %14 = arith.addf %8, %13 : vector<16x256xf32>
    %15 = vector.extract_strided_slice %0 {offsets = [0, 2, 0], sizes = [2, 8, 256], strides = [1, 1, 1]} : vector<2x10x256xf32> to vector<2x8x256xf32>
    %16 = vector.shape_cast %15 : vector<2x8x256xf32> to vector<16x256xf32>
    %c2 = arith.constant 2 : index
    %c0_11 = arith.constant 0 : index
    %c0_12 = arith.constant 0 : index
    %17 = vector.load %arg1[%c2, %c0_11, %c0_12] : memref<3x256x256xf32, #tpu.memory_space<vmem>>, vector<1x256x256xf32>
    %18 = vector.shape_cast %17 : vector<1x256x256xf32> to vector<256x256xf32>
    %cst_13 = arith.constant dense<0.000000e+00> : vector<16x256xf32>
    %19 = tpu.matmul %16, %18, %cst_13 {dimension_numbers = #tpu.dot_dimension_numbers<[1], [0], [0], [1], [0, 0, 1, 1], [], []>} : vector<16x256xf32>, vector<256x256xf32>, vector<16x256xf32> -> vector<16x256xf32>
    %20 = arith.addf %14, %19 : vector<16x256xf32>
    %21 = vector.broadcast %1 : vector<1x256xf32> to vector<16x256xf32>
    %22 = arith.addf %20, %21 : vector<16x256xf32>
    %c0_14 = arith.constant 0 : index
    %c0_15 = arith.constant 0 : index
    %23 = vector.load %arg12[%c0_14, %c0_15] : memref<256x4xf32, #tpu.memory_space<vmem>>, vector<256x4xf32>
    %cst_16 = arith.constant dense<0.000000e+00> : vector<16x4xf32>
    %24 = tpu.matmul %22, %23, %cst_16 {dimension_numbers = #tpu.dot_dimension_numbers<[1], [0], [0], [1], [0, 0, 1, 1], [], []>} : vector<16x256xf32>, vector<256x4xf32>, vector<16x4xf32> -> vector<16x4xf32>
    %cst_17 = arith.constant dense<0.000000e+00> : vector<4xf32>
    %25 = vector.multi_reduction <add>, %24, %cst_17 [0] : vector<16x4xf32> to vector<4xf32>
    %26 = vector.shape_cast %25 : vector<4xf32> to vector<1x4xf32>
    %cst_18 = arith.constant 9.765625E-4 : f32
    %27 = vector.broadcast %cst_18 : f32 to vector<1x4xf32>
    %28 = arith.mulf %26, %27 : vector<1x4xf32>
    %c0_19 = arith.constant 0 : index
    %c0_20 = arith.constant 0 : index
    %29 = vector.load %arg11[%c0_19, %c0_20] : memref<4x256xf32, #tpu.memory_space<vmem>>, vector<4x256xf32>
    %cst_21 = arith.constant dense<0.000000e+00> : vector<1x256xf32>
    %30 = tpu.matmul %28, %29, %cst_21 {dimension_numbers = #tpu.dot_dimension_numbers<[1], [0], [0], [1], [0, 0, 1, 1], [], []>} : vector<1x4xf32>, vector<4x256xf32>, vector<1x256xf32> -> vector<1x256xf32>
    %31 = vector.broadcast %30 : vector<1x256xf32> to vector<16x256xf32>
    %32 = arith.subf %22, %31 : vector<16x256xf32>
    %33 = arith.mulf %32, %32 : vector<16x256xf32>
    %c0_22 = arith.constant 0 : index
    %c0_23 = arith.constant 0 : index
    %34 = vector.load %arg12[%c0_22, %c0_23] : memref<256x4xf32, #tpu.memory_space<vmem>>, vector<256x4xf32>
    %cst_24 = arith.constant dense<0.000000e+00> : vector<16x4xf32>
    %35 = tpu.matmul %33, %34, %cst_24 {dimension_numbers = #tpu.dot_dimension_numbers<[1], [0], [0], [1], [0, 0, 1, 1], [], []>} : vector<16x256xf32>, vector<256x4xf32>, vector<16x4xf32> -> vector<16x4xf32>
    %cst_25 = arith.constant dense<0.000000e+00> : vector<4xf32>
    %36 = vector.multi_reduction <add>, %35, %cst_25 [0] : vector<16x4xf32> to vector<4xf32>
    %37 = vector.shape_cast %36 : vector<4xf32> to vector<1x4xf32>
    %cst_26 = arith.constant 9.765625E-4 : f32
    %38 = vector.broadcast %cst_26 : f32 to vector<1x4xf32>
    %39 = arith.mulf %37, %38 : vector<1x4xf32>
    %c0_27 = arith.constant 0 : index
    %c0_28 = arith.constant 0 : index
    %40 = vector.load %arg5[%c0_27, %c0_28] : memref<1x4xf32, #tpu.memory_space<vmem>>, vector<1x4xf32>
    %cst_29 = arith.constant 9.99999974E-6 : f32
    %41 = vector.broadcast %cst_29 : f32 to vector<1x4xf32>
    %42 = arith.addf %39, %41 : vector<1x4xf32>
    %43 = math.rsqrt %42 : vector<1x4xf32>
    %44 = arith.mulf %40, %43 : vector<1x4xf32>
    %c0_30 = arith.constant 0 : index
    %c0_31 = arith.constant 0 : index
    %45 = vector.load %arg11[%c0_30, %c0_31] : memref<4x256xf32, #tpu.memory_space<vmem>>, vector<4x256xf32>
    %cst_32 = arith.constant dense<0.000000e+00> : vector<1x256xf32>
    %46 = tpu.matmul %44, %45, %cst_32 {dimension_numbers = #tpu.dot_dimension_numbers<[1], [0], [0], [1], [0, 0, 1, 1], [], []>} : vector<1x4xf32>, vector<4x256xf32>, vector<1x256xf32> -> vector<1x256xf32>
    %c0_33 = arith.constant 0 : index
    %c0_34 = arith.constant 0 : index
    %47 = vector.load %arg6[%c0_33, %c0_34] : memref<1x4xf32, #tpu.memory_space<vmem>>, vector<1x4xf32>
    %c0_35 = arith.constant 0 : index
    %c0_36 = arith.constant 0 : index
    %48 = vector.load %arg11[%c0_35, %c0_36] : memref<4x256xf32, #tpu.memory_space<vmem>>, vector<4x256xf32>
    %cst_37 = arith.constant dense<0.000000e+00> : vector<1x256xf32>
    %49 = tpu.matmul %47, %48, %cst_37 {dimension_numbers = #tpu.dot_dimension_numbers<[1], [0], [0], [1], [0, 0, 1, 1], [], []>} : vector<1x4xf32>, vector<4x256xf32>, vector<1x256xf32> -> vector<1x256xf32>
    %50 = vector.broadcast %46 : vector<1x256xf32> to vector<16x256xf32>
    %51 = arith.mulf %32, %50 : vector<16x256xf32>
    %52 = vector.broadcast %49 : vector<1x256xf32> to vector<16x256xf32>
    %53 = arith.addf %51, %52 : vector<16x256xf32>
    %c0_38 = arith.constant 0 : index
    %c0_39 = arith.constant 0 : index
    %54 = vector.load %arg9[%c0_38, %c0_39] : memref<256x256xf32, #tpu.memory_space<vmem>>, vector<256x256xf32>
    %cst_40 = arith.constant dense<0.000000e+00> : vector<16x256xf32>
    %55 = tpu.matmul %53, %54, %cst_40 {dimension_numbers = #tpu.dot_dimension_numbers<[1], [0], [0], [1], [0, 0, 1, 1], [], []>} : vector<16x256xf32>, vector<256x256xf32>, vector<16x256xf32> -> vector<16x256xf32>
    %c0_41 = arith.constant 0 : index
    %c0_42 = arith.constant 0 : index
    %56 = vector.load %arg10[%c0_41, %c0_42] : memref<16x16xf32, #tpu.memory_space<vmem>>, vector<16x16xf32>
    %57 = arith.mulf %53, %55 : vector<16x256xf32>
    %cst_43 = arith.constant dense<0.000000e+00> : vector<16x256xf32>
    %58 = tpu.matmul %56, %57, %cst_43 {dimension_numbers = #tpu.dot_dimension_numbers<[1], [0], [0], [1], [0, 0, 1, 1], [], []>} : vector<16x16xf32>, vector<16x256xf32>, vector<16x256xf32> -> vector<16x256xf32>
    %c0_44 = arith.constant 0 : index
    %c0_45 = arith.constant 0 : index
    %59 = vector.load %arg10[%c0_44, %c0_45] : memref<16x16xf32, #tpu.memory_space<vmem>>, vector<16x16xf32>
    %60 = arith.mulf %55, %55 : vector<16x256xf32>
    %cst_46 = arith.constant dense<0.000000e+00> : vector<16x256xf32>
    %61 = tpu.matmul %59, %60, %cst_46 {dimension_numbers = #tpu.dot_dimension_numbers<[1], [0], [0], [1], [0, 0, 1, 1], [], []>} : vector<16x16xf32>, vector<16x256xf32>, vector<16x256xf32> -> vector<16x256xf32>
    %cst_47 = arith.constant 9.99999997E-7 : f32
    %62 = vector.broadcast %cst_47 : f32 to vector<16x256xf32>
    %63 = arith.addf %61, %62 : vector<16x256xf32>
    %64 = arith.divf %58, %63 : vector<16x256xf32>
    %65 = arith.mulf %64, %55 : vector<16x256xf32>
    %66 = arith.subf %53, %65 : vector<16x256xf32>
    %cst_48 = arith.constant 2.000000e-01 : f32
    %67 = vector.broadcast %cst_48 : f32 to vector<16x256xf32>
    %68 = arith.mulf %67, %53 : vector<16x256xf32>
    %cst_49 = arith.constant 0.000000e+00 : f32
    %69 = vector.broadcast %cst_49 : f32 to vector<16x256xf32>
    %70 = arith.cmpf oge, %58, %69 : vector<16x256xf32>
    %71 = arith.select %70, %53, %66 : vector<16x256xi1>, vector<16x256xf32>
    %cst_50 = arith.constant 8.000000e-01 : f32
    %72 = vector.broadcast %cst_50 : f32 to vector<16x256xf32>
    %73 = arith.mulf %72, %71 : vector<16x256xf32>
    %74 = arith.addf %68, %73 : vector<16x256xf32>
    %cst_51 = arith.constant 0.000000e+00 : f32
    %75 = vector.broadcast %cst_51 : f32 to vector<2x1x256xf32>
    %76 = vector.shape_cast %74 : vector<16x256xf32> to vector<2x8x256xf32>
    %77 = tpu.concatenate %75, %76, %75 in 1 : vector<2x1x256xf32>, vector<2x8x256xf32>, vector<2x1x256xf32> -> vector<2x10x256xf32>
    %c0_52 = arith.constant 0 : index
    %c0_53 = arith.constant 0 : index
    %78 = vector.load %arg4[%c0_52, %c0_53] : memref<1x256xf32, #tpu.memory_space<vmem>>, vector<1x256xf32>
    %cst_54 = arith.constant 0.000000e+00 : f32
    %79 = vector.broadcast %cst_54 : f32 to vector<16x256xf32>
    %80 = vector.extract_strided_slice %77 {offsets = [0, 0, 0], sizes = [2, 8, 256], strides = [1, 1, 1]} : vector<2x10x256xf32> to vector<2x8x256xf32>
    %81 = vector.shape_cast %80 : vector<2x8x256xf32> to vector<16x256xf32>
    %c0_55 = arith.constant 0 : index
    %c0_56 = arith.constant 0 : index
    %c0_57 = arith.constant 0 : index
    %82 = vector.load %arg3[%c0_55, %c0_56, %c0_57] : memref<3x256x256xf32, #tpu.memory_space<vmem>>, vector<1x256x256xf32>
    %83 = vector.shape_cast %82 : vector<1x256x256xf32> to vector<256x256xf32>
    %cst_58 = arith.constant dense<0.000000e+00> : vector<16x256xf32>
    %84 = tpu.matmul %81, %83, %cst_58 {dimension_numbers = #tpu.dot_dimension_numbers<[1], [0], [0], [1], [0, 0, 1, 1], [], []>} : vector<16x256xf32>, vector<256x256xf32>, vector<16x256xf32> -> vector<16x256xf32>
    %85 = arith.addf %79, %84 : vector<16x256xf32>
    %86 = vector.extract_strided_slice %77 {offsets = [0, 1, 0], sizes = [2, 8, 256], strides = [1, 1, 1]} : vector<2x10x256xf32> to vector<2x8x256xf32>
    %87 = vector.shape_cast %86 : vector<2x8x256xf32> to vector<16x256xf32>
    %c1_59 = arith.constant 1 : index
    %c0_60 = arith.constant 0 : index
    %c0_61 = arith.constant 0 : index
    %88 = vector.load %arg3[%c1_59, %c0_60, %c0_61] : memref<3x256x256xf32, #tpu.memory_space<vmem>>, vector<1x256x256xf32>
    %89 = vector.shape_cast %88 : vector<1x256x256xf32> to vector<256x256xf32>
    %cst_62 = arith.constant dense<0.000000e+00> : vector<16x256xf32>
    %90 = tpu.matmul %87, %89, %cst_62 {dimension_numbers = #tpu.dot_dimension_numbers<[1], [0], [0], [1], [0, 0, 1, 1], [], []>} : vector<16x256xf32>, vector<256x256xf32>, vector<16x256xf32> -> vector<16x256xf32>
    %91 = arith.addf %85, %90 : vector<16x256xf32>
    %92 = vector.extract_strided_slice %77 {offsets = [0, 2, 0], sizes = [2, 8, 256], strides = [1, 1, 1]} : vector<2x10x256xf32> to vector<2x8x256xf32>
    %93 = vector.shape_cast %92 : vector<2x8x256xf32> to vector<16x256xf32>
    %c2_63 = arith.constant 2 : index
    %c0_64 = arith.constant 0 : index
    %c0_65 = arith.constant 0 : index
    %94 = vector.load %arg3[%c2_63, %c0_64, %c0_65] : memref<3x256x256xf32, #tpu.memory_space<vmem>>, vector<1x256x256xf32>
    %95 = vector.shape_cast %94 : vector<1x256x256xf32> to vector<256x256xf32>
    %cst_66 = arith.constant dense<0.000000e+00> : vector<16x256xf32>
    %96 = tpu.matmul %93, %95, %cst_66 {dimension_numbers = #tpu.dot_dimension_numbers<[1], [0], [0], [1], [0, 0, 1, 1], [], []>} : vector<16x256xf32>, vector<256x256xf32>, vector<16x256xf32> -> vector<16x256xf32>
    %97 = arith.addf %91, %96 : vector<16x256xf32>
    %98 = vector.broadcast %78 : vector<1x256xf32> to vector<16x256xf32>
    %99 = arith.addf %97, %98 : vector<16x256xf32>
    %c0_67 = arith.constant 0 : index
    %c0_68 = arith.constant 0 : index
    %100 = vector.load %arg12[%c0_67, %c0_68] : memref<256x4xf32, #tpu.memory_space<vmem>>, vector<256x4xf32>
    %cst_69 = arith.constant dense<0.000000e+00> : vector<16x4xf32>
    %101 = tpu.matmul %99, %100, %cst_69 {dimension_numbers = #tpu.dot_dimension_numbers<[1], [0], [0], [1], [0, 0, 1, 1], [], []>} : vector<16x256xf32>, vector<256x4xf32>, vector<16x4xf32> -> vector<16x4xf32>
    %cst_70 = arith.constant dense<0.000000e+00> : vector<4xf32>
    %102 = vector.multi_reduction <add>, %101, %cst_70 [0] : vector<16x4xf32> to vector<4xf32>
    %103 = vector.shape_cast %102 : vector<4xf32> to vector<1x4xf32>
    %cst_71 = arith.constant 9.765625E-4 : f32
    %104 = vector.broadcast %cst_71 : f32 to vector<1x4xf32>
    %105 = arith.mulf %103, %104 : vector<1x4xf32>
    %c0_72 = arith.constant 0 : index
    %c0_73 = arith.constant 0 : index
    %106 = vector.load %arg11[%c0_72, %c0_73] : memref<4x256xf32, #tpu.memory_space<vmem>>, vector<4x256xf32>
    %cst_74 = arith.constant dense<0.000000e+00> : vector<1x256xf32>
    %107 = tpu.matmul %105, %106, %cst_74 {dimension_numbers = #tpu.dot_dimension_numbers<[1], [0], [0], [1], [0, 0, 1, 1], [], []>} : vector<1x4xf32>, vector<4x256xf32>, vector<1x256xf32> -> vector<1x256xf32>
    %108 = vector.broadcast %107 : vector<1x256xf32> to vector<16x256xf32>
    %109 = arith.subf %99, %108 : vector<16x256xf32>
    %110 = arith.mulf %109, %109 : vector<16x256xf32>
    %c0_75 = arith.constant 0 : index
    %c0_76 = arith.constant 0 : index
    %111 = vector.load %arg12[%c0_75, %c0_76] : memref<256x4xf32, #tpu.memory_space<vmem>>, vector<256x4xf32>
    %cst_77 = arith.constant dense<0.000000e+00> : vector<16x4xf32>
    %112 = tpu.matmul %110, %111, %cst_77 {dimension_numbers = #tpu.dot_dimension_numbers<[1], [0], [0], [1], [0, 0, 1, 1], [], []>} : vector<16x256xf32>, vector<256x4xf32>, vector<16x4xf32> -> vector<16x4xf32>
    %cst_78 = arith.constant dense<0.000000e+00> : vector<4xf32>
    %113 = vector.multi_reduction <add>, %112, %cst_78 [0] : vector<16x4xf32> to vector<4xf32>
    %114 = vector.shape_cast %113 : vector<4xf32> to vector<1x4xf32>
    %cst_79 = arith.constant 9.765625E-4 : f32
    %115 = vector.broadcast %cst_79 : f32 to vector<1x4xf32>
    %116 = arith.mulf %114, %115 : vector<1x4xf32>
    %c0_80 = arith.constant 0 : index
    %c0_81 = arith.constant 0 : index
    %117 = vector.load %arg7[%c0_80, %c0_81] : memref<1x4xf32, #tpu.memory_space<vmem>>, vector<1x4xf32>
    %cst_82 = arith.constant 9.99999974E-6 : f32
    %118 = vector.broadcast %cst_82 : f32 to vector<1x4xf32>
    %119 = arith.addf %116, %118 : vector<1x4xf32>
    %120 = math.rsqrt %119 : vector<1x4xf32>
    %121 = arith.mulf %117, %120 : vector<1x4xf32>
    %c0_83 = arith.constant 0 : index
    %c0_84 = arith.constant 0 : index
    %122 = vector.load %arg11[%c0_83, %c0_84] : memref<4x256xf32, #tpu.memory_space<vmem>>, vector<4x256xf32>
    %cst_85 = arith.constant dense<0.000000e+00> : vector<1x256xf32>
    %123 = tpu.matmul %121, %122, %cst_85 {dimension_numbers = #tpu.dot_dimension_numbers<[1], [0], [0], [1], [0, 0, 1, 1], [], []>} : vector<1x4xf32>, vector<4x256xf32>, vector<1x256xf32> -> vector<1x256xf32>
    %c0_86 = arith.constant 0 : index
    %c0_87 = arith.constant 0 : index
    %124 = vector.load %arg8[%c0_86, %c0_87] : memref<1x4xf32, #tpu.memory_space<vmem>>, vector<1x4xf32>
    %c0_88 = arith.constant 0 : index
    %c0_89 = arith.constant 0 : index
    %125 = vector.load %arg11[%c0_88, %c0_89] : memref<4x256xf32, #tpu.memory_space<vmem>>, vector<4x256xf32>
    %cst_90 = arith.constant dense<0.000000e+00> : vector<1x256xf32>
    %126 = tpu.matmul %124, %125, %cst_90 {dimension_numbers = #tpu.dot_dimension_numbers<[1], [0], [0], [1], [0, 0, 1, 1], [], []>} : vector<1x4xf32>, vector<4x256xf32>, vector<1x256xf32> -> vector<1x256xf32>
    %127 = vector.broadcast %123 : vector<1x256xf32> to vector<16x256xf32>
    %128 = arith.mulf %109, %127 : vector<16x256xf32>
    %129 = vector.broadcast %126 : vector<1x256xf32> to vector<16x256xf32>
    %130 = arith.addf %128, %129 : vector<16x256xf32>
    %c0_91 = arith.constant 0 : index
    %c0_92 = arith.constant 0 : index
    %131 = vector.load %arg9[%c0_91, %c0_92] : memref<256x256xf32, #tpu.memory_space<vmem>>, vector<256x256xf32>
    %cst_93 = arith.constant dense<0.000000e+00> : vector<16x256xf32>
    %132 = tpu.matmul %130, %131, %cst_93 {dimension_numbers = #tpu.dot_dimension_numbers<[1], [0], [0], [1], [0, 0, 1, 1], [], []>} : vector<16x256xf32>, vector<256x256xf32>, vector<16x256xf32> -> vector<16x256xf32>
    %c0_94 = arith.constant 0 : index
    %c0_95 = arith.constant 0 : index
    %133 = vector.load %arg10[%c0_94, %c0_95] : memref<16x16xf32, #tpu.memory_space<vmem>>, vector<16x16xf32>
    %134 = arith.mulf %130, %132 : vector<16x256xf32>
    %cst_96 = arith.constant dense<0.000000e+00> : vector<16x256xf32>
    %135 = tpu.matmul %133, %134, %cst_96 {dimension_numbers = #tpu.dot_dimension_numbers<[1], [0], [0], [1], [0, 0, 1, 1], [], []>} : vector<16x16xf32>, vector<16x256xf32>, vector<16x256xf32> -> vector<16x256xf32>
    %c0_97 = arith.constant 0 : index
    %c0_98 = arith.constant 0 : index
    %136 = vector.load %arg10[%c0_97, %c0_98] : memref<16x16xf32, #tpu.memory_space<vmem>>, vector<16x16xf32>
    %137 = arith.mulf %132, %132 : vector<16x256xf32>
    %cst_99 = arith.constant dense<0.000000e+00> : vector<16x256xf32>
    %138 = tpu.matmul %136, %137, %cst_99 {dimension_numbers = #tpu.dot_dimension_numbers<[1], [0], [0], [1], [0, 0, 1, 1], [], []>} : vector<16x16xf32>, vector<16x256xf32>, vector<16x256xf32> -> vector<16x256xf32>
    %cst_100 = arith.constant 9.99999997E-7 : f32
    %139 = vector.broadcast %cst_100 : f32 to vector<16x256xf32>
    %140 = arith.addf %138, %139 : vector<16x256xf32>
    %141 = arith.divf %135, %140 : vector<16x256xf32>
    %142 = arith.mulf %141, %132 : vector<16x256xf32>
    %143 = arith.subf %130, %142 : vector<16x256xf32>
    %cst_101 = arith.constant 2.000000e-01 : f32
    %144 = vector.broadcast %cst_101 : f32 to vector<16x256xf32>
    %145 = arith.mulf %144, %130 : vector<16x256xf32>
    %cst_102 = arith.constant 0.000000e+00 : f32
    %146 = vector.broadcast %cst_102 : f32 to vector<16x256xf32>
    %147 = arith.cmpf oge, %135, %146 : vector<16x256xf32>
    %148 = arith.select %147, %130, %143 : vector<16x256xi1>, vector<16x256xf32>
    %cst_103 = arith.constant 8.000000e-01 : f32
    %149 = vector.broadcast %cst_103 : f32 to vector<16x256xf32>
    %150 = arith.mulf %149, %148 : vector<16x256xf32>
    %151 = arith.addf %145, %150 : vector<16x256xf32>
    %c0_104 = arith.constant 0 : index
    %c0_105 = arith.constant 0 : index
    %152 = vector.load %arg13[%c0_104, %c0_105] : memref<256x1024xf32, #tpu.memory_space<vmem>>, vector<256x1024xf32>
    %cst_106 = arith.constant dense<0.000000e+00> : vector<16x1024xf32>
    %153 = tpu.matmul %151, %152, %cst_106 {dimension_numbers = #tpu.dot_dimension_numbers<[1], [0], [0], [1], [0, 0, 1, 1], [], []>} : vector<16x256xf32>, vector<256x1024xf32>, vector<16x1024xf32> -> vector<16x1024xf32>
    %c0_107 = arith.constant 0 : index
    %c0_108 = arith.constant 0 : index
    %154 = vector.load %arg14[%c0_107, %c0_108] : memref<32x16xf32, #tpu.memory_space<vmem>>, vector<32x16xf32>
    %cst_109 = arith.constant dense<0.000000e+00> : vector<32x1024xf32>
    %155 = tpu.matmul %154, %153, %cst_109 {dimension_numbers = #tpu.dot_dimension_numbers<[1], [0], [0], [1], [0, 0, 1, 1], [], []>} : vector<32x16xf32>, vector<16x1024xf32>, vector<32x1024xf32> -> vector<32x1024xf32>
    %c0_110 = arith.constant 0 : index
    %c0_111 = arith.constant 0 : index
    %156 = vector.load %arg15[%c0_110, %c0_111] : memref<32x1024xf32, #tpu.memory_space<vmem>>, vector<32x1024xf32>
    tpu.vector_store %arg15[%c0_110, %c0_111], %155 {strides = array<i32>} : memref<32x1024xf32, #tpu.memory_space<vmem>>, vector<32x1024xf32>,
    return
  }
}

</mosaic_0001>

<llo_original>
// kernel: tpu_custom_call.1
$region0: #{tpu_custom_call.1}
  #allocation0 [shape = 'u32[]', space=smem, size = 0x4, offset = 0x4, fixed_abs, tag = 'smem constant byte address 0x4 - core index']
  #allocation1 [shape = 'u32[144,128]{1,0:T(1,128)}', space=vmem, size = 0x12000, scoped, tag = 'internal scratch']
  %s0 = inlined_call_operand.vmem [shape: f32[2,10,256], index: 0, kind: input, shape index: {}]
  %s1 = inlined_call_operand.hbm [shape: f32[3,256,256], index: 1, kind: input, shape index: {}]
  %s2 = inlined_call_operand.vmem [shape: f32[1,256], index: 2, kind: input, shape index: {}]
  %s3 = inlined_call_operand.hbm [shape: f32[3,256,256], index: 3, kind: input, shape index: {}]
  %s4 = inlined_call_operand.vmem [shape: f32[1,256], index: 4, kind: input, shape index: {}]
  %s5 = inlined_call_operand.vmem [shape: f32[1,4], index: 5, kind: input, shape index: {}]
  %s6 = inlined_call_operand.vmem [shape: f32[1,4], index: 6, kind: input, shape index: {}]
  %s7 = inlined_call_operand.vmem [shape: f32[1,4], index: 7, kind: input, shape index: {}]
  %s8 = inlined_call_operand.vmem [shape: f32[1,4], index: 8, kind: input, shape index: {}]
  %s9 = inlined_call_operand.hbm [shape: f32[256,256], index: 9, kind: input, shape index: {}]
  %s10 = inlined_call_operand.vmem [shape: f32[16,16], index: 10, kind: input, shape index: {}]
  %s11 = inlined_call_operand.vmem [shape: f32[4,256], index: 11, kind: input, shape index: {}]
  %s12 = inlined_call_operand.vmem [shape: f32[256,4], index: 12, kind: input, shape index: {}]
  %s13 = inlined_call_operand.hbm [shape: f32[256,1024], index: 13, kind: input, shape index: {}]
  %s14 = inlined_call_operand.vmem [shape: f32[32,16], index: 14, kind: input, shape index: {}]
  %s15 = inlined_call_operand.hbm [shape: f32[32,1024], index: 15, kind: output, shape index: {}]
  %s16 = sld [smem:[#allocation0]]
  $region86: #{tpu_custom_call.1} parent=0
    _
  %s18 = ssub.s32 1, %s16
  %s19 = scalar_select 0, %s18, %s16
  $region1: #{tpu_custom_call.1} parent=0
    #allocation2 [shape = 'u8[786432]{0}', space=vmem, size = 0xc0000, scoped, tag = 'input window, operand 1, single buffered']
    #allocation3 [shape = 's32[1]{0}', space=sflag, size = 0x4, scoped, tag = 'scoped memory for tpu_custom_call.1']
    #allocation4 [shape = 's32[1]{0}', space=sflag, size = 0x4, scoped, tag = 'scoped memory for tpu_custom_call.1']
    #allocation5 [shape = 'u8[786432]{0}', space=vmem, size = 0xc0000, scoped, tag = 'input window, operand 3, single buffered']
    #allocation6 [shape = 's32[1]{0}', space=sflag, size = 0x4, scoped, tag = 'scoped memory for tpu_custom_call.1']
    #allocation7 [shape = 'u8[262144]{0}', space=vmem, size = 0x40000, scoped, tag = 'input window, operand 9, single buffered']
    #allocation8 [shape = 'u8[1048576]{0}', space=vmem, size = 0x100000, scoped, tag = 'input window, operand 13, single buffered']
    #allocation9 [shape = 's32[1]{0}', space=sflag, size = 0x4, scoped, tag = 'scoped memory for tpu_custom_call.1']
    #allocation10 [shape = 'u8[131072]{0}', space=vmem, size = 0x20000, scoped, tag = 'output window, operand 0, single buffered']
    %20 = vsyncpa [#allocation3], 0
    %21 = vsyncpa [#allocation6], 0
    %22 = vsyncpa [#allocation9], 0
    %23 = vsyncpa [#allocation4], 0
    // Predicated region
    $region2: #{tpu_custom_call.1} parent=1 // pred_check
      _
    $region3: #{tpu_custom_call.1} parent=1 // pred_check_branch
      %25 = sbr.rel (0) target = $region5
    $region4: #{tpu_custom_call.1} parent=1 // pred_region
      _
    $region5: #{tpu_custom_call.1} parent=1 // pred_fallthru
      _
    // Predicated region
    $region6: #{tpu_custom_call.1} parent=1 // pred_check
      _
    $region7: #{tpu_custom_call.1} parent=1 // pred_check_branch
      %27 = sbr.rel (0) target = $region9
    $region8: #{tpu_custom_call.1} parent=1 // pred_region
      %s29 = ssub.s32 24576, 24576
      %30 = vsyncadd [#allocation3], %s29
      %s31 = sshll.u32 [#allocation2], 4
      %s32 = int_to_ptr.vmem [resolvable:$true] %s31
      %37 = dma.hbm_to_vmem [thread:$0]  %s1, 24576, %s32, [#allocation3], 256, 256, 16
    $region9: #{tpu_custom_call.1} parent=1 // pred_fallthru
      _
    // Predicated region
    $region10: #{tpu_custom_call.1} parent=1 // pred_check
      _
    $region11: #{tpu_custom_call.1} parent=1 // pred_check_branch
      %39 = sbr.rel (0) target = $region13
    $region12: #{tpu_custom_call.1} parent=1 // pred_region
      _
    $region13: #{tpu_custom_call.1} parent=1 // pred_fallthru
      _
    // Predicated region
    $region14: #{tpu_custom_call.1} parent=1 // pred_check
      _
    $region15: #{tpu_custom_call.1} parent=1 // pred_check_branch
      %41 = sbr.rel (0) target = $region17
    $region16: #{tpu_custom_call.1} parent=1 // pred_region
      %s43 = ssub.s32 24576, 24576
      %44 = vsyncadd [#allocation6], %s43
      %s45 = sshll.u32 [#allocation5], 4
      %s46 = int_to_ptr.vmem [resolvable:$true] %s45
      %51 = dma.hbm_to_vmem [thread:$0]  %s3, 24576, %s46, [#allocation6], 256, 256, 16
    $region17: #{tpu_custom_call.1} parent=1 // pred_fallthru
      _
    // Predicated region
    $region18: #{tpu_custom_call.1} parent=1 // pred_check
      _
    $region19: #{tpu_custom_call.1} parent=1 // pred_check_branch
      %53 = sbr.rel (0) target = $region21
    $region20: #{tpu_custom_call.1} parent=1 // pred_region
      _
    $region21: #{tpu_custom_call.1} parent=1 // pred_fallthru
      _
    // Predicated region
    $region22: #{tpu_custom_call.1} parent=1 // pred_check
      _
    $region23: #{tpu_custom_call.1} parent=1 // pred_check_branch
      %55 = sbr.rel (0) target = $region25
    $region24: #{tpu_custom_call.1} parent=1 // pred_region
      _
    $region25: #{tpu_custom_call.1} parent=1 // pred_fallthru
      _
    // Predicated region
    $region26: #{tpu_custom_call.1} parent=1 // pred_check
      _
    $region27: #{tpu_custom_call.1} parent=1 // pred_check_branch
      %57 = sbr.rel (0) target = $region29
    $region28: #{tpu_custom_call.1} parent=1 // pred_region
      _
    $region29: #{tpu_custom_call.1} parent=1 // pred_fallthru
      _
    // Predicated region
    $region30: #{tpu_custom_call.1} parent=1 // pred_check
      _
    $region31: #{tpu_custom_call.1} parent=1 // pred_check_branch
      %59 = sbr.rel (0) target = $region33
    $region32: #{tpu_custom_call.1} parent=1 // pred_region
      _
    $region33: #{tpu_custom_call.1} parent=1 // pred_fallthru
      _
    // Predicated region
    $region34: #{tpu_custom_call.1} parent=1 // pred_check
      _
    $region35: #{tpu_custom_call.1} parent=1 // pred_check_branch
      %61 = sbr.rel (0) target = $region37
    $region36: #{tpu_custom_call.1} parent=1 // pred_region
      _
    $region37: #{tpu_custom_call.1} parent=1 // pred_fallthru
      _
    // Predicated region
    $region38: #{tpu_custom_call.1} parent=1 // pred_check
      _
    $region39: #{tpu_custom_call.1} parent=1 // pred_check_branch
      %63 = sbr.rel (0) target = $region41
    $region40: #{tpu_custom_call.1} parent=1 // pred_region
      %s65 = ssub.s32 8192, 8192
      %66 = vsyncadd [#allocation6], %s65
      %s67 = sshll.u32 [#allocation7], 4
      %s68 = int_to_ptr.vmem [resolvable:$true] %s67
      %73 = dma.hbm_to_vmem [thread:$0]  %s9, 8192, %s68, [#allocation6], 256, 256, 16
    $region41: #{tpu_custom_call.1} parent=1 // pred_fallthru
      _
    // Predicated region
    $region42: #{tpu_custom_call.1} parent=1 // pred_check
      _
    $region43: #{tpu_custom_call.1} parent=1 // pred_check_branch
      %75 = sbr.rel (0) target = $region45
    $region44: #{tpu_custom_call.1} parent=1 // pred_region
      _
    $region45: #{tpu_custom_call.1} parent=1 // pred_fallthru
      _
    // Predicated region
    $region46: #{tpu_custom_call.1} parent=1 // pred_check
      _
    $region47: #{tpu_custom_call.1} parent=1 // pred_check_branch
      %77 = sbr.rel (0) target = $region49
    $region48: #{tpu_custom_call.1} parent=1 // pred_region
      _
    $region49: #{tpu_custom_call.1} parent=1 // pred_fallthru
      _
    // Predicated region
    $region50: #{tpu_custom_call.1} parent=1 // pred_check
      _
    $region51: #{tpu_custom_call.1} parent=1 // pred_check_branch
      %79 = sbr.rel (0) target = $region53
    $region52: #{tpu_custom_call.1} parent=1 // pred_region
      _
    $region53: #{tpu_custom_call.1} parent=1 // pred_fallthru
      _
    // Predicated region
    $region54: #{tpu_custom_call.1} parent=1 // pred_check
      _
    $region55: #{tpu_custom_call.1} parent=1 // pred_check_branch
      %81 = sbr.rel (0) target = $region57
    $region56: #{tpu_custom_call.1} parent=1 // pred_region
      %s83 = ssub.s32 32768, 32768
      %84 = vsyncadd [#allocation9], %s83
      %s85 = sshll.u32 [#allocation8], 4
      %s86 = int_to_ptr.vmem [resolvable:$true] %s85
      %91 = dma.hbm_to_vmem [thread:$0]  %s13, 32768, %s86, [#allocation9], 1024, 1024, 64
    $region57: #{tpu_custom_call.1} parent=1 // pred_fallthru
      _
    // Predicated region
    $region58: #{tpu_custom_call.1} parent=1 // pred_check
      _
    $region59: #{tpu_custom_call.1} parent=1 // pred_check_branch
      %93 = sbr.rel (0) target = $region61
    $region60: #{tpu_custom_call.1} parent=1 // pred_region
      _
    $region61: #{tpu_custom_call.1} parent=1 // pred_fallthru
      _
    // Predicated region
    $region62: #{tpu_custom_call.1} parent=1 // pred_check
      _
    $region63: #{tpu_custom_call.1} parent=1 // pred_check_branch
      %95 = sbr.rel (0) target = $region65
    $region64: #{tpu_custom_call.1} parent=1 // pred_region
      %96 = dma.done [#allocation3], 24576
    $region65: #{tpu_custom_call.1} parent=1 // pred_fallthru
      _
    // Predicated region
    $region66: #{tpu_custom_call.1} parent=1 // pred_check
      _
    $region67: #{tpu_custom_call.1} parent=1 // pred_check_branch
      %98 = sbr.rel (0) target = $region69
    $region68: #{tpu_custom_call.1} parent=1 // pred_region
      %99 = dma.done [#allocation6], 24576
    $region69: #{tpu_custom_call.1} parent=1 // pred_fallthru
      _
    // Predicated region
    $region70: #{tpu_custom_call.1} parent=1 // pred_check
      _
    $region71: #{tpu_custom_call.1} parent=1 // pred_check_branch
      %101 = sbr.rel (0) target = $region73
    $region72: #{tpu_custom_call.1} parent=1 // pred_region
      %102 = dma.done [#allocation6], 8192
    $region73: #{tpu_custom_call.1} parent=1 // pred_fallthru
      _
    // Predicated region
    $region74: #{tpu_custom_call.1} parent=1 // pred_check
      _
    $region75: #{tpu_custom_call.1} parent=1 // pred_check_branch
      %104 = sbr.rel (0) target = $region77
    $region76: #{tpu_custom_call.1} parent=1 // pred_region
      %105 = dma.done [#allocation9], 32768
    $region77: #{tpu_custom_call.1} parent=1 // pred_fallthru
      _
    %v106 = vld [vmem:[%s0] sm:$0xff]
    %v107 = vld [vmem:[%s0 + $0x8] sm:$0xff]
    %v108 = vld [vmem:[%s0 + $0x10] sm:$0x3]
    %v109 = vld [vmem:[%s0 + $0x18] sm:$0x3]
    %v110 = vld [vmem:[%s0 + $0x20] sm:$0xff]
    %v111 = vld [vmem:[%s0 + $0x28] sm:$0xff]
    %v112 = vld [vmem:[%s0 + $0x30] sm:$0x3]
    %v113 = vld [vmem:[%s0 + $0x38] sm:$0x3]
    %v114 = vld [vmem:[%s2] sm:$0x3]
    %v115 = vld [vmem:[#allocation2] sm:$0xff]
    %v116 = vld [vmem:[#allocation2 + $0x8] sm:$0xff]
    %v117 = vld [vmem:[#allocation2 + $0x10] sm:$0xff]
    %v118 = vld [vmem:[#allocation2 + $0x18] sm:$0xff]
    %v119 = vld [vmem:[#allocation2 + $0x20] sm:$0xff]
    %v120 = vld [vmem:[#allocation2 + $0x28] sm:$0xff]
    %v121 = vld [vmem:[#allocation2 + $0x30] sm:$0xff]
    %v122 = vld [vmem:[#allocation2 + $0x38] sm:$0xff]
    %v123 = vld [vmem:[#allocation2 + $0x40] sm:$0xff]
    %v124 = vld [vmem:[#allocation2 + $0x48] sm:$0xff]
    %v125 = vld [vmem:[#allocation2 + $0x50] sm:$0xff]
    %v126 = vld [vmem:[#allocation2 + $0x58] sm:$0xff]
    %v127 = vld [vmem:[#allocation2 + $0x60] sm:$0xff]
    %v128 = vld [vmem:[#allocation2 + $0x68] sm:$0xff]
    %v129 = vld [vmem:[#allocation2 + $0x70] sm:$0xff]
    %v130 = vld [vmem:[#allocation2 + $0x78] sm:$0xff]
    %v131 = vld [vmem:[#allocation2 + $0x80] sm:$0xff]
    %v132 = vld [vmem:[#allocation2 + $0x88] sm:$0xff]
    %v133 = vld [vmem:[#allocation2 + $0x90] sm:$0xff]
    %v134 = vld [vmem:[#allocation2 + $0x98] sm:$0xff]
    %v135 = vld [vmem:[#allocation2 + $0xa0] sm:$0xff]
    %v136 = vld [vmem:[#allocation2 + $0xa8] sm:$0xff]
    %v137 = vld [vmem:[#allocation2 + $0xb0] sm:$0xff]
    %v138 = vld [vmem:[#allocation2 + $0xb8] sm:$0xff]
    %v139 = vld [vmem:[#allocation2 + $0xc0] sm:$0xff]
    %v140 = vld [vmem:[#allocation2 + $0xc8] sm:$0xff]
    %v141 = vld [vmem:[#allocation2 + $0xd0] sm:$0xff]
    %v142 = vld [vmem:[#allocation2 + $0xd8] sm:$0xff]
    %v143 = vld [vmem:[#allocation2 + $0xe0] sm:$0xff]
    %v144 = vld [vmem:[#allocation2 + $0xe8] sm:$0xff]
    %v145 = vld [vmem:[#allocation2 + $0xf0] sm:$0xff]
    %v146 = vld [vmem:[#allocation2 + $0xf8] sm:$0xff]
    %v147 = vld [vmem:[#allocation2 + $0x100] sm:$0xff]
    %v148 = vld [vmem:[#allocation2 + $0x108] sm:$0xff]
    %v149 = vld [vmem:[#allocation2 + $0x110] sm:$0xff]
    %v150 = vld [vmem:[#allocation2 + $0x118] sm:$0xff]
    %v151 = vld [vmem:[#allocation2 + $0x120] sm:$0xff]
    %v152 = vld [vmem:[#allocation2 + $0x128] sm:$0xff]
    %v153 = vld [vmem:[#allocation2 + $0x130] sm:$0xff]
    %v154 = vld [vmem:[#allocation2 + $0x138] sm:$0xff]
    %v155 = vld [vmem:[#allocation2 + $0x140] sm:$0xff]
    %v156 = vld [vmem:[#allocation2 + $0x148] sm:$0xff]
    %v157 = vld [vmem:[#allocation2 + $0x150] sm:$0xff]
    %v158 = vld [vmem:[#allocation2 + $0x158] sm:$0xff]
    %v159 = vld [vmem:[#allocation2 + $0x160] sm:$0xff]
    %v160 = vld [vmem:[#allocation2 + $0x168] sm:$0xff]
    %v161 = vld [vmem:[#allocation2 + $0x170] sm:$0xff]
    %v162 = vld [vmem:[#allocation2 + $0x178] sm:$0xff]
    %v163 = vld [vmem:[#allocation2 + $0x180] sm:$0xff]
    %v164 = vld [vmem:[#allocation2 + $0x188] sm:$0xff]
    %v165 = vld [vmem:[#allocation2 + $0x190] sm:$0xff]
    %v166 = vld [vmem:[#allocation2 + $0x198] sm:$0xff]
    %v167 = vld [vmem:[#allocation2 + $0x1a0] sm:$0xff]
    %v168 = vld [vmem:[#allocation2 + $0x1a8] sm:$0xff]
    %v169 = vld [vmem:[#allocation2 + $0x1b0] sm:$0xff]
    %v170 = vld [vmem:[#allocation2 + $0x1b8] sm:$0xff]
    %v171 = vld [vmem:[#allocation2 + $0x1c0] sm:$0xff]
    %v172 = vld [vmem:[#allocation2 + $0x1c8] sm:$0xff]
    %v173 = vld [vmem:[#allocation2 + $0x1d0] sm:$0xff]
    %v174 = vld [vmem:[#allocation2 + $0x1d8] sm:$0xff]
    %v175 = vld [vmem:[#allocation2 + $0x1e0] sm:$0xff]
    %v176 = vld [vmem:[#allocation2 + $0x1e8] sm:$0xff]
    %v177 = vld [vmem:[#allocation2 + $0x1f0] sm:$0xff]
    %v178 = vld [vmem:[#allocation2 + $0x1f8] sm:$0xff]
    %vm187 = vcmask 1046528
    %v188 = vrot.slane %v106, 1
    %v189 = vrot.slane %v108, 1
    %v190 = vsel %vm187, %v188, %v189
    %v191 = vrot.slane %v107, 1
    %v192 = vrot.slane %v109, 1
    %v193 = vsel %vm187, %v191, %v192
    %v194 = vrot.slane %v110, 1
    %v195 = vrot.slane %v112, 1
    %v196 = vsel %vm187, %v194, %v195
    %v197 = vrot.slane %v111, 1
    %v198 = vrot.slane %v113, 1
    %v199 = vsel %vm187, %v197, %v198
    %s204 = scalar_lea.vmem [#allocation2], 512
    %v205 = vld [vmem:[%s204] sm:$0xff]
    %v206 = vld [vmem:[%s204 + $0x8] sm:$0xff]
    %v207 = vld [vmem:[%s204 + $0x10] sm:$0xff]
    %v208 = vld [vmem:[%s204 + $0x18] sm:$0xff]
    %v209 = vld [vmem:[%s204 + $0x20] sm:$0xff]
    %v210 = vld [vmem:[%s204 + $0x28] sm:$0xff]
    %v211 = vld [vmem:[%s204 + $0x30] sm:$0xff]
    %v212 = vld [vmem:[%s204 + $0x38] sm:$0xff]
    %v213 = vld [vmem:[%s204 + $0x40] sm:$0xff]
    %v214 = vld [vmem:[%s204 + $0x48] sm:$0xff]
    %v215 = vld [vmem:[%s204 + $0x50] sm:$0xff]
    %v216 = vld [vmem:[%s204 + $0x58] sm:$0xff]
    %v217 = vld [vmem:[%s204 + $0x60] sm:$0xff]
    %v218 = vld [vmem:[%s204 + $0x68] sm:$0xff]
    %v219 = vld [vmem:[%s204 + $0x70] sm:$0xff]
    %v220 = vld [vmem:[%s204 + $0x78] sm:$0xff]
    %v221 = vld [vmem:[%s204 + $0x80] sm:$0xff]
    %v222 = vld [vmem:[%s204 + $0x88] sm:$0xff]
    %v223 = vld [vmem:[%s204 + $0x90] sm:$0xff]
    %v224 = vld [vmem:[%s204 + $0x98] sm:$0xff]
    %v225 = vld [vmem:[%s204 + $0xa0] sm:$0xff]
    %v226 = vld [vmem:[%s204 + $0xa8] sm:$0xff]
    %v227 = vld [vmem:[%s204 + $0xb0] sm:$0xff]
    %v228 = vld [vmem:[%s204 + $0xb8] sm:$0xff]
    %v229 = vld [vmem:[%s204 + $0xc0] sm:$0xff]
    %v230 = vld [vmem:[%s204 + $0xc8] sm:$0xff]
    %v231 = vld [vmem:[%s204 + $0xd0] sm:$0xff]
    %v232 = vld [vmem:[%s204 + $0xd8] sm:$0xff]
    %v233 = vld [vmem:[%s204 + $0xe0] sm:$0xff]
    %v234 = vld [vmem:[%s204 + $0xe8] sm:$0xff]
    %v235 = vld [vmem:[%s204 + $0xf0] sm:$0xff]
    %v236 = vld [vmem:[%s204 + $0xf8] sm:$0xff]
    %v237 = vld [vmem:[%s204 + $0x100] sm:$0xff]
    %v238 = vld [vmem:[%s204 + $0x108] sm:$0xff]
    %v239 = vld [vmem:[%s204 + $0x110] sm:$0xff]
    %v240 = vld [vmem:[%s204 + $0x118] sm:$0xff]
    %v241 = vld [vmem:[%s204 + $0x120] sm:$0xff]
    %v242 = vld [vmem:[%s204 + $0x128] sm:$0xff]
    %v243 = vld [vmem:[%s204 + $0x130] sm:$0xff]
    %v244 = vld [vmem:[%s204 + $0x138] sm:$0xff]
    %v245 = vld [vmem:[%s204 + $0x140] sm:$0xff]
    %v246 = vld [vmem:[%s204 + $0x148] sm:$0xff]
    %v247 = vld [vmem:[%s204 + $0x150] sm:$0xff]
    %v248 = vld [vmem:[%s204 + $0x158] sm:$0xff]
    %v249 = vld [vmem:[%s204 + $0x160] sm:$0xff]
    %v250 = vld [vmem:[%s204 + $0x168] sm:$0xff]
    %v251 = vld [vmem:[%s204 + $0x170] sm:$0xff]
    %v252 = vld [vmem:[%s204 + $0x178] sm:$0xff]
    %v253 = vld [vmem:[%s204 + $0x180] sm:$0xff]
    %v254 = vld [vmem:[%s204 + $0x188] sm:$0xff]
    %v255 = vld [vmem:[%s204 + $0x190] sm:$0xff]
    %v256 = vld [vmem:[%s204 + $0x198] sm:$0xff]
    %v257 = vld [vmem:[%s204 + $0x1a0] sm:$0xff]
    %v258 = vld [vmem:[%s204 + $0x1a8] sm:$0xff]
    %v259 = vld [vmem:[%s204 + $0x1b0] sm:$0xff]
    %v260 = vld [vmem:[%s204 + $0x1b8] sm:$0xff]
    %v261 = vld [vmem:[%s204 + $0x1c0] sm:$0xff]
    %v262 = vld [vmem:[%s204 + $0x1c8] sm:$0xff]
    %v263 = vld [vmem:[%s204 + $0x1d0] sm:$0xff]
    %v264 = vld [vmem:[%s204 + $0x1d8] sm:$0xff]
    %v265 = vld [vmem:[%s204 + $0x1e0] sm:$0xff]
    %v266 = vld [vmem:[%s204 + $0x1e8] sm:$0xff]
    %v267 = vld [vmem:[%s204 + $0x1f0] sm:$0xff]
    %v268 = vld [vmem:[%s204 + $0x1f8] sm:$0xff]
    %269 = vmatprep.subr.mxu0 %v236
    %270 = vmatpush1.msra.mxu0 %v235
    %271 = vmatprep.subr.mxu0 %v234
    %272 = vmatpush1.msra.mxu0 %v233
    %273 = vmatprep.subr.mxu0 %v232
    %274 = vmatpush1.msra.mxu0 %v231
    %275 = vmatprep.subr.mxu0 %v230
    %276 = vmatpush1.msra.mxu0 %v229
    %277 = vmatprep.subr.mxu0 %v228
    %278 = vmatpush1.msra.mxu0 %v227
    %279 = vmatprep.subr.mxu0 %v226
    %280 = vmatpush1.msra.mxu0 %v225
    %281 = vmatprep.subr.mxu0 %v224
    %282 = vmatpush1.msra.mxu0 %v223
    %283 = vmatprep.subr.mxu0 %v222
    %284 = vmatpush1.msra.mxu0 %v221
    %285 = vmatprep.subr.mxu0 %v220
    %286 = vmatpush1.msra.mxu0 %v219
    %287 = vmatprep.subr.mxu0 %v218
    %288 = vmatpush1.msra.mxu0 %v217
    %289 = vmatprep.subr.mxu0 %v216
    %290 = vmatpush1.msra.mxu0 %v215
    %291 = vmatprep.subr.mxu0 %v214
    %292 = vmatpush1.msra.mxu0 %v213
    %293 = vmatprep.subr.mxu0 %v212
    %294 = vmatpush1.msra.mxu0 %v211
    %295 = vmatprep.subr.mxu0 %v210
    %296 = vmatpush1.msra.mxu0 %v209
    %297 = vmatprep.subr.mxu0 %v208
    %298 = vmatpush1.msra.mxu0 %v207
    %299 = vmatprep.subr.mxu0 %v206
    %300 = vmatpush1.msra.mxu0 %v205
    %301 = vmatprep.subr.mxu0 %v268
    %302 = vmatpush2.msra.mxu0 %v267
    %303 = vmatprep.subr.mxu0 %v266
    %304 = vmatpush2.msra.mxu0 %v265
    %305 = vmatprep.subr.mxu0 %v264
    %306 = vmatpush2.msra.mxu0 %v263
    %307 = vmatprep.subr.mxu0 %v262
    %308 = vmatpush2.msra.mxu0 %v261
    %309 = vmatprep.subr.mxu0 %v260
    %310 = vmatpush2.msra.mxu0 %v259
    %311 = vmatprep.subr.mxu0 %v258
    %312 = vmatpush2.msra.mxu0 %v257
    %313 = vmatprep.subr.mxu0 %v256
    %314 = vmatpush2.msra.mxu0 %v255
    %315 = vmatprep.subr.mxu0 %v254
    %316 = vmatpush2.msra.mxu0 %v253
    %317 = vmatprep.subr.mxu0 %v252
    %318 = vmatpush2.msra.mxu0 %v251
    %319 = vmatprep.subr.mxu0 %v250
    %320 = vmatpush2.msra.mxu0 %v249
    %321 = vmatprep.subr.mxu0 %v248
    %322 = vmatpush2.msra.mxu0 %v247
    %323 = vmatprep.subr.mxu0 %v246
    %324 = vmatpush2.msra.mxu0 %v245
    %325 = vmatprep.subr.mxu0 %v244
    %326 = vmatpush2.msra.mxu0 %v243
    %327 = vmatprep.subr.mxu0 %v242
    %328 = vmatpush2.msra.mxu0 %v241
    %329 = vmatprep.subr.mxu0 %v240
    %330 = vmatpush2.msra.mxu0 %v239
    %331 = vmatprep.subr.mxu0 %v238
    %332 = vmatpush2.msra.mxu0 %v237
    %333 = vmatprep.mubr.f32.mxu0 %v193
    %334 = vmatmul.mubr.f32.gmra.mxu0 %v190
    %v335 = vpop.f32.mrf.mxu0
    %v336 = vadd.f32 0.0, %v335
    %v337 = vpop.f32.mrf.mxu0
    %v338 = vadd.f32 0.0, %v337
    %339 = vmatprep.mubr.f32.mxu0 %v199
    %340 = vmatmul.mubr.f32.gmra.mxu0 %v196
    %v341 = vpop.f32.mrf.mxu0
    %v342 = vadd.f32 0.0, %v341
    %v343 = vpop.f32.mrf.mxu0
    %v344 = vadd.f32 0.0, %v343
    %345 = vdwg.mxu0
    %346 = vmatprep.subr.mxu0 %v146
    %347 = vmatpush1.msra.mxu0 %v145
    %348 = vmatprep.subr.mxu0 %v144
    %349 = vmatpush1.msra.mxu0 %v143
    %350 = vmatprep.subr.mxu0 %v142
    %351 = vmatpush1.msra.mxu0 %v141
    %352 = vmatprep.subr.mxu0 %v140
    %353 = vmatpush1.msra.mxu0 %v139
    %354 = vmatprep.subr.mxu0 %v138
    %355 = vmatpush1.msra.mxu0 %v137
    %356 = vmatprep.subr.mxu0 %v136
    %357 = vmatpush1.msra.mxu0 %v135
    %358 = vmatprep.subr.mxu0 %v134
    %359 = vmatpush1.msra.mxu0 %v133
    %360 = vmatprep.subr.mxu0 %v132
    %361 = vmatpush1.msra.mxu0 %v131
    %362 = vmatprep.subr.mxu0 %v130
    %363 = vmatpush1.msra.mxu0 %v129
    %364 = vmatprep.subr.mxu0 %v128
    %365 = vmatpush1.msra.mxu0 %v127
    %366 = vmatprep.subr.mxu0 %v126
    %367 = vmatpush1.msra.mxu0 %v125
    %368 = vmatprep.subr.mxu0 %v124
    %369 = vmatpush1.msra.mxu0 %v123
    %370 = vmatprep.subr.mxu0 %v122
    %371 = vmatpush1.msra.mxu0 %v121
    %372 = vmatprep.subr.mxu0 %v120
    %373 = vmatpush1.msra.mxu0 %v119
    %374 = vmatprep.subr.mxu0 %v118
    %375 = vmatpush1.msra.mxu0 %v117
    %376 = vmatprep.subr.mxu0 %v116
    %377 = vmatpush1.msra.mxu0 %v115
    %378 = vmatprep.subr.mxu0 %v178
    %379 = vmatpush2.msra.mxu0 %v177
    %380 = vmatprep.subr.mxu0 %v176
    %381 = vmatpush2.msra.mxu0 %v175
    %382 = vmatprep.subr.mxu0 %v174
    %383 = vmatpush2.msra.mxu0 %v173
    %384 = vmatprep.subr.mxu0 %v172
    %385 = vmatpush2.msra.mxu0 %v171
    %386 = vmatprep.subr.mxu0 %v170
    %387 = vmatpush2.msra.mxu0 %v169
    %388 = vmatprep.subr.mxu0 %v168
    %389 = vmatpush2.msra.mxu0 %v167
    %390 = vmatprep.subr.mxu0 %v166
    %391 = vmatpush2.msra.mxu0 %v165
    %392 = vmatprep.subr.mxu0 %v164
    %393 = vmatpush2.msra.mxu0 %v163
    %394 = vmatprep.subr.mxu0 %v162
    %395 = vmatpush2.msra.mxu0 %v161
    %396 = vmatprep.subr.mxu0 %v160
    %397 = vmatpush2.msra.mxu0 %v159
    %398 = vmatprep.subr.mxu0 %v158
    %399 = vmatpush2.msra.mxu0 %v157
    %400 = vmatprep.subr.mxu0 %v156
    %401 = vmatpush2.msra.mxu0 %v155
    %402 = vmatprep.subr.mxu0 %v154
    %403 = vmatpush2.msra.mxu0 %v153
    %404 = vmatprep.subr.mxu0 %v152
    %405 = vmatpush2.msra.mxu0 %v151
    %406 = vmatprep.subr.mxu0 %v150
    %407 = vmatpush2.msra.mxu0 %v149
    %408 = vmatprep.subr.mxu0 %v148
    %409 = vmatpush2.msra.mxu0 %v147
    %410 = vmatprep.mubr.f32.mxu0 %v107
    %411 = vmatmul.mubr.f32.gmra.mxu0 %v106
    %v412 = vpop.f32.mrf.mxu0
    %v413 = vadd.f32 %v336, %v412
    %v414 = vpop.f32.mrf.mxu0
    %v415 = vadd.f32 %v338, %v414
    %416 = vmatprep.mubr.f32.mxu0 %v111
    %417 = vmatmul.mubr.f32.gmra.mxu0 %v110
    %v418 = vpop.f32.mrf.mxu0
    %v419 = vadd.f32 %v342, %v418
    %v420 = vpop.f32.mrf.mxu0
    %v421 = vadd.f32 %v344, %v420
    %422 = vdwg.mxu0
    %vm423 = vcmask 1045504
    %v424 = vrot.slane %v106, 2
    %v425 = vrot.slane %v108, 2
    %v426 = vsel %vm423, %v424, %v425
    %v427 = vrot.slane %v107, 2
    %v428 = vrot.slane %v109, 2
    %v429 = vsel %vm423, %v427, %v428
    %v430 = vrot.slane %v110, 2
    %v431 = vrot.slane %v112, 2
    %v432 = vsel %vm423, %v430, %v431
    %v433 = vrot.slane %v111, 2
    %v434 = vrot.slane %v113, 2
    %v435 = vsel %vm423, %v433, %v434
    %s440 = scalar_lea.vmem [#allocation2], 1024
    %v441 = vld [vmem:[%s440] sm:$0xff]
    %v442 = vld [vmem:[%s440 + $0x8] sm:$0xff]
    %v443 = vld [vmem:[%s440 + $0x10] sm:$0xff]
    %v444 = vld [vmem:[%s440 + $0x18] sm:$0xff]
    %v445 = vld [vmem:[%s440 + $0x20] sm:$0xff]
    %v446 = vld [vmem:[%s440 + $0x28] sm:$0xff]
    %v447 = vld [vmem:[%s440 + $0x30] sm:$0xff]
    %v448 = vld [vmem:[%s440 + $0x38] sm:$0xff]
    %v449 = vld [vmem:[%s440 + $0x40] sm:$0xff]
    %v450 = vld [vmem:[%s440 + $0x48] sm:$0xff]
    %v451 = vld [vmem:[%s440 + $0x50] sm:$0xff]
    %v452 = vld [vmem:[%s440 + $0x58] sm:$0xff]
    %v453 = vld [vmem:[%s440 + $0x60] sm:$0xff]
    %v454 = vld [vmem:[%s440 + $0x68] sm:$0xff]
    %v455 = vld [vmem:[%s440 + $0x70] sm:$0xff]
    %v456 = vld [vmem:[%s440 + $0x78] sm:$0xff]
    %v457 = vld [vmem:[%s440 + $0x80] sm:$0xff]
    %v458 = vld [vmem:[%s440 + $0x88] sm:$0xff]
    %v459 = vld [vmem:[%s440 + $0x90] sm:$0xff]
    %v460 = vld [vmem:[%s440 + $0x98] sm:$0xff]
    %v461 = vld [vmem:[%s440 + $0xa0] sm:$0xff]
    %v462 = vld [vmem:[%s440 + $0xa8] sm:$0xff]
    %v463 = vld [vmem:[%s440 + $0xb0] sm:$0xff]
    %v464 = vld [vmem:[%s440 + $0xb8] sm:$0xff]
    %v465 = vld [vmem:[%s440 + $0xc0] sm:$0xff]
    %v466 = vld [vmem:[%s440 + $0xc8] sm:$0xff]
    %v467 = vld [vmem:[%s440 + $0xd0] sm:$0xff]
    %v468 = vld [vmem:[%s440 + $0xd8] sm:$0xff]
    %v469 = vld [vmem:[%s440 + $0xe0] sm:$0xff]
    %v470 = vld [vmem:[%s440 + $0xe8] sm:$0xff]
    %v471 = vld [vmem:[%s440 + $0xf0] sm:$0xff]
    %v472 = vld [vmem:[%s440 + $0xf8] sm:$0xff]
    %v473 = vld [vmem:[%s440 + $0x100] sm:$0xff]
    %v474 = vld [vmem:[%s440 + $0x108] sm:$0xff]
    %v475 = vld [vmem:[%s440 + $0x110] sm:$0xff]
    %v476 = vld [vmem:[%s440 + $0x118] sm:$0xff]
    %v477 = vld [vmem:[%s440 + $0x120] sm:$0xff]
    %v478 = vld [vmem:[%s440 + $0x128] sm:$0xff]
    %v479 = vld [vmem:[%s440 + $0x130] sm:$0xff]
    %v480 = vld [vmem:[%s440 + $0x138] sm:$0xff]
    %v481 = vld [vmem:[%s440 + $0x140] sm:$0xff]
    %v482 = vld [vmem:[%s440 + $0x148] sm:$0xff]
    %v483 = vld [vmem:[%s440 + $0x150] sm:$0xff]
    %v484 = vld [vmem:[%s440 + $0x158] sm:$0xff]
    %v485 = vld [vmem:[%s440 + $0x160] sm:$0xff]
    %v486 = vld [vmem:[%s440 + $0x168] sm:$0xff]
    %v487 = vld [vmem:[%s440 + $0x170] sm:$0xff]
    %v488 = vld [vmem:[%s440 + $0x178] sm:$0xff]
    %v489 = vld [vmem:[%s440 + $0x180] sm:$0xff]
    %v490 = vld [vmem:[%s440 + $0x188] sm:$0xff]
    %v491 = vld [vmem:[%s440 + $0x190] sm:$0xff]
    %v492 = vld [vmem:[%s440 + $0x198] sm:$0xff]
    %v493 = vld [vmem:[%s440 + $0x1a0] sm:$0xff]
    %v494 = vld [vmem:[%s440 + $0x1a8] sm:$0xff]
    %v495 = vld [vmem:[%s440 + $0x1b0] sm:$0xff]
    %v496 = vld [vmem:[%s440 + $0x1b8] sm:$0xff]
    %v497 = vld [vmem:[%s440 + $0x1c0] sm:$0xff]
    %v498 = vld [vmem:[%s440 + $0x1c8] sm:$0xff]
    %v499 = vld [vmem:[%s440 + $0x1d0] sm:$0xff]
    %v500 = vld [vmem:[%s440 + $0x1d8] sm:$0xff]
    %v501 = vld [vmem:[%s440 + $0x1e0] sm:$0xff]
    %v502 = vld [vmem:[%s440 + $0x1e8] sm:$0xff]
    %v503 = vld [vmem:[%s440 + $0x1f0] sm:$0xff]
    %v504 = vld [vmem:[%s440 + $0x1f8] sm:$0xff]
    %505 = vmatprep.subr.mxu0 %v472
    %506 = vmatpush1.msra.mxu0 %v471
    %507 = vmatprep.subr.mxu0 %v470
    %508 = vmatpush1.msra.mxu0 %v469
    %509 = vmatprep.subr.mxu0 %v468
    %510 = vmatpush1.msra.mxu0 %v467
    %511 = vmatprep.subr.mxu0 %v466
    %512 = vmatpush1.msra.mxu0 %v465
    %513 = vmatprep.subr.mxu0 %v464
    %514 = vmatpush1.msra.mxu0 %v463
    %515 = vmatprep.subr.mxu0 %v462
    %516 = vmatpush1.msra.mxu0 %v461
    %517 = vmatprep.subr.mxu0 %v460
    %518 = vmatpush1.msra.mxu0 %v459
    %519 = vmatprep.subr.mxu0 %v458
    %520 = vmatpush1.msra.mxu0 %v457
    %521 = vmatprep.subr.mxu0 %v456
    %522 = vmatpush1.msra.mxu0 %v455
    %523 = vmatprep.subr.mxu0 %v454
    %524 = vmatpush1.msra.mxu0 %v453
    %525 = vmatprep.subr.mxu0 %v452
    %526 = vmatpush1.msra.mxu0 %v451
    %527 = vmatprep.subr.mxu0 %v450
    %528 = vmatpush1.msra.mxu0 %v449
    %529 = vmatprep.subr.mxu0 %v448
    %530 = vmatpush1.msra.mxu0 %v447
    %531 = vmatprep.subr.mxu0 %v446
    %532 = vmatpush1.msra.mxu0 %v445
    %533 = vmatprep.subr.mxu0 %v444
    %534 = vmatpush1.msra.mxu0 %v443
    %535 = vmatprep.subr.mxu0 %v442
    %536 = vmatpush1.msra.mxu0 %v441
    %537 = vmatprep.subr.mxu0 %v504
    %538 = vmatpush2.msra.mxu0 %v503
    %539 = vmatprep.subr.mxu0 %v502
    %540 = vmatpush2.msra.mxu0 %v501
    %541 = vmatprep.subr.mxu0 %v500
    %542 = vmatpush2.msra.mxu0 %v499
    %543 = vmatprep.subr.mxu0 %v498
    %544 = vmatpush2.msra.mxu0 %v497
    %545 = vmatprep.subr.mxu0 %v496
    %546 = vmatpush2.msra.mxu0 %v495
    %547 = vmatprep.subr.mxu0 %v494
    %548 = vmatpush2.msra.mxu0 %v493
    %549 = vmatprep.subr.mxu0 %v492
    %550 = vmatpush2.msra.mxu0 %v491
    %551 = vmatprep.subr.mxu0 %v490
    %552 = vmatpush2.msra.mxu0 %v489
    %553 = vmatprep.subr.mxu0 %v488
    %554 = vmatpush2.msra.mxu0 %v487
    %555 = vmatprep.subr.mxu0 %v486
    %556 = vmatpush2.msra.mxu0 %v485
    %557 = vmatprep.subr.mxu0 %v484
    %558 = vmatpush2.msra.mxu0 %v483
    %559 = vmatprep.subr.mxu0 %v482
    %560 = vmatpush2.msra.mxu0 %v481
    %561 = vmatprep.subr.mxu0 %v480
    %562 = vmatpush2.msra.mxu0 %v479
    %563 = vmatprep.subr.mxu0 %v478
    %564 = vmatpush2.msra.mxu0 %v477
    %565 = vmatprep.subr.mxu0 %v476
    %566 = vmatpush2.msra.mxu0 %v475
    %567 = vmatprep.subr.mxu0 %v474
    %568 = vmatpush2.msra.mxu0 %v473
    %569 = vmatprep.mubr.f32.mxu0 %v429
    %570 = vmatmul.mubr.f32.gmra.mxu0 %v426
    %v571 = vpop.f32.mrf.mxu0
    %v572 = vadd.f32 0.0, %v571
    %v573 = vpop.f32.mrf.mxu0
    %v574 = vadd.f32 0.0, %v573
    %575 = vmatprep.mubr.f32.mxu0 %v435
    %576 = vmatmul.mubr.f32.gmra.mxu0 %v432
    %v577 = vpop.f32.mrf.mxu0
    %v578 = vadd.f32 0.0, %v577
    %v579 = vpop.f32.mrf.mxu0
    %v580 = vadd.f32 0.0, %v579
    %581 = vdwg.mxu0
    %v582 = vadd.f32 %v413, %v572
    %v583 = vadd.f32 %v415, %v574
    %v584 = vadd.f32 %v419, %v578
    %v585 = vadd.f32 %v421, %v580
    %v587 = vlaneseq
    %v588 = vshrl.u32 %v587, 7
    %v589 = vsub.s32 0, %v588
    %v590 = vrot.slane %v114, %v589
    %v591 = vlaneseq
    %v592 = vshrl.u32 %v591, 7
    %v593 = vsub.s32 1, %v592
    %v594 = vrot.slane %v114, %v593
    %v597 = vadd.f32 %v582, %v590
    %v598 = vadd.f32 %v583, %v594
    %v599 = vadd.f32 %v584, %v590
    %v600 = vadd.f32 %v585, %v594
    %v601 = vld [vmem:[%s12] sm:$0xff]
    %v602 = vld [vmem:[%s12 + $0x8] sm:$0xff]
    %v603 = vld [vmem:[%s12 + $0x10] sm:$0xff]
    %v604 = vld [vmem:[%s12 + $0x18] sm:$0xff]
    %v605 = vld [vmem:[%s12 + $0x20] sm:$0xff]
    %v606 = vld [vmem:[%s12 + $0x28] sm:$0xff]
    %v607 = vld [vmem:[%s12 + $0x30] sm:$0xff]
    %v608 = vld [vmem:[%s12 + $0x38] sm:$0xff]
    %v609 = vld [vmem:[%s12 + $0x40] sm:$0xff]
    %v610 = vld [vmem:[%s12 + $0x48] sm:$0xff]
    %v611 = vld [vmem:[%s12 + $0x50] sm:$0xff]
    %v612 = vld [vmem:[%s12 + $0x58] sm:$0xff]
    %v613 = vld [vmem:[%s12 + $0x60] sm:$0xff]
    %v614 = vld [vmem:[%s12 + $0x68] sm:$0xff]
    %v615 = vld [vmem:[%s12 + $0x70] sm:$0xff]
    %v616 = vld [vmem:[%s12 + $0x78] sm:$0xff]
    %v617 = vld [vmem:[%s12 + $0x80] sm:$0xff]
    %v618 = vld [vmem:[%s12 + $0x88] sm:$0xff]
    %v619 = vld [vmem:[%s12 + $0x90] sm:$0xff]
    %v620 = vld [vmem:[%s12 + $0x98] sm:$0xff]
    %v621 = vld [vmem:[%s12 + $0xa0] sm:$0xff]
    %v622 = vld [vmem:[%s12 + $0xa8] sm:$0xff]
    %v623 = vld [vmem:[%s12 + $0xb0] sm:$0xff]
    %v624 = vld [vmem:[%s12 + $0xb8] sm:$0xff]
    %v625 = vld [vmem:[%s12 + $0xc0] sm:$0xff]
    %v626 = vld [vmem:[%s12 + $0xc8] sm:$0xff]
    %v627 = vld [vmem:[%s12 + $0xd0] sm:$0xff]
    %v628 = vld [vmem:[%s12 + $0xd8] sm:$0xff]
    %v629 = vld [vmem:[%s12 + $0xe0] sm:$0xff]
    %v630 = vld [vmem:[%s12 + $0xe8] sm:$0xff]
    %v631 = vld [vmem:[%s12 + $0xf0] sm:$0xff]
    %v632 = vld [vmem:[%s12 + $0xf8] sm:$0xff]
    %633 = vmatprep.subr.mxu0 0.0
    %634 = vmatpush1.msra.mxu0 %v616
    %635 = vmatprep.subr.mxu0 0.0
    %636 = vmatpush1.msra.mxu0 %v615
    %637 = vmatprep.subr.mxu0 0.0
    %638 = vmatpush1.msra.mxu0 %v614
    %639 = vmatprep.subr.mxu0 0.0
    %640 = vmatpush1.msra.mxu0 %v613
    %641 = vmatprep.subr.mxu0 0.0
    %642 = vmatpush1.msra.mxu0 %v612
    %643 = vmatprep.subr.mxu0 0.0
    %644 = vmatpush1.msra.mxu0 %v611
    %645 = vmatprep.subr.mxu0 0.0
    %646 = vmatpush1.msra.mxu0 %v610
    %647 = vmatprep.subr.mxu0 0.0
    %648 = vmatpush1.msra.mxu0 %v609
    %649 = vmatprep.subr.mxu0 0.0
    %650 = vmatpush1.msra.mxu0 %v608
    %651 = vmatprep.subr.mxu0 0.0
    %652 = vmatpush1.msra.mxu0 %v607
    %653 = vmatprep.subr.mxu0 0.0
    %654 = vmatpush1.msra.mxu0 %v606
    %655 = vmatprep.subr.mxu0 0.0
    %656 = vmatpush1.msra.mxu0 %v605
    %657 = vmatprep.subr.mxu0 0.0
    %658 = vmatpush1.msra.mxu0 %v604
    %659 = vmatprep.subr.mxu0 0.0
    %660 = vmatpush1.msra.mxu0 %v603
    %661 = vmatprep.subr.mxu0 0.0
    %662 = vmatpush1.msra.mxu0 %v602
    %663 = vmatprep.subr.mxu0 0.0
    %664 = vmatpush1.msra.mxu0 %v601
    %665 = vmatprep.subr.mxu0 0.0
    %666 = vmatpush2.msra.mxu0 %v632
    %667 = vmatprep.subr.mxu0 0.0
    %668 = vmatpush2.msra.mxu0 %v631
    %669 = vmatprep.subr.mxu0 0.0
    %670 = vmatpush2.msra.mxu0 %v630
    %671 = vmatprep.subr.mxu0 0.0
    %672 = vmatpush2.msra.mxu0 %v629
    %673 = vmatprep.subr.mxu0 0.0
    %674 = vmatpush2.msra.mxu0 %v628
    %675 = vmatprep.subr.mxu0 0.0
    %676 = vmatpush2.msra.mxu0 %v627
    %677 = vmatprep.subr.mxu0 0.0
    %678 = vmatpush2.msra.mxu0 %v626
    %679 = vmatprep.subr.mxu0 0.0
    %680 = vmatpush2.msra.mxu0 %v625
    %681 = vmatprep.subr.mxu0 0.0
    %682 = vmatpush2.msra.mxu0 %v624
    %683 = vmatprep.subr.mxu0 0.0
    %684 = vmatpush2.msra.mxu0 %v623
    %685 = vmatprep.subr.mxu0 0.0
    %686 = vmatpush2.msra.mxu0 %v622
    %687 = vmatprep.subr.mxu0 0.0
    %688 = vmatpush2.msra.mxu0 %v621
    %689 = vmatprep.subr.mxu0 0.0
    %690 = vmatpush2.msra.mxu0 %v620
    %691 = vmatprep.subr.mxu0 0.0
    %692 = vmatpush2.msra.mxu0 %v619
    %693 = vmatprep.subr.mxu0 0.0
    %694 = vmatpush2.msra.mxu0 %v618
    %695 = vmatprep.subr.mxu0 0.0
    %696 = vmatpush2.msra.mxu0 %v617
    %697 = vmatprep.mubr.f32.mxu0 %v598
    %698 = vmatmul.mubr.f32.gmra.mxu0 %v597
    %v699 = vpop.f32.mrf.mxu0
    %v700 = vadd.f32 0.0, %v699
    %v701 = vpop.f32.mrf.mxu0
    %702 = vmatprep.mubr.f32.mxu0 %v600
    %703 = vmatmul.mubr.f32.gmra.mxu0 %v599
    %v704 = vpop.f32.mrf.mxu0
    %v705 = vadd.f32 0.0, %v704
    %v706 = vpop.f32.mrf.mxu0
    %707 = vdwg.mxu0
    %vm708 = vcmask 31744
    %v709 = vsel %vm708, %v700, 0.0
    %v710 = vsel %vm708, %v705, 0.0
    %v711 = vadd.f32 %v709, %v710
    %v712 = vrot.slane %v711, 4
    %v713 = vadd.f32 %v711, %v712
    %v714 = vrot.slane %v713, 2
    %v715 = vadd.f32 %v713, %v714
    %v716 = vrot.slane %v715, 1
    %v717 = vadd.f32 %v715, %v716
    %v718 = vmul.f32 %v717, 0.0009765625
    %v719 = vld [vmem:[%s11] sm:$0xff]
    %v721 = vcombine.high %v719, %v719
    %v723 = vsel %vm708, %v718, 0
    %vm725 = vcmask 1043456
    %v726 = vsel %vm725, %v719, 0
    %v728 = vsel %vm725, %v721, 0
    %730 = vmatprep.subr.mxu0 0.0
    %731 = vmatpush1.msra.mxu0 0.0
    %732 = vmatprep.subr.mxu0 0.0
    %733 = vmatpush1.msra.mxu0 0.0
    %734 = vmatprep.subr.mxu0 0.0
    %735 = vmatpush1.msra.mxu0 0.0
    %736 = vmatprep.subr.mxu0 0.0
    %737 = vmatpush1.msra.mxu0 0.0
    %738 = vmatprep.subr.mxu0 0.0
    %739 = vmatpush1.msra.mxu0 0.0
    %740 = vmatprep.subr.mxu0 0.0
    %741 = vmatpush1.msra.mxu0 0.0
    %742 = vmatprep.subr.mxu0 0.0
    %743 = vmatpush1.msra.mxu0 0.0
    %744 = vmatprep.subr.mxu0 0.0
    %745 = vmatpush1.msra.mxu0 0.0
    %746 = vmatprep.subr.mxu0 0.0
    %747 = vmatpush1.msra.mxu0 0.0
    %748 = vmatprep.subr.mxu0 0.0
    %749 = vmatpush1.msra.mxu0 0.0
    %750 = vmatprep.subr.mxu0 0.0
    %751 = vmatpush1.msra.mxu0 0.0
    %752 = vmatprep.subr.mxu0 0.0
    %753 = vmatpush1.msra.mxu0 0.0
    %754 = vmatprep.subr.mxu0 0.0
    %755 = vmatpush1.msra.mxu0 0.0
    %756 = vmatprep.subr.mxu0 0.0
    %757 = vmatpush1.msra.mxu0 0.0
    %758 = vmatprep.subr.mxu0 0.0
    %759 = vmatpush1.msra.mxu0 0.0
    %760 = vmatprep.subr.mxu0 %v728
    %761 = vmatpush1.msra.mxu0 %v726
    %762 = vmatprep.subr.mxu0 0.0
    %763 = vmatpush2.msra.mxu0 0.0
    %764 = vmatprep.subr.mxu0 0.0
    %765 = vmatpush2.msra.mxu0 0.0
    %766 = vmatprep.subr.mxu0 0.0
    %767 = vmatpush2.msra.mxu0 0.0
    %768 = vmatprep.subr.mxu0 0.0
    %769 = vmatpush2.msra.mxu0 0.0
    %770 = vmatprep.subr.mxu0 0.0
    %771 = vmatpush2.msra.mxu0 0.0
    %772 = vmatprep.subr.mxu0 0.0
    %773 = vmatpush2.msra.mxu0 0.0
    %774 = vmatprep.subr.mxu0 0.0
    %775 = vmatpush2.msra.mxu0 0.0
    %776 = vmatprep.subr.mxu0 0.0
    %777 = vmatpush2.msra.mxu0 0.0
    %778 = vmatprep.subr.mxu0 0.0
    %779 = vmatpush2.msra.mxu0 0.0
    %780 = vmatprep.subr.mxu0 0.0
    %781 = vmatpush2.msra.mxu0 0.0
    %782 = vmatprep.subr.mxu0 0.0
    %783 = vmatpush2.msra.mxu0 0.0
    %784 = vmatprep.subr.mxu0 0.0
    %785 = vmatpush2.msra.mxu0 0.0
    %786 = vmatprep.subr.mxu0 0.0
    %787 = vmatpush2.msra.mxu0 0.0
    %788 = vmatprep.subr.mxu0 0.0
    %789 = vmatpush2.msra.mxu0 0.0
    %790 = vmatprep.subr.mxu0 0.0
    %791 = vmatpush2.msra.mxu0 0.0
    %792 = vmatprep.subr.mxu0 0.0
    %793 = vmatpush2.msra.mxu0 0.0
    %794 = vmatprep.mubr.f32.mxu0 0.0
    %795 = vmatmul.mubr.f32.gmra.mxu0 %v723
    %v796 = vpop.f32.mrf.mxu0
    %v797 = vadd.f32 0.0, %v796
    %v798 = vpop.f32.mrf.mxu0
    %v799 = vadd.f32 0.0, %v798
    %800 = vdwg.mxu0
    %v801 = vlaneseq
    %v802 = vshrl.u32 %v801, 7
    %v803 = vsub.s32 0, %v802
    %v804 = vrot.slane %v797, %v803
    %v805 = vlaneseq
    %v806 = vshrl.u32 %v805, 7
    %v807 = vsub.s32 0, %v806
    %v808 = vrot.slane %v799, %v807
    %v809 = vsub.f32 %v597, %v804
    %v810 = vsub.f32 %v598, %v808
    %v811 = vsub.f32 %v599, %v804
    %v812 = vsub.f32 %v600, %v808
    %v813 = vmul.f32 %v809, %v809
    %v814 = vmul.f32 %v810, %v810
    %v815 = vmul.f32 %v811, %v811
    %v816 = vmul.f32 %v812, %v812
    %817 = vmatprep.subr.mxu0 0.0
    %818 = vmatpush1.msra.mxu0 %v616
    %819 = vmatprep.subr.mxu0 0.0
    %820 = vmatpush1.msra.mxu0 %v615
    %821 = vmatprep.subr.mxu0 0.0
    %822 = vmatpush1.msra.mxu0 %v614
    %823 = vmatprep.subr.mxu0 0.0
    %824 = vmatpush1.msra.mxu0 %v613
    %825 = vmatprep.subr.mxu0 0.0
    %826 = vmatpush1.msra.mxu0 %v612
    %827 = vmatprep.subr.mxu0 0.0
    %828 = vmatpush1.msra.mxu0 %v611
    %829 = vmatprep.subr.mxu0 0.0
    %830 = vmatpush1.msra.mxu0 %v610
    %831 = vmatprep.subr.mxu0 0.0
    %832 = vmatpush1.msra.mxu0 %v609
    %833 = vmatprep.subr.mxu0 0.0
    %834 = vmatpush1.msra.mxu0 %v608
    %835 = vmatprep.subr.mxu0 0.0
    %836 = vmatpush1.msra.mxu0 %v607
    %837 = vmatprep.subr.mxu0 0.0
    %838 = vmatpush1.msra.mxu0 %v606
    %839 = vmatprep.subr.mxu0 0.0
    %840 = vmatpush1.msra.mxu0 %v605
    %841 = vmatprep.subr.mxu0 0.0
    %842 = vmatpush1.msra.mxu0 %v604
    %843 = vmatprep.subr.mxu0 0.0
    %844 = vmatpush1.msra.mxu0 %v603
    %845 = vmatprep.subr.mxu0 0.0
    %846 = vmatpush1.msra.mxu0 %v602
    %847 = vmatprep.subr.mxu0 0.0
    %848 = vmatpush1.msra.mxu0 %v601
    %849 = vmatprep.subr.mxu0 0.0
    %850 = vmatpush2.msra.mxu0 %v632
    %851 = vmatprep.subr.mxu0 0.0
    %852 = vmatpush2.msra.mxu0 %v631
    %853 = vmatprep.subr.mxu0 0.0
    %854 = vmatpush2.msra.mxu0 %v630
    %855 = vmatprep.subr.mxu0 0.0
    %856 = vmatpush2.msra.mxu0 %v629
    %857 = vmatprep.subr.mxu0 0.0
    %858 = vmatpush2.msra.mxu0 %v628
    %859 = vmatprep.subr.mxu0 0.0
    %860 = vmatpush2.msra.mxu0 %v627
    %861 = vmatprep.subr.mxu0 0.0
    %862 = vmatpush2.msra.mxu0 %v626
    %863 = vmatprep.subr.mxu0 0.0
    %864 = vmatpush2.msra.mxu0 %v625
    %865 = vmatprep.subr.mxu0 0.0
    %866 = vmatpush2.msra.mxu0 %v624
    %867 = vmatprep.subr.mxu0 0.0
    %868 = vmatpush2.msra.mxu0 %v623
    %869 = vmatprep.subr.mxu0 0.0
    %870 = vmatpush2.msra.mxu0 %v622
    %871 = vmatprep.subr.mxu0 0.0
    %872 = vmatpush2.msra.mxu0 %v621
    %873 = vmatprep.subr.mxu0 0.0
    %874 = vmatpush2.msra.mxu0 %v620
    %875 = vmatprep.subr.mxu0 0.0
    %876 = vmatpush2.msra.mxu0 %v619
    %877 = vmatprep.subr.mxu0 0.0
    %878 = vmatpush2.msra.mxu0 %v618
    %879 = vmatprep.subr.mxu0 0.0
    %880 = vmatpush2.msra.mxu0 %v617
    %881 = vmatprep.mubr.f32.mxu0 %v814
    %882 = vmatmul.mubr.f32.gmra.mxu0 %v813
    %v883 = vpop.f32.mrf.mxu0
    %v884 = vadd.f32 0.0, %v883
    %v885 = vpop.f32.mrf.mxu0
    %886 = vmatprep.mubr.f32.mxu0 %v816
    %887 = vmatmul.mubr.f32.gmra.mxu0 %v815
    %v888 = vpop.f32.mrf.mxu0
    %v889 = vadd.f32 0.0, %v888
    %v890 = vpop.f32.mrf.mxu0
    %891 = vdwg.mxu0
    %v892 = vsel %vm708, %v884, 0.0
    %v893 = vsel %vm708, %v889, 0.0
    %v894 = vadd.f32 %v892, %v893
    %v895 = vrot.slane %v894, 4
    %v896 = vadd.f32 %v894, %v895
    %v897 = vrot.slane %v896, 2
    %v898 = vadd.f32 %v896, %v897
    %v899 = vrot.slane %v898, 1
    %v900 = vadd.f32 %v898, %v899
    %v901 = vmul.f32 %v900, 0.0009765625
    %v902 = vld [vmem:[%s5] sm:$0x1]
    %v903 = vadd.f32 %v901, 1e-05
    %v904 = vrsqrt.pop %v903
    %v905 = vmul.f32 %v902, %v904
    %v907 = vsel %vm708, %v905, 0
    %909 = vmatprep.subr.mxu0 0.0
    %910 = vmatpush1.msra.mxu0 0.0
    %911 = vmatprep.subr.mxu0 0.0
    %912 = vmatpush1.msra.mxu0 0.0
    %913 = vmatprep.subr.mxu0 0.0
    %914 = vmatpush1.msra.mxu0 0.0
    %915 = vmatprep.subr.mxu0 0.0
    %916 = vmatpush1.msra.mxu0 0.0
    %917 = vmatprep.subr.mxu0 0.0
    %918 = vmatpush1.msra.mxu0 0.0
    %919 = vmatprep.subr.mxu0 0.0
    %920 = vmatpush1.msra.mxu0 0.0
    %921 = vmatprep.subr.mxu0 0.0
    %922 = vmatpush1.msra.mxu0 0.0
    %923 = vmatprep.subr.mxu0 0.0
    %924 = vmatpush1.msra.mxu0 0.0
    %925 = vmatprep.subr.mxu0 0.0
    %926 = vmatpush1.msra.mxu0 0.0
    %927 = vmatprep.subr.mxu0 0.0
    %928 = vmatpush1.msra.mxu0 0.0
    %929 = vmatprep.subr.mxu0 0.0
    %930 = vmatpush1.msra.mxu0 0.0
    %931 = vmatprep.subr.mxu0 0.0
    %932 = vmatpush1.msra.mxu0 0.0
    %933 = vmatprep.subr.mxu0 0.0
    %934 = vmatpush1.msra.mxu0 0.0
    %935 = vmatprep.subr.mxu0 0.0
    %936 = vmatpush1.msra.mxu0 0.0
    %937 = vmatprep.subr.mxu0 0.0
    %938 = vmatpush1.msra.mxu0 0.0
    %939 = vmatprep.subr.mxu0 %v728
    %940 = vmatpush1.msra.mxu0 %v726
    %941 = vmatprep.subr.mxu0 0.0
    %942 = vmatpush2.msra.mxu0 0.0
    %943 = vmatprep.subr.mxu0 0.0
    %944 = vmatpush2.msra.mxu0 0.0
    %945 = vmatprep.subr.mxu0 0.0
    %946 = vmatpush2.msra.mxu0 0.0
    %947 = vmatprep.subr.mxu0 0.0
    %948 = vmatpush2.msra.mxu0 0.0
    %949 = vmatprep.subr.mxu0 0.0
    %950 = vmatpush2.msra.mxu0 0.0
    %951 = vmatprep.subr.mxu0 0.0
    %952 = vmatpush2.msra.mxu0 0.0
    %953 = vmatprep.subr.mxu0 0.0
    %954 = vmatpush2.msra.mxu0 0.0
    %955 = vmatprep.subr.mxu0 0.0
    %956 = vmatpush2.msra.mxu0 0.0
    %957 = vmatprep.subr.mxu0 0.0
    %958 = vmatpush2.msra.mxu0 0.0
    %959 = vmatprep.subr.mxu0 0.0
    %960 = vmatpush2.msra.mxu0 0.0
    %961 = vmatprep.subr.mxu0 0.0
    %962 = vmatpush2.msra.mxu0 0.0
    %963 = vmatprep.subr.mxu0 0.0
    %964 = vmatpush2.msra.mxu0 0.0
    %965 = vmatprep.subr.mxu0 0.0
    %966 = vmatpush2.msra.mxu0 0.0
    %967 = vmatprep.subr.mxu0 0.0
    %968 = vmatpush2.msra.mxu0 0.0
    %969 = vmatprep.subr.mxu0 0.0
    %970 = vmatpush2.msra.mxu0 0.0
    %971 = vmatprep.subr.mxu0 0.0
    %972 = vmatpush2.msra.mxu0 0.0
    %973 = vmatprep.mubr.f32.mxu0 0.0
    %974 = vmatmul.mubr.f32.gmra.mxu0 %v907
    %v975 = vpop.f32.mrf.mxu0
    %v976 = vadd.f32 0.0, %v975
    %v977 = vpop.f32.mrf.mxu0
    %v978 = vadd.f32 0.0, %v977
    %979 = vdwg.mxu0
    %v980 = vld [vmem:[%s6] sm:$0x1]
    %v982 = vsel %vm708, %v980, 0
    %984 = vmatprep.subr.mxu0 0.0
    %985 = vmatpush1.msra.mxu0 0.0
    %986 = vmatprep.subr.mxu0 0.0
    %987 = vmatpush1.msra.mxu0 0.0
    %988 = vmatprep.subr.mxu0 0.0
    %989 = vmatpush1.msra.mxu0 0.0
    %990 = vmatprep.subr.mxu0 0.0
    %991 = vmatpush1.msra.mxu0 0.0
    %992 = vmatprep.subr.mxu0 0.0
    %993 = vmatpush1.msra.mxu0 0.0
    %994 = vmatprep.subr.mxu0 0.0
    %995 = vmatpush1.msra.mxu0 0.0
    %996 = vmatprep.subr.mxu0 0.0
    %997 = vmatpush1.msra.mxu0 0.0
    %998 = vmatprep.subr.mxu0 0.0
    %999 = vmatpush1.msra.mxu0 0.0
    %1000 = vmatprep.subr.mxu0 0.0
    %1001 = vmatpush1.msra.mxu0 0.0
    %1002 = vmatprep.subr.mxu0 0.0
    %1003 = vmatpush1.msra.mxu0 0.0
    %1004 = vmatprep.subr.mxu0 0.0
    %1005 = vmatpush1.msra.mxu0 0.0
    %1006 = vmatprep.subr.mxu0 0.0
    %1007 = vmatpush1.msra.mxu0 0.0
    %1008 = vmatprep.subr.mxu0 0.0
    %1009 = vmatpush1.msra.mxu0 0.0
    %1010 = vmatprep.subr.mxu0 0.0
    %1011 = vmatpush1.msra.mxu0 0.0
    %1012 = vmatprep.subr.mxu0 0.0
    %1013 = vmatpush1.msra.mxu0 0.0
    %1014 = vmatprep.subr.mxu0 %v728
    %1015 = vmatpush1.msra.mxu0 %v726
    %1016 = vmatprep.subr.mxu0 0.0
    %1017 = vmatpush2.msra.mxu0 0.0
    %1018 = vmatprep.subr.mxu0 0.0
    %1019 = vmatpush2.msra.mxu0 0.0
    %1020 = vmatprep.subr.mxu0 0.0
    %1021 = vmatpush2.msra.mxu0 0.0
    %1022 = vmatprep.subr.mxu0 0.0
    %1023 = vmatpush2.msra.mxu0 0.0
    %1024 = vmatprep.subr.mxu0 0.0
    %1025 = vmatpush2.msra.mxu0 0.0
    %1026 = vmatprep.subr.mxu0 0.0
    %1027 = vmatpush2.msra.mxu0 0.0
    %1028 = vmatprep.subr.mxu0 0.0
    %1029 = vmatpush2.msra.mxu0 0.0
    %1030 = vmatprep.subr.mxu0 0.0
    %1031 = vmatpush2.msra.mxu0 0.0
    %1032 = vmatprep.subr.mxu0 0.0
    %1033 = vmatpush2.msra.mxu0 0.0
    %1034 = vmatprep.subr.mxu0 0.0
    %1035 = vmatpush2.msra.mxu0 0.0
    %1036 = vmatprep.subr.mxu0 0.0
    %1037 = vmatpush2.msra.mxu0 0.0
    %1038 = vmatprep.subr.mxu0 0.0
    %1039 = vmatpush2.msra.mxu0 0.0
    %1040 = vmatprep.subr.mxu0 0.0
    %1041 = vmatpush2.msra.mxu0 0.0
    %1042 = vmatprep.subr.mxu0 0.0
    %1043 = vmatpush2.msra.mxu0 0.0
    %1044 = vmatprep.subr.mxu0 0.0
    %1045 = vmatpush2.msra.mxu0 0.0
    %1046 = vmatprep.subr.mxu0 0.0
    %1047 = vmatpush2.msra.mxu0 0.0
    %1048 = vmatprep.mubr.f32.mxu0 0.0
    %1049 = vmatmul.mubr.f32.gmra.mxu0 %v982
    %v1050 = vpop.f32.mrf.mxu0
    %v1051 = vadd.f32 0.0, %v1050
    %v1052 = vpop.f32.mrf.mxu0
    %v1053 = vadd.f32 0.0, %v1052
    %1054 = vdwg.mxu0
    %v1055 = vlaneseq
    %v1056 = vshrl.u32 %v1055, 7
    %v1057 = vsub.s32 0, %v1056
    %v1058 = vrot.slane %v976, %v1057
    %v1059 = vlaneseq
    %v1060 = vshrl.u32 %v1059, 7
    %v1061 = vsub.s32 0, %v1060
    %v1062 = vrot.slane %v978, %v1061
    %v1063 = vmul.f32 %v809, %v1058
    %v1064 = vmul.f32 %v810, %v1062
    %v1065 = vmul.f32 %v811, %v1058
    %v1066 = vmul.f32 %v812, %v1062
    %v1067 = vlaneseq
    %v1068 = vshrl.u32 %v1067, 7
    %v1069 = vsub.s32 0, %v1068
    %v1070 = vrot.slane %v1051, %v1069
    %v1071 = vlaneseq
    %v1072 = vshrl.u32 %v1071, 7
    %v1073 = vsub.s32 0, %v1072
    %v1074 = vrot.slane %v1053, %v1073
    %v1075 = vadd.f32 %v1063, %v1070
    %v1076 = vadd.f32 %v1064, %v1074
    %v1077 = vadd.f32 %v1065, %v1070
    %v1078 = vadd.f32 %v1066, %v1074
    %v1079 = vld [vmem:[#allocation7] sm:$0xff]
    %v1080 = vld [vmem:[#allocation7 + $0x8] sm:$0xff]
    %v1081 = vld [vmem:[#allocation7 + $0x10] sm:$0xff]
    %v1082 = vld [vmem:[#allocation7 + $0x18] sm:$0xff]
    %v1083 = vld [vmem:[#allocation7 + $0x20] sm:$0xff]
    %v1084 = vld [vmem:[#allocation7 + $0x28] sm:$0xff]
    %v1085 = vld [vmem:[#allocation7 + $0x30] sm:$0xff]
    %v1086 = vld [vmem:[#allocation7 + $0x38] sm:$0xff]
    %v1087 = vld [vmem:[#allocation7 + $0x40] sm:$0xff]
    %v1088 = vld [vmem:[#allocation7 + $0x48] sm:$0xff]
    %v1089 = vld [vmem:[#allocation7 + $0x50] sm:$0xff]
    %v1090 = vld [vmem:[#allocation7 + $0x58] sm:$0xff]
    %v1091 = vld [vmem:[#allocation7 + $0x60] sm:$0xff]
    %v1092 = vld [vmem:[#allocation7 + $0x68] sm:$0xff]
    %v1093 = vld [vmem:[#allocation7 + $0x70] sm:$0xff]
    %v1094 = vld [vmem:[#allocation7 + $0x78] sm:$0xff]
    %v1095 = vld [vmem:[#allocation7 + $0x80] sm:$0xff]
    %v1096 = vld [vmem:[#allocation7 + $0x88] sm:$0xff]
    %v1097 = vld [vmem:[#allocation7 + $0x90] sm:$0xff]
    %v1098 = vld [vmem:[#allocation7 + $0x98] sm:$0xff]
    %v1099 = vld [vmem:[#allocation7 + $0xa0] sm:$0xff]
    %v1100 = vld [vmem:[#allocation7 + $0xa8] sm:$0xff]
    %v1101 = vld [vmem:[#allocation7 + $0xb0] sm:$0xff]
    %v1102 = vld [vmem:[#allocation7 + $0xb8] sm:$0xff]
    %v1103 = vld [vmem:[#allocation7 + $0xc0] sm:$0xff]
    %v1104 = vld [vmem:[#allocation7 + $0xc8] sm:$0xff]
    %v1105 = vld [vmem:[#allocation7 + $0xd0] sm:$0xff]
    %v1106 = vld [vmem:[#allocation7 + $0xd8] sm:$0xff]
    %v1107 = vld [vmem:[#allocation7 + $0xe0] sm:$0xff]
    %v1108 = vld [vmem:[#allocation7 + $0xe8] sm:$0xff]
    %v1109 = vld [vmem:[#allocation7 + $0xf0] sm:$0xff]
    %v1110 = vld [vmem:[#allocation7 + $0xf8] sm:$0xff]
    %v1111 = vld [vmem:[#allocation7 + $0x100] sm:$0xff]
    %v1112 = vld [vmem:[#allocation7 + $0x108] sm:$0xff]
    %v1113 = vld [vmem:[#allocation7 + $0x110] sm:$0xff]
    %v1114 = vld [vmem:[#allocation7 + $0x118] sm:$0xff]
    %v1115 = vld [vmem:[#allocation7 + $0x120] sm:$0xff]
    %v1116 = vld [vmem:[#allocation7 + $0x128] sm:$0xff]
    %v1117 = vld [vmem:[#allocation7 + $0x130] sm:$0xff]
    %v1118 = vld [vmem:[#allocation7 + $0x138] sm:$0xff]
    %v1119 = vld [vmem:[#allocation7 + $0x140] sm:$0xff]
    %v1120 = vld [vmem:[#allocation7 + $0x148] sm:$0xff]
    %v1121 = vld [vmem:[#allocation7 + $0x150] sm:$0xff]
    %v1122 = vld [vmem:[#allocation7 + $0x158] sm:$0xff]
    %v1123 = vld [vmem:[#allocation7 + $0x160] sm:$0xff]
    %v1124 = vld [vmem:[#allocation7 + $0x168] sm:$0xff]
    %v1125 = vld [vmem:[#allocation7 + $0x170] sm:$0xff]
    %v1126 = vld [vmem:[#allocation7 + $0x178] sm:$0xff]
    %v1127 = vld [vmem:[#allocation7 + $0x180] sm:$0xff]
    %v1128 = vld [vmem:[#allocation7 + $0x188] sm:$0xff]
    %v1129 = vld [vmem:[#allocation7 + $0x190] sm:$0xff]
    %v1130 = vld [vmem:[#allocation7 + $0x198] sm:$0xff]
    %v1131 = vld [vmem:[#allocation7 + $0x1a0] sm:$0xff]
    %v1132 = vld [vmem:[#allocation7 + $0x1a8] sm:$0xff]
    %v1133 = vld [vmem:[#allocation7 + $0x1b0] sm:$0xff]
    %v1134 = vld [vmem:[#allocation7 + $0x1b8] sm:$0xff]
    %v1135 = vld [vmem:[#allocation7 + $0x1c0] sm:$0xff]
    %v1136 = vld [vmem:[#allocation7 + $0x1c8] sm:$0xff]
    %v1137 = vld [vmem:[#allocation7 + $0x1d0] sm:$0xff]
    %v1138 = vld [vmem:[#allocation7 + $0x1d8] sm:$0xff]
    %v1139 = vld [vmem:[#allocation7 + $0x1e0] sm:$0xff]
    %v1140 = vld [vmem:[#allocation7 + $0x1e8] sm:$0xff]
    %v1141 = vld [vmem:[#allocation7 + $0x1f0] sm:$0xff]
    %v1142 = vld [vmem:[#allocation7 + $0x1f8] sm:$0xff]
    %1143 = vmatprep.subr.mxu0 %v1110
    %1144 = vmatpush1.msra.mxu0 %v1109
    %1145 = vmatprep.subr.mxu0 %v1108
    %1146 = vmatpush1.msra.mxu0 %v1107
    %1147 = vmatprep.subr.mxu0 %v1106
    %1148 = vmatpush1.msra.mxu0 %v1105
    %1149 = vmatprep.subr.mxu0 %v1104
    %1150 = vmatpush1.msra.mxu0 %v1103
    %1151 = vmatprep.subr.mxu0 %v1102
    %1152 = vmatpush1.msra.mxu0 %v1101
    %1153 = vmatprep.subr.mxu0 %v1100
    %1154 = vmatpush1.msra.mxu0 %v1099
    %1155 = vmatprep.subr.mxu0 %v1098
    %1156 = vmatpush1.msra.mxu0 %v1097
    %1157 = vmatprep.subr.mxu0 %v1096
    %1158 = vmatpush1.msra.mxu0 %v1095
    %1159 = vmatprep.subr.mxu0 %v1094
    %1160 = vmatpush1.msra.mxu0 %v1093
    %1161 = vmatprep.subr.mxu0 %v1092
    %1162 = vmatpush1.msra.mxu0 %v1091
    %1163 = vmatprep.subr.mxu0 %v1090
    %1164 = vmatpush1.msra.mxu0 %v1089
    %1165 = vmatprep.subr.mxu0 %v1088
    %1166 = vmatpush1.msra.mxu0 %v1087
    %1167 = vmatprep.subr.mxu0 %v1086
    %1168 = vmatpush1.msra.mxu0 %v1085
    %1169 = vmatprep.subr.mxu0 %v1084
    %1170 = vmatpush1.msra.mxu0 %v1083
    %1171 = vmatprep.subr.mxu0 %v1082
    %1172 = vmatpush1.msra.mxu0 %v1081
    %1173 = vmatprep.subr.mxu0 %v1080
    %1174 = vmatpush1.msra.mxu0 %v1079
    %1175 = vmatprep.subr.mxu0 %v1142
    %1176 = vmatpush2.msra.mxu0 %v1141
    %1177 = vmatprep.subr.mxu0 %v1140
    %1178 = vmatpush2.msra.mxu0 %v1139
    %1179 = vmatprep.subr.mxu0 %v1138
    %1180 = vmatpush2.msra.mxu0 %v1137
    %1181 = vmatprep.subr.mxu0 %v1136
    %1182 = vmatpush2.msra.mxu0 %v1135
    %1183 = vmatprep.subr.mxu0 %v1134
    %1184 = vmatpush2.msra.mxu0 %v1133
    %1185 = vmatprep.subr.mxu0 %v1132
    %1186 = vmatpush2.msra.mxu0 %v1131
    %1187 = vmatprep.subr.mxu0 %v1130
    %1188 = vmatpush2.msra.mxu0 %v1129
    %1189 = vmatprep.subr.mxu0 %v1128
    %1190 = vmatpush2.msra.mxu0 %v1127
    %1191 = vmatprep.subr.mxu0 %v1126
    %1192 = vmatpush2.msra.mxu0 %v1125
    %1193 = vmatprep.subr.mxu0 %v1124
    %1194 = vmatpush2.msra.mxu0 %v1123
    %1195 = vmatprep.subr.mxu0 %v1122
    %1196 = vmatpush2.msra.mxu0 %v1121
    %1197 = vmatprep.subr.mxu0 %v1120
    %1198 = vmatpush2.msra.mxu0 %v1119
    %1199 = vmatprep.subr.mxu0 %v1118
    %1200 = vmatpush2.msra.mxu0 %v1117
    %1201 = vmatprep.subr.mxu0 %v1116
    %1202 = vmatpush2.msra.mxu0 %v1115
    %1203 = vmatprep.subr.mxu0 %v1114
    %1204 = vmatpush2.msra.mxu0 %v1113
    %1205 = vmatprep.subr.mxu0 %v1112
    %1206 = vmatpush2.msra.mxu0 %v1111
    %1207 = vmatprep.mubr.f32.mxu0 %v1076
    %1208 = vmatmul.mubr.f32.gmra.mxu0 %v1075
    %v1209 = vpop.f32.mrf.mxu0
    %v1210 = vadd.f32 0.0, %v1209
    %v1211 = vpop.f32.mrf.mxu0
    %v1212 = vadd.f32 0.0, %v1211
    %1213 = vmatprep.mubr.f32.mxu0 %v1078
    %1214 = vmatmul.mubr.f32.gmra.mxu0 %v1077
    %v1215 = vpop.f32.mrf.mxu0
    %v1216 = vadd.f32 0.0, %v1215
    %v1217 = vpop.f32.mrf.mxu0
    %v1218 = vadd.f32 0.0, %v1217
    %1219 = vdwg.mxu0
    %v1220 = vld [vmem:[%s10] sm:$0xff]
    %v1221 = vld [vmem:[%s10 + $0x8] sm:$0xff]
    %v1222 = vmul.f32 %v1075, %v1210
    %v1223 = vmul.f32 %v1076, %v1212
    %v1224 = vmul.f32 %v1077, %v1216
    %v1225 = vmul.f32 %v1078, %v1218
    %vm1226 = vcmask 130048
    %v1228 = vsel %vm1226, %v1220, 0
    %v1231 = vsel %vm1226, %v1221, 0
    %1233 = vmatprep.subr.mxu0 0.0
    %1234 = vmatpush1.msra.mxu0 0.0
    %1235 = vmatprep.subr.mxu0 0.0
    %1236 = vmatpush1.msra.mxu0 0.0
    %1237 = vmatprep.subr.mxu0 0.0
    %1238 = vmatpush1.msra.mxu0 0.0
    %1239 = vmatprep.subr.mxu0 0.0
    %1240 = vmatpush1.msra.mxu0 0.0
    %1241 = vmatprep.subr.mxu0 0.0
    %1242 = vmatpush1.msra.mxu0 0.0
    %1243 = vmatprep.subr.mxu0 0.0
    %1244 = vmatpush1.msra.mxu0 0.0
    %1245 = vmatprep.subr.mxu0 0.0
    %1246 = vmatpush1.msra.mxu0 0.0
    %1247 = vmatprep.subr.mxu0 0.0
    %1248 = vmatpush1.msra.mxu0 0.0
    %1249 = vmatprep.subr.mxu0 0.0
    %1250 = vmatpush1.msra.mxu0 0.0
    %1251 = vmatprep.subr.mxu0 0.0
    %1252 = vmatpush1.msra.mxu0 0.0
    %1253 = vmatprep.subr.mxu0 0.0
    %1254 = vmatpush1.msra.mxu0 0.0
    %1255 = vmatprep.subr.mxu0 0.0
    %1256 = vmatpush1.msra.mxu0 0.0
    %1257 = vmatprep.subr.mxu0 0.0
    %1258 = vmatpush1.msra.mxu0 0.0
    %1259 = vmatprep.subr.mxu0 0.0
    %1260 = vmatpush1.msra.mxu0 0.0
    %1261 = vmatprep.subr.mxu0 %v1225
    %1262 = vmatpush1.msra.mxu0 %v1224
    %1263 = vmatprep.subr.mxu0 %v1223
    %1264 = vmatpush1.msra.mxu0 %v1222
    %1265 = vmatprep.subr.mxu0 0.0
    %1266 = vmatpush2.msra.mxu0 0.0
    %1267 = vmatprep.subr.mxu0 0.0
    %1268 = vmatpush2.msra.mxu0 0.0
    %1269 = vmatprep.subr.mxu0 0.0
    %1270 = vmatpush2.msra.mxu0 0.0
    %1271 = vmatprep.subr.mxu0 0.0
    %1272 = vmatpush2.msra.mxu0 0.0
    %1273 = vmatprep.subr.mxu0 0.0
    %1274 = vmatpush2.msra.mxu0 0.0
    %1275 = vmatprep.subr.mxu0 0.0
    %1276 = vmatpush2.msra.mxu0 0.0
    %1277 = vmatprep.subr.mxu0 0.0
    %1278 = vmatpush2.msra.mxu0 0.0
    %1279 = vmatprep.subr.mxu0 0.0
    %1280 = vmatpush2.msra.mxu0 0.0
    %1281 = vmatprep.subr.mxu0 0.0
    %1282 = vmatpush2.msra.mxu0 0.0
    %1283 = vmatprep.subr.mxu0 0.0
    %1284 = vmatpush2.msra.mxu0 0.0
    %1285 = vmatprep.subr.mxu0 0.0
    %1286 = vmatpush2.msra.mxu0 0.0
    %1287 = vmatprep.subr.mxu0 0.0
    %1288 = vmatpush2.msra.mxu0 0.0
    %1289 = vmatprep.subr.mxu0 0.0
    %1290 = vmatpush2.msra.mxu0 0.0
    %1291 = vmatprep.subr.mxu0 0.0
    %1292 = vmatpush2.msra.mxu0 0.0
    %1293 = vmatprep.subr.mxu0 0.0
    %1294 = vmatpush2.msra.mxu0 0.0
    %1295 = vmatprep.subr.mxu0 0.0
    %1296 = vmatpush2.msra.mxu0 0.0
    %1297 = vmatprep.mubr.f32.mxu0 0.0
    %1298 = vmatmul.mubr.f32.gmra.mxu0 %v1228
    %v1299 = vpop.f32.mrf.mxu0
    %v1300 = vadd.f32 0.0, %v1299
    %v1301 = vpop.f32.mrf.mxu0
    %v1302 = vadd.f32 0.0, %v1301
    %1303 = vmatprep.mubr.f32.mxu0 0.0
    %1304 = vmatmul.mubr.f32.gmra.mxu0 %v1231
    %v1305 = vpop.f32.mrf.mxu0
    %v1306 = vadd.f32 0.0, %v1305
    %v1307 = vpop.f32.mrf.mxu0
    %v1308 = vadd.f32 0.0, %v1307
    %1309 = vdwg.mxu0
    %v1310 = vmul.f32 %v1210, %v1210
    %v1311 = vmul.f32 %v1212, %v1212
    %v1312 = vmul.f32 %v1216, %v1216
    %v1313 = vmul.f32 %v1218, %v1218
    %1314 = vmatprep.subr.mxu0 0.0
    %1315 = vmatpush1.msra.mxu0 0.0
    %1316 = vmatprep.subr.mxu0 0.0
    %1317 = vmatpush1.msra.mxu0 0.0
    %1318 = vmatprep.subr.mxu0 0.0
    %1319 = vmatpush1.msra.mxu0 0.0
    %1320 = vmatprep.subr.mxu0 0.0
    %1321 = vmatpush1.msra.mxu0 0.0
    %1322 = vmatprep.subr.mxu0 0.0
    %1323 = vmatpush1.msra.mxu0 0.0
    %1324 = vmatprep.subr.mxu0 0.0
    %1325 = vmatpush1.msra.mxu0 0.0
    %1326 = vmatprep.subr.mxu0 0.0
    %1327 = vmatpush1.msra.mxu0 0.0
    %1328 = vmatprep.subr.mxu0 0.0
    %1329 = vmatpush1.msra.mxu0 0.0
    %1330 = vmatprep.subr.mxu0 0.0
    %1331 = vmatpush1.msra.mxu0 0.0
    %1332 = vmatprep.subr.mxu0 0.0
    %1333 = vmatpush1.msra.mxu0 0.0
    %1334 = vmatprep.subr.mxu0 0.0
    %1335 = vmatpush1.msra.mxu0 0.0
    %1336 = vmatprep.subr.mxu0 0.0
    %1337 = vmatpush1.msra.mxu0 0.0
    %1338 = vmatprep.subr.mxu0 0.0
    %1339 = vmatpush1.msra.mxu0 0.0
    %1340 = vmatprep.subr.mxu0 0.0
    %1341 = vmatpush1.msra.mxu0 0.0
    %1342 = vmatprep.subr.mxu0 %v1313
    %1343 = vmatpush1.msra.mxu0 %v1312
    %1344 = vmatprep.subr.mxu0 %v1311
    %1345 = vmatpush1.msra.mxu0 %v1310
    %1346 = vmatprep.subr.mxu0 0.0
    %1347 = vmatpush2.msra.mxu0 0.0
    %1348 = vmatprep.subr.mxu0 0.0
    %1349 = vmatpush2.msra.mxu0 0.0
    %1350 = vmatprep.subr.mxu0 0.0
    %1351 = vmatpush2.msra.mxu0 0.0
    %1352 = vmatprep.subr.mxu0 0.0
    %1353 = vmatpush2.msra.mxu0 0.0
    %1354 = vmatprep.subr.mxu0 0.0
    %1355 = vmatpush2.msra.mxu0 0.0
    %1356 = vmatprep.subr.mxu0 0.0
    %1357 = vmatpush2.msra.mxu0 0.0
    %1358 = vmatprep.subr.mxu0 0.0
    %1359 = vmatpush2.msra.mxu0 0.0
    %1360 = vmatprep.subr.mxu0 0.0
    %1361 = vmatpush2.msra.mxu0 0.0
    %1362 = vmatprep.subr.mxu0 0.0
    %1363 = vmatpush2.msra.mxu0 0.0
    %1364 = vmatprep.subr.mxu0 0.0
    %1365 = vmatpush2.msra.mxu0 0.0
    %1366 = vmatprep.subr.mxu0 0.0
    %1367 = vmatpush2.msra.mxu0 0.0
    %1368 = vmatprep.subr.mxu0 0.0
    %1369 = vmatpush2.msra.mxu0 0.0
    %1370 = vmatprep.subr.mxu0 0.0
    %1371 = vmatpush2.msra.mxu0 0.0
    %1372 = vmatprep.subr.mxu0 0.0
    %1373 = vmatpush2.msra.mxu0 0.0
    %1374 = vmatprep.subr.mxu0 0.0
    %1375 = vmatpush2.msra.mxu0 0.0
    %1376 = vmatprep.subr.mxu0 0.0
    %1377 = vmatpush2.msra.mxu0 0.0
    %1378 = vmatprep.mubr.f32.mxu0 0.0
    %1379 = vmatmul.mubr.f32.gmra.mxu0 %v1228
    %v1380 = vpop.f32.mrf.mxu0
    %v1381 = vadd.f32 1e-06, %v1380
    %v1382 = vpop.f32.mrf.mxu0
    %v1383 = vadd.f32 1e-06, %v1382
    %1384 = vmatprep.mubr.f32.mxu0 0.0
    %1385 = vmatmul.mubr.f32.gmra.mxu0 %v1231
    %v1386 = vpop.f32.mrf.mxu0
    %v1387 = vadd.f32 1e-06, %v1386
    %v1388 = vpop.f32.mrf.mxu0
    %v1389 = vadd.f32 1e-06, %v1388
    %1390 = vdwg.mxu0
    %v1391 = vrcp.pop %v1381
    %v1392 = vmul.f32 %v1300, %v1391
    %v1393 = vrcp.pop %v1383
    %v1394 = vmul.f32 %v1302, %v1393
    %v1395 = vrcp.pop %v1387
    %v1396 = vmul.f32 %v1306, %v1395
    %v1397 = vrcp.pop %v1389
    %v1398 = vmul.f32 %v1308, %v1397
    %v1399 = vmul.f32 %v1392, %v1210
    %v1400 = vmul.f32 %v1394, %v1212
    %v1401 = vmul.f32 %v1396, %v1216
    %v1402 = vmul.f32 %v1398, %v1218
    %v1403 = vsub.f32 %v1075, %v1399
    %v1404 = vsub.f32 %v1076, %v1400
    %v1405 = vsub.f32 %v1077, %v1401
    %v1406 = vsub.f32 %v1078, %v1402
    %v1407 = vmul.f32 %v1075, 0.2
    %v1408 = vmul.f32 %v1076, 0.2
    %v1409 = vmul.f32 %v1077, 0.2
    %v1410 = vmul.f32 %v1078, 0.2
    %vm1411 = vcmp.ge.f32.partialorder %v1300, 0.0
    %vm1412 = vcmp.ge.f32.partialorder %v1302, 0.0
    %vm1413 = vcmp.ge.f32.partialorder %v1306, 0.0
    %vm1414 = vcmp.ge.f32.partialorder %v1308, 0.0
    %v1415 = vsel %vm1411, %v1075, %v1403
    %v1416 = vsel %vm1412, %v1076, %v1404
    %v1417 = vsel %vm1413, %v1077, %v1405
    %v1418 = vsel %vm1414, %v1078, %v1406
    %v1419 = vmul.f32 %v1415, 0.8
    %v1420 = vmul.f32 %v1416, 0.8
    %v1421 = vmul.f32 %v1417, 0.8
    %v1422 = vmul.f32 %v1418, 0.8
    %v1423 = vadd.f32 %v1407, %v1419
    %v1424 = vadd.f32 %v1408, %v1420
    %v1425 = vadd.f32 %v1409, %v1421
    %v1426 = vadd.f32 %v1410, %v1422
    %v1431 = vrot.slane %v1423, 7
    %v1432 = vrot.slane %v1424, 7
    %v1433 = vrot.slane %v1425, 7
    %v1434 = vrot.slane %v1426, 7
    %vm1439 = vcmask 1040384
    %v1440 = vsel %vm1439, 0.0, %v1431
    %v1441 = vsel %vm1439, 0.0, %v1432
    %v1442 = vsel %vm1439, 0.0, %v1433
    %v1443 = vsel %vm1439, 0.0, %v1434
    %v1444 = vsel %vm1439, %v1431, 0.0
    %v1445 = vsel %vm1439, %v1432, 0.0
    %v1446 = vsel %vm1439, %v1433, 0.0
    %v1447 = vsel %vm1439, %v1434, 0.0
    %v1448 = vld [vmem:[%s4] sm:$0x3]
    %v1449 = vld [vmem:[#allocation5] sm:$0xff]
    %v1450 = vld [vmem:[#allocation5 + $0x8] sm:$0xff]
    %v1451 = vld [vmem:[#allocation5 + $0x10] sm:$0xff]
    %v1452 = vld [vmem:[#allocation5 + $0x18] sm:$0xff]
    %v1453 = vld [vmem:[#allocation5 + $0x20] sm:$0xff]
    %v1454 = vld [vmem:[#allocation5 + $0x28] sm:$0xff]
    %v1455 = vld [vmem:[#allocation5 + $0x30] sm:$0xff]
    %v1456 = vld [vmem:[#allocation5 + $0x38] sm:$0xff]
    %v1457 = vld [vmem:[#allocation5 + $0x40] sm:$0xff]
    %v1458 = vld [vmem:[#allocation5 + $0x48] sm:$0xff]
    %v1459 = vld [vmem:[#allocation5 + $0x50] sm:$0xff]
    %v1460 = vld [vmem:[#allocation5 + $0x58] sm:$0xff]
    %v1461 = vld [vmem:[#allocation5 + $0x60] sm:$0xff]
    %v1462 = vld [vmem:[#allocation5 + $0x68] sm:$0xff]
    %v1463 = vld [vmem:[#allocation5 + $0x70] sm:$0xff]
    %v1464 = vld [vmem:[#allocation5 + $0x78] sm:$0xff]
    %v1465 = vld [vmem:[#allocation5 + $0x80] sm:$0xff]
    %v1466 = vld [vmem:[#allocation5 + $0x88] sm:$0xff]
    %v1467 = vld [vmem:[#allocation5 + $0x90] sm:$0xff]
    %v1468 = vld [vmem:[#allocation5 + $0x98] sm:$0xff]
    %v1469 = vld [vmem:[#allocation5 + $0xa0] sm:$0xff]
    %v1470 = vld [vmem:[#allocation5 + $0xa8] sm:$0xff]
    %v1471 = vld [vmem:[#allocation5 + $0xb0] sm:$0xff]
    %v1472 = vld [vmem:[#allocation5 + $0xb8] sm:$0xff]
    %v1473 = vld [vmem:[#allocation5 + $0xc0] sm:$0xff]
    %v1474 = vld [vmem:[#allocation5 + $0xc8] sm:$0xff]
    %v1475 = vld [vmem:[#allocation5 + $0xd0] sm:$0xff]
    %v1476 = vld [vmem:[#allocation5 + $0xd8] sm:$0xff]
    %v1477 = vld [vmem:[#allocation5 + $0xe0] sm:$0xff]
    %v1478 = vld [vmem:[#allocation5 + $0xe8] sm:$0xff]
    %v1479 = vld [vmem:[#allocation5 + $0xf0] sm:$0xff]
    %v1480 = vld [vmem:[#allocation5 + $0xf8] sm:$0xff]
    %v1481 = vld [vmem:[#allocation5 + $0x100] sm:$0xff]
    %v1482 = vld [vmem:[#allocation5 + $0x108] sm:$0xff]
    %v1483 = vld [vmem:[#allocation5 + $0x110] sm:$0xff]
    %v1484 = vld [vmem:[#allocation5 + $0x118] sm:$0xff]
    %v1485 = vld [vmem:[#allocation5 + $0x120] sm:$0xff]
    %v1486 = vld [vmem:[#allocation5 + $0x128] sm:$0xff]
    %v1487 = vld [vmem:[#allocation5 + $0x130] sm:$0xff]
    %v1488 = vld [vmem:[#allocation5 + $0x138] sm:$0xff]
    %v1489 = vld [vmem:[#allocation5 + $0x140] sm:$0xff]
    %v1490 = vld [vmem:[#allocation5 + $0x148] sm:$0xff]
    %v1491 = vld [vmem:[#allocation5 + $0x150] sm:$0xff]
    %v1492 = vld [vmem:[#allocation5 + $0x158] sm:$0xff]
    %v1493 = vld [vmem:[#allocation5 + $0x160] sm:$0xff]
    %v1494 = vld [vmem:[#allocation5 + $0x168] sm:$0xff]
    %v1495 = vld [vmem:[#allocation5 + $0x170] sm:$0xff]
    %v1496 = vld [vmem:[#allocation5 + $0x178] sm:$0xff]
    %v1497 = vld [vmem:[#allocation5 + $0x180] sm:$0xff]
    %v1498 = vld [vmem:[#allocation5 + $0x188] sm:$0xff]
    %v1499 = vld [vmem:[#allocation5 + $0x190] sm:$0xff]
    %v1500 = vld [vmem:[#allocation5 + $0x198] sm:$0xff]
    %v1501 = vld [vmem:[#allocation5 + $0x1a0] sm:$0xff]
    %v1502 = vld [vmem:[#allocation5 + $0x1a8] sm:$0xff]
    %v1503 = vld [vmem:[#allocation5 + $0x1b0] sm:$0xff]
    %v1504 = vld [vmem:[#allocation5 + $0x1b8] sm:$0xff]
    %v1505 = vld [vmem:[#allocation5 + $0x1c0] sm:$0xff]
    %v1506 = vld [vmem:[#allocation5 + $0x1c8] sm:$0xff]
    %v1507 = vld [vmem:[#allocation5 + $0x1d0] sm:$0xff]
    %v1508 = vld [vmem:[#allocation5 + $0x1d8] sm:$0xff]
    %v1509 = vld [vmem:[#allocation5 + $0x1e0] sm:$0xff]
    %v1510 = vld [vmem:[#allocation5 + $0x1e8] sm:$0xff]
    %v1511 = vld [vmem:[#allocation5 + $0x1f0] sm:$0xff]
    %v1512 = vld [vmem:[#allocation5 + $0x1f8] sm:$0xff]
    %v1521 = vrot.slane %v1440, 1
    %v1522 = vrot.slane %v1444, 1
    %v1523 = vsel %vm187, %v1521, %v1522
    %v1524 = vrot.slane %v1441, 1
    %v1525 = vrot.slane %v1445, 1
    %v1526 = vsel %vm187, %v1524, %v1525
    %v1527 = vrot.slane %v1442, 1
    %v1528 = vrot.slane %v1446, 1
    %v1529 = vsel %vm187, %v1527, %v1528
    %v1530 = vrot.slane %v1443, 1
    %v1531 = vrot.slane %v1447, 1
    %v1532 = vsel %vm187, %v1530, %v1531
    %s1537 = scalar_lea.vmem [#allocation5], 512
    %v1538 = vld [vmem:[%s1537] sm:$0xff]
    %v1539 = vld [vmem:[%s1537 + $0x8] sm:$0xff]
    %v1540 = vld [vmem:[%s1537 + $0x10] sm:$0xff]
    %v1541 = vld [vmem:[%s1537 + $0x18] sm:$0xff]
    %v1542 = vld [vmem:[%s1537 + $0x20] sm:$0xff]
    %v1543 = vld [vmem:[%s1537 + $0x28] sm:$0xff]
    %v1544 = vld [vmem:[%s1537 + $0x30] sm:$0xff]
    %v1545 = vld [vmem:[%s1537 + $0x38] sm:$0xff]
    %v1546 = vld [vmem:[%s1537 + $0x40] sm:$0xff]
    %v1547 = vld [vmem:[%s1537 + $0x48] sm:$0xff]
    %v1548 = vld [vmem:[%s1537 + $0x50] sm:$0xff]
    %v1549 = vld [vmem:[%s1537 + $0x58] sm:$0xff]
    %v1550 = vld [vmem:[%s1537 + $0x60] sm:$0xff]
    %v1551 = vld [vmem:[%s1537 + $0x68] sm:$0xff]
    %v1552 = vld [vmem:[%s1537 + $0x70] sm:$0xff]
    %v1553 = vld [vmem:[%s1537 + $0x78] sm:$0xff]
    %v1554 = vld [vmem:[%s1537 + $0x80] sm:$0xff]
    %v1555 = vld [vmem:[%s1537 + $0x88] sm:$0xff]
    %v1556 = vld [vmem:[%s1537 + $0x90] sm:$0xff]
    %v1557 = vld [vmem:[%s1537 + $0x98] sm:$0xff]
    %v1558 = vld [vmem:[%s1537 + $0xa0] sm:$0xff]
    %v1559 = vld [vmem:[%s1537 + $0xa8] sm:$0xff]
    %v1560 = vld [vmem:[%s1537 + $0xb0] sm:$0xff]
    %v1561 = vld [vmem:[%s1537 + $0xb8] sm:$0xff]
    %v1562 = vld [vmem:[%s1537 + $0xc0] sm:$0xff]
    %v1563 = vld [vmem:[%s1537 + $0xc8] sm:$0xff]
    %v1564 = vld [vmem:[%s1537 + $0xd0] sm:$0xff]
    %v1565 = vld [vmem:[%s1537 + $0xd8] sm:$0xff]
    %v1566 = vld [vmem:[%s1537 + $0xe0] sm:$0xff]
    %v1567 = vld [vmem:[%s1537 + $0xe8] sm:$0xff]
    %v1568 = vld [vmem:[%s1537 + $0xf0] sm:$0xff]
    %v1569 = vld [vmem:[%s1537 + $0xf8] sm:$0xff]
    %v1570 = vld [vmem:[%s1537 + $0x100] sm:$0xff]
    %v1571 = vld [vmem:[%s1537 + $0x108] sm:$0xff]
    %v1572 = vld [vmem:[%s1537 + $0x110] sm:$0xff]
    %v1573 = vld [vmem:[%s1537 + $0x118] sm:$0xff]
    %v1574 = vld [vmem:[%s1537 + $0x120] sm:$0xff]
    %v1575 = vld [vmem:[%s1537 + $0x128] sm:$0xff]
    %v1576 = vld [vmem:[%s1537 + $0x130] sm:$0xff]
    %v1577 = vld [vmem:[%s1537 + $0x138] sm:$0xff]
    %v1578 = vld [vmem:[%s1537 + $0x140] sm:$0xff]
    %v1579 = vld [vmem:[%s1537 + $0x148] sm:$0xff]
    %v1580 = vld [vmem:[%s1537 + $0x150] sm:$0xff]
    %v1581 = vld [vmem:[%s1537 + $0x158] sm:$0xff]
    %v1582 = vld [vmem:[%s1537 + $0x160] sm:$0xff]
    %v1583 = vld [vmem:[%s1537 + $0x168] sm:$0xff]
    %v1584 = vld [vmem:[%s1537 + $0x170] sm:$0xff]
    %v1585 = vld [vmem:[%s1537 + $0x178] sm:$0xff]
    %v1586 = vld [vmem:[%s1537 + $0x180] sm:$0xff]
    %v1587 = vld [vmem:[%s1537 + $0x188] sm:$0xff]
    %v1588 = vld [vmem:[%s1537 + $0x190] sm:$0xff]
    %v1589 = vld [vmem:[%s1537 + $0x198] sm:$0xff]
    %v1590 = vld [vmem:[%s1537 + $0x1a0] sm:$0xff]
    %v1591 = vld [vmem:[%s1537 + $0x1a8] sm:$0xff]
    %v1592 = vld [vmem:[%s1537 + $0x1b0] sm:$0xff]
    %v1593 = vld [vmem:[%s1537 + $0x1b8] sm:$0xff]
    %v1594 = vld [vmem:[%s1537 + $0x1c0] sm:$0xff]
    %v1595 = vld [vmem:[%s1537 + $0x1c8] sm:$0xff]
    %v1596 = vld [vmem:[%s1537 + $0x1d0] sm:$0xff]
    %v1597 = vld [vmem:[%s1537 + $0x1d8] sm:$0xff]
    %v1598 = vld [vmem:[%s1537 + $0x1e0] sm:$0xff]
    %v1599 = vld [vmem:[%s1537 + $0x1e8] sm:$0xff]
    %v1600 = vld [vmem:[%s1537 + $0x1f0] sm:$0xff]
    %v1601 = vld [vmem:[%s1537 + $0x1f8] sm:$0xff]
    %1602 = vmatprep.subr.mxu0 %v1569
    %1603 = vmatpush1.msra.mxu0 %v1568
    %1604 = vmatprep.subr.mxu0 %v1567
    %1605 = vmatpush1.msra.mxu0 %v1566
    %1606 = vmatprep.subr.mxu0 %v1565
    %1607 = vmatpush1.msra.mxu0 %v1564
    %1608 = vmatprep.subr.mxu0 %v1563
    %1609 = vmatpush1.msra.mxu0 %v1562
    %1610 = vmatprep.subr.mxu0 %v1561
    %1611 = vmatpush1.msra.mxu0 %v1560
    %1612 = vmatprep.subr.mxu0 %v1559
    %1613 = vmatpush1.msra.mxu0 %v1558
    %1614 = vmatprep.subr.mxu0 %v1557
    %1615 = vmatpush1.msra.mxu0 %v1556
    %1616 = vmatprep.subr.mxu0 %v1555
    %1617 = vmatpush1.msra.mxu0 %v1554
    %1618 = vmatprep.subr.mxu0 %v1553
    %1619 = vmatpush1.msra.mxu0 %v1552
    %1620 = vmatprep.subr.mxu0 %v1551
    %1621 = vmatpush1.msra.mxu0 %v1550
    %1622 = vmatprep.subr.mxu0 %v1549
    %1623 = vmatpush1.msra.mxu0 %v1548
    %1624 = vmatprep.subr.mxu0 %v1547
    %1625 = vmatpush1.msra.mxu0 %v1546
    %1626 = vmatprep.subr.mxu0 %v1545
    %1627 = vmatpush1.msra.mxu0 %v1544
    %1628 = vmatprep.subr.mxu0 %v1543
    %1629 = vmatpush1.msra.mxu0 %v1542
    %1630 = vmatprep.subr.mxu0 %v1541
    %1631 = vmatpush1.msra.mxu0 %v1540
    %1632 = vmatprep.subr.mxu0 %v1539
    %1633 = vmatpush1.msra.mxu0 %v1538
    %1634 = vmatprep.subr.mxu0 %v1601
    %1635 = vmatpush2.msra.mxu0 %v1600
    %1636 = vmatprep.subr.mxu0 %v1599
    %1637 = vmatpush2.msra.mxu0 %v1598
    %1638 = vmatprep.subr.mxu0 %v1597
    %1639 = vmatpush2.msra.mxu0 %v1596
    %1640 = vmatprep.subr.mxu0 %v1595
    %1641 = vmatpush2.msra.mxu0 %v1594
    %1642 = vmatprep.subr.mxu0 %v1593
    %1643 = vmatpush2.msra.mxu0 %v1592
    %1644 = vmatprep.subr.mxu0 %v1591
    %1645 = vmatpush2.msra.mxu0 %v1590
    %1646 = vmatprep.subr.mxu0 %v1589
    %1647 = vmatpush2.msra.mxu0 %v1588
    %1648 = vmatprep.subr.mxu0 %v1587
    %1649 = vmatpush2.msra.mxu0 %v1586
    %1650 = vmatprep.subr.mxu0 %v1585
    %1651 = vmatpush2.msra.mxu0 %v1584
    %1652 = vmatprep.subr.mxu0 %v1583
    %1653 = vmatpush2.msra.mxu0 %v1582
    %1654 = vmatprep.subr.mxu0 %v1581
    %1655 = vmatpush2.msra.mxu0 %v1580
    %1656 = vmatprep.subr.mxu0 %v1579
    %1657 = vmatpush2.msra.mxu0 %v1578
    %1658 = vmatprep.subr.mxu0 %v1577
    %1659 = vmatpush2.msra.mxu0 %v1576
    %1660 = vmatprep.subr.mxu0 %v1575
    %1661 = vmatpush2.msra.mxu0 %v1574
    %1662 = vmatprep.subr.mxu0 %v1573
    %1663 = vmatpush2.msra.mxu0 %v1572
    %1664 = vmatprep.subr.mxu0 %v1571
    %1665 = vmatpush2.msra.mxu0 %v1570
    %1666 = vmatprep.mubr.f32.mxu0 %v1526
    %1667 = vmatmul.mubr.f32.gmra.mxu0 %v1523
    %v1668 = vpop.f32.mrf.mxu0
    %v1669 = vadd.f32 0.0, %v1668
    %v1670 = vpop.f32.mrf.mxu0
    %v1671 = vadd.f32 0.0, %v1670
    %1672 = vmatprep.mubr.f32.mxu0 %v1532
    %1673 = vmatmul.mubr.f32.gmra.mxu0 %v1529
    %v1674 = vpop.f32.mrf.mxu0
    %v1675 = vadd.f32 0.0, %v1674
    %v1676 = vpop.f32.mrf.mxu0
    %v1677 = vadd.f32 0.0, %v1676
    %1678 = vdwg.mxu0
    %1679 = vmatprep.subr.mxu0 %v1480
    %1680 = vmatpush1.msra.mxu0 %v1479
    %1681 = vmatprep.subr.mxu0 %v1478
    %1682 = vmatpush1.msra.mxu0 %v1477
    %1683 = vmatprep.subr.mxu0 %v1476
    %1684 = vmatpush1.msra.mxu0 %v1475
    %1685 = vmatprep.subr.mxu0 %v1474
    %1686 = vmatpush1.msra.mxu0 %v1473
    %1687 = vmatprep.subr.mxu0 %v1472
    %1688 = vmatpush1.msra.mxu0 %v1471
    %1689 = vmatprep.subr.mxu0 %v1470
    %1690 = vmatpush1.msra.mxu0 %v1469
    %1691 = vmatprep.subr.mxu0 %v1468
    %1692 = vmatpush1.msra.mxu0 %v1467
    %1693 = vmatprep.subr.mxu0 %v1466
    %1694 = vmatpush1.msra.mxu0 %v1465
    %1695 = vmatprep.subr.mxu0 %v1464
    %1696 = vmatpush1.msra.mxu0 %v1463
    %1697 = vmatprep.subr.mxu0 %v1462
    %1698 = vmatpush1.msra.mxu0 %v1461
    %1699 = vmatprep.subr.mxu0 %v1460
    %1700 = vmatpush1.msra.mxu0 %v1459
    %1701 = vmatprep.subr.mxu0 %v1458
    %1702 = vmatpush1.msra.mxu0 %v1457
    %1703 = vmatprep.subr.mxu0 %v1456
    %1704 = vmatpush1.msra.mxu0 %v1455
    %1705 = vmatprep.subr.mxu0 %v1454
    %1706 = vmatpush1.msra.mxu0 %v1453
    %1707 = vmatprep.subr.mxu0 %v1452
    %1708 = vmatpush1.msra.mxu0 %v1451
    %1709 = vmatprep.subr.mxu0 %v1450
    %1710 = vmatpush1.msra.mxu0 %v1449
    %1711 = vmatprep.subr.mxu0 %v1512
    %1712 = vmatpush2.msra.mxu0 %v1511
    %1713 = vmatprep.subr.mxu0 %v1510
    %1714 = vmatpush2.msra.mxu0 %v1509
    %1715 = vmatprep.subr.mxu0 %v1508
    %1716 = vmatpush2.msra.mxu0 %v1507
    %1717 = vmatprep.subr.mxu0 %v1506
    %1718 = vmatpush2.msra.mxu0 %v1505
    %1719 = vmatprep.subr.mxu0 %v1504
    %1720 = vmatpush2.msra.mxu0 %v1503
    %1721 = vmatprep.subr.mxu0 %v1502
    %1722 = vmatpush2.msra.mxu0 %v1501
    %1723 = vmatprep.subr.mxu0 %v1500
    %1724 = vmatpush2.msra.mxu0 %v1499
    %1725 = vmatprep.subr.mxu0 %v1498
    %1726 = vmatpush2.msra.mxu0 %v1497
    %1727 = vmatprep.subr.mxu0 %v1496
    %1728 = vmatpush2.msra.mxu0 %v1495
    %1729 = vmatprep.subr.mxu0 %v1494
    %1730 = vmatpush2.msra.mxu0 %v1493
    %1731 = vmatprep.subr.mxu0 %v1492
    %1732 = vmatpush2.msra.mxu0 %v1491
    %1733 = vmatprep.subr.mxu0 %v1490
    %1734 = vmatpush2.msra.mxu0 %v1489
    %1735 = vmatprep.subr.mxu0 %v1488
    %1736 = vmatpush2.msra.mxu0 %v1487
    %1737 = vmatprep.subr.mxu0 %v1486
    %1738 = vmatpush2.msra.mxu0 %v1485
    %1739 = vmatprep.subr.mxu0 %v1484
    %1740 = vmatpush2.msra.mxu0 %v1483
    %1741 = vmatprep.subr.mxu0 %v1482
    %1742 = vmatpush2.msra.mxu0 %v1481
    %1743 = vmatprep.mubr.f32.mxu0 %v1441
    %1744 = vmatmul.mubr.f32.gmra.mxu0 %v1440
    %v1745 = vpop.f32.mrf.mxu0
    %v1746 = vadd.f32 %v1669, %v1745
    %v1747 = vpop.f32.mrf.mxu0
    %v1748 = vadd.f32 %v1671, %v1747
    %1749 = vmatprep.mubr.f32.mxu0 %v1443
    %1750 = vmatmul.mubr.f32.gmra.mxu0 %v1442
    %v1751 = vpop.f32.mrf.mxu0
    %v1752 = vadd.f32 %v1675, %v1751
    %v1753 = vpop.f32.mrf.mxu0
    %v1754 = vadd.f32 %v1677, %v1753
    %1755 = vdwg.mxu0
    %v1756 = vrot.slane %v1440, 2
    %v1757 = vrot.slane %v1444, 2
    %v1758 = vsel %vm423, %v1756, %v1757
    %v1759 = vrot.slane %v1441, 2
    %v1760 = vrot.slane %v1445, 2
    %v1761 = vsel %vm423, %v1759, %v1760
    %v1762 = vrot.slane %v1442, 2
    %v1763 = vrot.slane %v1446, 2
    %v1764 = vsel %vm423, %v1762, %v1763
    %v1765 = vrot.slane %v1443, 2
    %v1766 = vrot.slane %v1447, 2
    %v1767 = vsel %vm423, %v1765, %v1766
    %s1772 = scalar_lea.vmem [#allocation5], 1024
    %v1773 = vld [vmem:[%s1772] sm:$0xff]
    %v1774 = vld [vmem:[%s1772 + $0x8] sm:$0xff]
    %v1775 = vld [vmem:[%s1772 + $0x10] sm:$0xff]
    %v1776 = vld [vmem:[%s1772 + $0x18] sm:$0xff]
    %v1777 = vld [vmem:[%s1772 + $0x20] sm:$0xff]
    %v1778 = vld [vmem:[%s1772 + $0x28] sm:$0xff]
    %v1779 = vld [vmem:[%s1772 + $0x30] sm:$0xff]
    %v1780 = vld [vmem:[%s1772 + $0x38] sm:$0xff]
    %v1781 = vld [vmem:[%s1772 + $0x40] sm:$0xff]
    %v1782 = vld [vmem:[%s1772 + $0x48] sm:$0xff]
    %v1783 = vld [vmem:[%s1772 + $0x50] sm:$0xff]
    %v1784 = vld [vmem:[%s1772 + $0x58] sm:$0xff]
    %v1785 = vld [vmem:[%s1772 + $0x60] sm:$0xff]
    %v1786 = vld [vmem:[%s1772 + $0x68] sm:$0xff]
    %v1787 = vld [vmem:[%s1772 + $0x70] sm:$0xff]
    %v1788 = vld [vmem:[%s1772 + $0x78] sm:$0xff]
    %v1789 = vld [vmem:[%s1772 + $0x80] sm:$0xff]
    %v1790 = vld [vmem:[%s1772 + $0x88] sm:$0xff]
    %v1791 = vld [vmem:[%s1772 + $0x90] sm:$0xff]
    %v1792 = vld [vmem:[%s1772 + $0x98] sm:$0xff]
    %v1793 = vld [vmem:[%s1772 + $0xa0] sm:$0xff]
    %v1794 = vld [vmem:[%s1772 + $0xa8] sm:$0xff]
    %v1795 = vld [vmem:[%s1772 + $0xb0] sm:$0xff]
    %v1796 = vld [vmem:[%s1772 + $0xb8] sm:$0xff]
    %v1797 = vld [vmem:[%s1772 + $0xc0] sm:$0xff]
    %v1798 = vld [vmem:[%s1772 + $0xc8] sm:$0xff]
    %v1799 = vld [vmem:[%s1772 + $0xd0] sm:$0xff]
    %v1800 = vld [vmem:[%s1772 + $0xd8] sm:$0xff]
    %v1801 = vld [vmem:[%s1772 + $0xe0] sm:$0xff]
    %v1802 = vld [vmem:[%s1772 + $0xe8] sm:$0xff]
    %v1803 = vld [vmem:[%s1772 + $0xf0] sm:$0xff]
    %v1804 = vld [vmem:[%s1772 + $0xf8] sm:$0xff]
    %v1805 = vld [vmem:[%s1772 + $0x100] sm:$0xff]
    %v1806 = vld [vmem:[%s1772 + $0x108] sm:$0xff]
    %v1807 = vld [vmem:[%s1772 + $0x110] sm:$0xff]
    %v1808 = vld [vmem:[%s1772 + $0x118] sm:$0xff]
    %v1809 = vld [vmem:[%s1772 + $0x120] sm:$0xff]
    %v1810 = vld [vmem:[%s1772 + $0x128] sm:$0xff]
    %v1811 = vld [vmem:[%s1772 + $0x130] sm:$0xff]
    %v1812 = vld [vmem:[%s1772 + $0x138] sm:$0xff]
    %v1813 = vld [vmem:[%s1772 + $0x140] sm:$0xff]
    %v1814 = vld [vmem:[%s1772 + $0x148] sm:$0xff]
    %v1815 = vld [vmem:[%s1772 + $0x150] sm:$0xff]
    %v1816 = vld [vmem:[%s1772 + $0x158] sm:$0xff]
    %v1817 = vld [vmem:[%s1772 + $0x160] sm:$0xff]
    %v1818 = vld [vmem:[%s1772 + $0x168] sm:$0xff]
    %v1819 = vld [vmem:[%s1772 + $0x170] sm:$0xff]
    %v1820 = vld [vmem:[%s1772 + $0x178] sm:$0xff]
    %v1821 = vld [vmem:[%s1772 + $0x180] sm:$0xff]
    %v1822 = vld [vmem:[%s1772 + $0x188] sm:$0xff]
    %v1823 = vld [vmem:[%s1772 + $0x190] sm:$0xff]
    %v1824 = vld [vmem:[%s1772 + $0x198] sm:$0xff]
    %v1825 = vld [vmem:[%s1772 + $0x1a0] sm:$0xff]
    %v1826 = vld [vmem:[%s1772 + $0x1a8] sm:$0xff]
    %v1827 = vld [vmem:[%s1772 + $0x1b0] sm:$0xff]
    %v1828 = vld [vmem:[%s1772 + $0x1b8] sm:$0xff]
    %v1829 = vld [vmem:[%s1772 + $0x1c0] sm:$0xff]
    %v1830 = vld [vmem:[%s1772 + $0x1c8] sm:$0xff]
    %v1831 = vld [vmem:[%s1772 + $0x1d0] sm:$0xff]
    %v1832 = vld [vmem:[%s1772 + $0x1d8] sm:$0xff]
    %v1833 = vld [vmem:[%s1772 + $0x1e0] sm:$0xff]
    %v1834 = vld [vmem:[%s1772 + $0x1e8] sm:$0xff]
    %v1835 = vld [vmem:[%s1772 + $0x1f0] sm:$0xff]
    %v1836 = vld [vmem:[%s1772 + $0x1f8] sm:$0xff]
    %1837 = vmatprep.subr.mxu0 %v1804
    %1838 = vmatpush1.msra.mxu0 %v1803
    %1839 = vmatprep.subr.mxu0 %v1802
    %1840 = vmatpush1.msra.mxu0 %v1801
    %1841 = vmatprep.subr.mxu0 %v1800
    %1842 = vmatpush1.msra.mxu0 %v1799
    %1843 = vmatprep.subr.mxu0 %v1798
    %1844 = vmatpush1.msra.mxu0 %v1797
    %1845 = vmatprep.subr.mxu0 %v1796
    %1846 = vmatpush1.msra.mxu0 %v1795
    %1847 = vmatprep.subr.mxu0 %v1794
    %1848 = vmatpush1.msra.mxu0 %v1793
    %1849 = vmatprep.subr.mxu0 %v1792
    %1850 = vmatpush1.msra.mxu0 %v1791
    %1851 = vmatprep.subr.mxu0 %v1790
    %1852 = vmatpush1.msra.mxu0 %v1789
    %1853 = vmatprep.subr.mxu0 %v1788
    %1854 = vmatpush1.msra.mxu0 %v1787
    %1855 = vmatprep.subr.mxu0 %v1786
    %1856 = vmatpush1.msra.mxu0 %v1785
    %1857 = vmatprep.subr.mxu0 %v1784
    %1858 = vmatpush1.msra.mxu0 %v1783
    %1859 = vmatprep.subr.mxu0 %v1782
    %1860 = vmatpush1.msra.mxu0 %v1781
    %1861 = vmatprep.subr.mxu0 %v1780
    %1862 = vmatpush1.msra.mxu0 %v1779
    %1863 = vmatprep.subr.mxu0 %v1778
    %1864 = vmatpush1.msra.mxu0 %v1777
    %1865 = vmatprep.subr.mxu0 %v1776
    %1866 = vmatpush1.msra.mxu0 %v1775
    %1867 = vmatprep.subr.mxu0 %v1774
    %1868 = vmatpush1.msra.mxu0 %v1773
    %1869 = vmatprep.subr.mxu0 %v1836
    %1870 = vmatpush2.msra.mxu0 %v1835
    %1871 = vmatprep.subr.mxu0 %v1834
    %1872 = vmatpush2.msra.mxu0 %v1833
    %1873 = vmatprep.subr.mxu0 %v1832
    %1874 = vmatpush2.msra.mxu0 %v1831
    %1875 = vmatprep.subr.mxu0 %v1830
    %1876 = vmatpush2.msra.mxu0 %v1829
    %1877 = vmatprep.subr.mxu0 %v1828
    %1878 = vmatpush2.msra.mxu0 %v1827
    %1879 = vmatprep.subr.mxu0 %v1826
    %1880 = vmatpush2.msra.mxu0 %v1825
    %1881 = vmatprep.subr.mxu0 %v1824
    %1882 = vmatpush2.msra.mxu0 %v1823
    %1883 = vmatprep.subr.mxu0 %v1822
    %1884 = vmatpush2.msra.mxu0 %v1821
    %1885 = vmatprep.subr.mxu0 %v1820
    %1886 = vmatpush2.msra.mxu0 %v1819
    %1887 = vmatprep.subr.mxu0 %v1818
    %1888 = vmatpush2.msra.mxu0 %v1817
    %1889 = vmatprep.subr.mxu0 %v1816
    %1890 = vmatpush2.msra.mxu0 %v1815
    %1891 = vmatprep.subr.mxu0 %v1814
    %1892 = vmatpush2.msra.mxu0 %v1813
    %1893 = vmatprep.subr.mxu0 %v1812
    %1894 = vmatpush2.msra.mxu0 %v1811
    %1895 = vmatprep.subr.mxu0 %v1810
    %1896 = vmatpush2.msra.mxu0 %v1809
    %1897 = vmatprep.subr.mxu0 %v1808
    %1898 = vmatpush2.msra.mxu0 %v1807
    %1899 = vmatprep.subr.mxu0 %v1806
    %1900 = vmatpush2.msra.mxu0 %v1805
    %1901 = vmatprep.mubr.f32.mxu0 %v1761
    %1902 = vmatmul.mubr.f32.gmra.mxu0 %v1758
    %v1903 = vpop.f32.mrf.mxu0
    %v1904 = vadd.f32 0.0, %v1903
    %v1905 = vpop.f32.mrf.mxu0
    %v1906 = vadd.f32 0.0, %v1905
    %1907 = vmatprep.mubr.f32.mxu0 %v1767
    %1908 = vmatmul.mubr.f32.gmra.mxu0 %v1764
    %v1909 = vpop.f32.mrf.mxu0
    %v1910 = vadd.f32 0.0, %v1909
    %v1911 = vpop.f32.mrf.mxu0
    %v1912 = vadd.f32 0.0, %v1911
    %1913 = vdwg.mxu0
    %v1914 = vadd.f32 %v1746, %v1904
    %v1915 = vadd.f32 %v1748, %v1906
    %v1916 = vadd.f32 %v1752, %v1910
    %v1917 = vadd.f32 %v1754, %v1912
    %v1919 = vlaneseq
    %v1920 = vshrl.u32 %v1919, 7
    %v1921 = vsub.s32 0, %v1920
    %v1922 = vrot.slane %v1448, %v1921
    %v1923 = vlaneseq
    %v1924 = vshrl.u32 %v1923, 7
    %v1925 = vsub.s32 1, %v1924
    %v1926 = vrot.slane %v1448, %v1925
    %v1929 = vadd.f32 %v1914, %v1922
    %v1930 = vadd.f32 %v1915, %v1926
    %v1931 = vadd.f32 %v1916, %v1922
    %v1932 = vadd.f32 %v1917, %v1926
    %1933 = vmatprep.subr.mxu0 0.0
    %1934 = vmatpush1.msra.mxu0 %v616
    %1935 = vmatprep.subr.mxu0 0.0
    %1936 = vmatpush1.msra.mxu0 %v615
    %1937 = vmatprep.subr.mxu0 0.0
    %1938 = vmatpush1.msra.mxu0 %v614
    %1939 = vmatprep.subr.mxu0 0.0
    %1940 = vmatpush1.msra.mxu0 %v613
    %1941 = vmatprep.subr.mxu0 0.0
    %1942 = vmatpush1.msra.mxu0 %v612
    %1943 = vmatprep.subr.mxu0 0.0
    %1944 = vmatpush1.msra.mxu0 %v611
    %1945 = vmatprep.subr.mxu0 0.0
    %1946 = vmatpush1.msra.mxu0 %v610
    %1947 = vmatprep.subr.mxu0 0.0
    %1948 = vmatpush1.msra.mxu0 %v609
    %1949 = vmatprep.subr.mxu0 0.0
    %1950 = vmatpush1.msra.mxu0 %v608
    %1951 = vmatprep.subr.mxu0 0.0
    %1952 = vmatpush1.msra.mxu0 %v607
    %1953 = vmatprep.subr.mxu0 0.0
    %1954 = vmatpush1.msra.mxu0 %v606
    %1955 = vmatprep.subr.mxu0 0.0
    %1956 = vmatpush1.msra.mxu0 %v605
    %1957 = vmatprep.subr.mxu0 0.0
    %1958 = vmatpush1.msra.mxu0 %v604
    %1959 = vmatprep.subr.mxu0 0.0
    %1960 = vmatpush1.msra.mxu0 %v603
    %1961 = vmatprep.subr.mxu0 0.0
    %1962 = vmatpush1.msra.mxu0 %v602
    %1963 = vmatprep.subr.mxu0 0.0
    %1964 = vmatpush1.msra.mxu0 %v601
    %1965 = vmatprep.subr.mxu0 0.0
    %1966 = vmatpush2.msra.mxu0 %v632
    %1967 = vmatprep.subr.mxu0 0.0
    %1968 = vmatpush2.msra.mxu0 %v631
    %1969 = vmatprep.subr.mxu0 0.0
    %1970 = vmatpush2.msra.mxu0 %v630
    %1971 = vmatprep.subr.mxu0 0.0
    %1972 = vmatpush2.msra.mxu0 %v629
    %1973 = vmatprep.subr.mxu0 0.0
    %1974 = vmatpush2.msra.mxu0 %v628
    %1975 = vmatprep.subr.mxu0 0.0
    %1976 = vmatpush2.msra.mxu0 %v627
    %1977 = vmatprep.subr.mxu0 0.0
    %1978 = vmatpush2.msra.mxu0 %v626
    %1979 = vmatprep.subr.mxu0 0.0
    %1980 = vmatpush2.msra.mxu0 %v625
    %1981 = vmatprep.subr.mxu0 0.0
    %1982 = vmatpush2.msra.mxu0 %v624
    %1983 = vmatprep.subr.mxu0 0.0
    %1984 = vmatpush2.msra.mxu0 %v623
    %1985 = vmatprep.subr.mxu0 0.0
    %1986 = vmatpush2.msra.mxu0 %v622
    %1987 = vmatprep.subr.mxu0 0.0
    %1988 = vmatpush2.msra.mxu0 %v621
    %1989 = vmatprep.subr.mxu0 0.0
    %1990 = vmatpush2.msra.mxu0 %v620
    %1991 = vmatprep.subr.mxu0 0.0
    %1992 = vmatpush2.msra.mxu0 %v619
    %1993 = vmatprep.subr.mxu0 0.0
    %1994 = vmatpush2.msra.mxu0 %v618
    %1995 = vmatprep.subr.mxu0 0.0
    %1996 = vmatpush2.msra.mxu0 %v617
    %1997 = vmatprep.mubr.f32.mxu0 %v1930
    %1998 = vmatmul.mubr.f32.gmra.mxu0 %v1929
    %v1999 = vpop.f32.mrf.mxu0
    %v2000 = vadd.f32 0.0, %v1999
    %v2001 = vpop.f32.mrf.mxu0
    %2002 = vmatprep.mubr.f32.mxu0 %v1932
    %2003 = vmatmul.mubr.f32.gmra.mxu0 %v1931
    %v2004 = vpop.f32.mrf.mxu0
    %v2005 = vadd.f32 0.0, %v2004
    %v2006 = vpop.f32.mrf.mxu0
    %2007 = vdwg.mxu0
    %v2008 = vsel %vm708, %v2000, 0.0
    %v2009 = vsel %vm708, %v2005, 0.0
    %v2010 = vadd.f32 %v2008, %v2009
    %v2011 = vrot.slane %v2010, 4
    %v2012 = vadd.f32 %v2010, %v2011
    %v2013 = vrot.slane %v2012, 2
    %v2014 = vadd.f32 %v2012, %v2013
    %v2015 = vrot.slane %v2014, 1
    %v2016 = vadd.f32 %v2014, %v2015
    %v2017 = vmul.f32 %v2016, 0.0009765625
    %v2019 = vsel %vm708, %v2017, 0
    %2021 = vmatprep.subr.mxu0 0.0
    %2022 = vmatpush1.msra.mxu0 0.0
    %2023 = vmatprep.subr.mxu0 0.0
    %2024 = vmatpush1.msra.mxu0 0.0
    %2025 = vmatprep.subr.mxu0 0.0
    %2026 = vmatpush1.msra.mxu0 0.0
    %2027 = vmatprep.subr.mxu0 0.0
    %2028 = vmatpush1.msra.mxu0 0.0
    %2029 = vmatprep.subr.mxu0 0.0
    %2030 = vmatpush1.msra.mxu0 0.0
    %2031 = vmatprep.subr.mxu0 0.0
    %2032 = vmatpush1.msra.mxu0 0.0
    %2033 = vmatprep.subr.mxu0 0.0
    %2034 = vmatpush1.msra.mxu0 0.0
    %2035 = vmatprep.subr.mxu0 0.0
    %2036 = vmatpush1.msra.mxu0 0.0
    %2037 = vmatprep.subr.mxu0 0.0
    %2038 = vmatpush1.msra.mxu0 0.0
    %2039 = vmatprep.subr.mxu0 0.0
    %2040 = vmatpush1.msra.mxu0 0.0
    %2041 = vmatprep.subr.mxu0 0.0
    %2042 = vmatpush1.msra.mxu0 0.0
    %2043 = vmatprep.subr.mxu0 0.0
    %2044 = vmatpush1.msra.mxu0 0.0
    %2045 = vmatprep.subr.mxu0 0.0
    %2046 = vmatpush1.msra.mxu0 0.0
    %2047 = vmatprep.subr.mxu0 0.0
    %2048 = vmatpush1.msra.mxu0 0.0
    %2049 = vmatprep.subr.mxu0 0.0
    %2050 = vmatpush1.msra.mxu0 0.0
    %2051 = vmatprep.subr.mxu0 %v728
    %2052 = vmatpush1.msra.mxu0 %v726
    %2053 = vmatprep.subr.mxu0 0.0
    %2054 = vmatpush2.msra.mxu0 0.0
    %2055 = vmatprep.subr.mxu0 0.0
    %2056 = vmatpush2.msra.mxu0 0.0
    %2057 = vmatprep.subr.mxu0 0.0
    %2058 = vmatpush2.msra.mxu0 0.0
    %2059 = vmatprep.subr.mxu0 0.0
    %2060 = vmatpush2.msra.mxu0 0.0
    %2061 = vmatprep.subr.mxu0 0.0
    %2062 = vmatpush2.msra.mxu0 0.0
    %2063 = vmatprep.subr.mxu0 0.0
    %2064 = vmatpush2.msra.mxu0 0.0
    %2065 = vmatprep.subr.mxu0 0.0
    %2066 = vmatpush2.msra.mxu0 0.0
    %2067 = vmatprep.subr.mxu0 0.0
    %2068 = vmatpush2.msra.mxu0 0.0
    %2069 = vmatprep.subr.mxu0 0.0
    %2070 = vmatpush2.msra.mxu0 0.0
    %2071 = vmatprep.subr.mxu0 0.0
    %2072 = vmatpush2.msra.mxu0 0.0
    %2073 = vmatprep.subr.mxu0 0.0
    %2074 = vmatpush2.msra.mxu0 0.0
    %2075 = vmatprep.subr.mxu0 0.0
    %2076 = vmatpush2.msra.mxu0 0.0
    %2077 = vmatprep.subr.mxu0 0.0
    %2078 = vmatpush2.msra.mxu0 0.0
    %2079 = vmatprep.subr.mxu0 0.0
    %2080 = vmatpush2.msra.mxu0 0.0
    %2081 = vmatprep.subr.mxu0 0.0
    %2082 = vmatpush2.msra.mxu0 0.0
    %2083 = vmatprep.subr.mxu0 0.0
    %2084 = vmatpush2.msra.mxu0 0.0
    %2085 = vmatprep.mubr.f32.mxu0 0.0
    %2086 = vmatmul.mubr.f32.gmra.mxu0 %v2019
    %v2087 = vpop.f32.mrf.mxu0
    %v2088 = vadd.f32 0.0, %v2087
    %v2089 = vpop.f32.mrf.mxu0
    %v2090 = vadd.f32 0.0, %v2089
    %2091 = vdwg.mxu0
    %v2092 = vlaneseq
    %v2093 = vshrl.u32 %v2092, 7
    %v2094 = vsub.s32 0, %v2093
    %v2095 = vrot.slane %v2088, %v2094
    %v2096 = vlaneseq
    %v2097 = vshrl.u32 %v2096, 7
    %v2098 = vsub.s32 0, %v2097
    %v2099 = vrot.slane %v2090, %v2098
    %v2100 = vsub.f32 %v1929, %v2095
    %v2101 = vsub.f32 %v1930, %v2099
    %v2102 = vsub.f32 %v1931, %v2095
    %v2103 = vsub.f32 %v1932, %v2099
    %v2104 = vmul.f32 %v2100, %v2100
    %v2105 = vmul.f32 %v2101, %v2101
    %v2106 = vmul.f32 %v2102, %v2102
    %v2107 = vmul.f32 %v2103, %v2103
    %2108 = vmatprep.subr.mxu0 0.0
    %2109 = vmatpush1.msra.mxu0 %v616
    %2110 = vmatprep.subr.mxu0 0.0
    %2111 = vmatpush1.msra.mxu0 %v615
    %2112 = vmatprep.subr.mxu0 0.0
    %2113 = vmatpush1.msra.mxu0 %v614
    %2114 = vmatprep.subr.mxu0 0.0
    %2115 = vmatpush1.msra.mxu0 %v613
    %2116 = vmatprep.subr.mxu0 0.0
    %2117 = vmatpush1.msra.mxu0 %v612
    %2118 = vmatprep.subr.mxu0 0.0
    %2119 = vmatpush1.msra.mxu0 %v611
    %2120 = vmatprep.subr.mxu0 0.0
    %2121 = vmatpush1.msra.mxu0 %v610
    %2122 = vmatprep.subr.mxu0 0.0
    %2123 = vmatpush1.msra.mxu0 %v609
    %2124 = vmatprep.subr.mxu0 0.0
    %2125 = vmatpush1.msra.mxu0 %v608
    %2126 = vmatprep.subr.mxu0 0.0
    %2127 = vmatpush1.msra.mxu0 %v607
    %2128 = vmatprep.subr.mxu0 0.0
    %2129 = vmatpush1.msra.mxu0 %v606
    %2130 = vmatprep.subr.mxu0 0.0
    %2131 = vmatpush1.msra.mxu0 %v605
    %2132 = vmatprep.subr.mxu0 0.0
    %2133 = vmatpush1.msra.mxu0 %v604
    %2134 = vmatprep.subr.mxu0 0.0
    %2135 = vmatpush1.msra.mxu0 %v603
    %2136 = vmatprep.subr.mxu0 0.0
    %2137 = vmatpush1.msra.mxu0 %v602
    %2138 = vmatprep.subr.mxu0 0.0
    %2139 = vmatpush1.msra.mxu0 %v601
    %2140 = vmatprep.subr.mxu0 0.0
    %2141 = vmatpush2.msra.mxu0 %v632
    %2142 = vmatprep.subr.mxu0 0.0
    %2143 = vmatpush2.msra.mxu0 %v631
    %2144 = vmatprep.subr.mxu0 0.0
    %2145 = vmatpush2.msra.mxu0 %v630
    %2146 = vmatprep.subr.mxu0 0.0
    %2147 = vmatpush2.msra.mxu0 %v629
    %2148 = vmatprep.subr.mxu0 0.0
    %2149 = vmatpush2.msra.mxu0 %v628
    %2150 = vmatprep.subr.mxu0 0.0
    %2151 = vmatpush2.msra.mxu0 %v627
    %2152 = vmatprep.subr.mxu0 0.0
    %2153 = vmatpush2.msra.mxu0 %v626
    %2154 = vmatprep.subr.mxu0 0.0
    %2155 = vmatpush2.msra.mxu0 %v625
    %2156 = vmatprep.subr.mxu0 0.0
    %2157 = vmatpush2.msra.mxu0 %v624
    %2158 = vmatprep.subr.mxu0 0.0
    %2159 = vmatpush2.msra.mxu0 %v623
    %2160 = vmatprep.subr.mxu0 0.0
    %2161 = vmatpush2.msra.mxu0 %v622
    %2162 = vmatprep.subr.mxu0 0.0
    %2163 = vmatpush2.msra.mxu0 %v621
    %2164 = vmatprep.subr.mxu0 0.0
    %2165 = vmatpush2.msra.mxu0 %v620
    %2166 = vmatprep.subr.mxu0 0.0
    %2167 = vmatpush2.msra.mxu0 %v619
    %2168 = vmatprep.subr.mxu0 0.0
    %2169 = vmatpush2.msra.mxu0 %v618
    %2170 = vmatprep.subr.mxu0 0.0
    %2171 = vmatpush2.msra.mxu0 %v617
    %2172 = vmatprep.mubr.f32.mxu0 %v2105
    %2173 = vmatmul.mubr.f32.gmra.mxu0 %v2104
    %v2174 = vpop.f32.mrf.mxu0
    %v2175 = vadd.f32 0.0, %v2174
    %v2176 = vpop.f32.mrf.mxu0
    %2177 = vmatprep.mubr.f32.mxu0 %v2107
    %2178 = vmatmul.mubr.f32.gmra.mxu0 %v2106
    %v2179 = vpop.f32.mrf.mxu0
    %v2180 = vadd.f32 0.0, %v2179
    %v2181 = vpop.f32.mrf.mxu0
    %2182 = vdwg.mxu0
    %v2183 = vsel %vm708, %v2175, 0.0
    %v2184 = vsel %vm708, %v2180, 0.0
    %v2185 = vadd.f32 %v2183, %v2184
    %v2186 = vrot.slane %v2185, 4
    %v2187 = vadd.f32 %v2185, %v2186
    %v2188 = vrot.slane %v2187, 2
    %v2189 = vadd.f32 %v2187, %v2188
    %v2190 = vrot.slane %v2189, 1
    %v2191 = vadd.f32 %v2189, %v2190
    %v2192 = vmul.f32 %v2191, 0.0009765625
    %v2193 = vld [vmem:[%s7] sm:$0x1]
    %v2194 = vadd.f32 %v2192, 1e-05
    %v2195 = vrsqrt.pop %v2194
    %v2196 = vmul.f32 %v2193, %v2195
    %v2198 = vsel %vm708, %v2196, 0
    %2200 = vmatprep.subr.mxu0 0.0
    %2201 = vmatpush1.msra.mxu0 0.0
    %2202 = vmatprep.subr.mxu0 0.0
    %2203 = vmatpush1.msra.mxu0 0.0
    %2204 = vmatprep.subr.mxu0 0.0
    %2205 = vmatpush1.msra.mxu0 0.0
    %2206 = vmatprep.subr.mxu0 0.0
    %2207 = vmatpush1.msra.mxu0 0.0
    %2208 = vmatprep.subr.mxu0 0.0
    %2209 = vmatpush1.msra.mxu0 0.0
    %2210 = vmatprep.subr.mxu0 0.0
    %2211 = vmatpush1.msra.mxu0 0.0
    %2212 = vmatprep.subr.mxu0 0.0
    %2213 = vmatpush1.msra.mxu0 0.0
    %2214 = vmatprep.subr.mxu0 0.0
    %2215 = vmatpush1.msra.mxu0 0.0
    %2216 = vmatprep.subr.mxu0 0.0
    %2217 = vmatpush1.msra.mxu0 0.0
    %2218 = vmatprep.subr.mxu0 0.0
    %2219 = vmatpush1.msra.mxu0 0.0
    %2220 = vmatprep.subr.mxu0 0.0
    %2221 = vmatpush1.msra.mxu0 0.0
    %2222 = vmatprep.subr.mxu0 0.0
    %2223 = vmatpush1.msra.mxu0 0.0
    %2224 = vmatprep.subr.mxu0 0.0
    %2225 = vmatpush1.msra.mxu0 0.0
    %2226 = vmatprep.subr.mxu0 0.0
    %2227 = vmatpush1.msra.mxu0 0.0
    %2228 = vmatprep.subr.mxu0 0.0
    %2229 = vmatpush1.msra.mxu0 0.0
    %2230 = vmatprep.subr.mxu0 %v728
    %2231 = vmatpush1.msra.mxu0 %v726
    %2232 = vmatprep.subr.mxu0 0.0
    %2233 = vmatpush2.msra.mxu0 0.0
    %2234 = vmatprep.subr.mxu0 0.0
    %2235 = vmatpush2.msra.mxu0 0.0
    %2236 = vmatprep.subr.mxu0 0.0
    %2237 = vmatpush2.msra.mxu0 0.0
    %2238 = vmatprep.subr.mxu0 0.0
    %2239 = vmatpush2.msra.mxu0 0.0
    %2240 = vmatprep.subr.mxu0 0.0
    %2241 = vmatpush2.msra.mxu0 0.0
    %2242 = vmatprep.subr.mxu0 0.0
    %2243 = vmatpush2.msra.mxu0 0.0
    %2244 = vmatprep.subr.mxu0 0.0
    %2245 = vmatpush2.msra.mxu0 0.0
    %2246 = vmatprep.subr.mxu0 0.0
    %2247 = vmatpush2.msra.mxu0 0.0
    %2248 = vmatprep.subr.mxu0 0.0
    %2249 = vmatpush2.msra.mxu0 0.0
    %2250 = vmatprep.subr.mxu0 0.0
    %2251 = vmatpush2.msra.mxu0 0.0
    %2252 = vmatprep.subr.mxu0 0.0
    %2253 = vmatpush2.msra.mxu0 0.0
    %2254 = vmatprep.subr.mxu0 0.0
    %2255 = vmatpush2.msra.mxu0 0.0
    %2256 = vmatprep.subr.mxu0 0.0
    %2257 = vmatpush2.msra.mxu0 0.0
    %2258 = vmatprep.subr.mxu0 0.0
    %2259 = vmatpush2.msra.mxu0 0.0
    %2260 = vmatprep.subr.mxu0 0.0
    %2261 = vmatpush2.msra.mxu0 0.0
    %2262 = vmatprep.subr.mxu0 0.0
    %2263 = vmatpush2.msra.mxu0 0.0
    %2264 = vmatprep.mubr.f32.mxu0 0.0
    %2265 = vmatmul.mubr.f32.gmra.mxu0 %v2198
    %v2266 = vpop.f32.mrf.mxu0
    %v2267 = vadd.f32 0.0, %v2266
    %v2268 = vpop.f32.mrf.mxu0
    %v2269 = vadd.f32 0.0, %v2268
    %2270 = vdwg.mxu0
    %v2271 = vld [vmem:[%s8] sm:$0x1]
    %v2273 = vsel %vm708, %v2271, 0
    %2275 = vmatprep.subr.mxu0 0.0
    %2276 = vmatpush1.msra.mxu0 0.0
    %2277 = vmatprep.subr.mxu0 0.0
    %2278 = vmatpush1.msra.mxu0 0.0
    %2279 = vmatprep.subr.mxu0 0.0
    %2280 = vmatpush1.msra.mxu0 0.0
    %2281 = vmatprep.subr.mxu0 0.0
    %2282 = vmatpush1.msra.mxu0 0.0
    %2283 = vmatprep.subr.mxu0 0.0
    %2284 = vmatpush1.msra.mxu0 0.0
    %2285 = vmatprep.subr.mxu0 0.0
    %2286 = vmatpush1.msra.mxu0 0.0
    %2287 = vmatprep.subr.mxu0 0.0
    %2288 = vmatpush1.msra.mxu0 0.0
    %2289 = vmatprep.subr.mxu0 0.0
    %2290 = vmatpush1.msra.mxu0 0.0
    %2291 = vmatprep.subr.mxu0 0.0
    %2292 = vmatpush1.msra.mxu0 0.0
    %2293 = vmatprep.subr.mxu0 0.0
    %2294 = vmatpush1.msra.mxu0 0.0
    %2295 = vmatprep.subr.mxu0 0.0
    %2296 = vmatpush1.msra.mxu0 0.0
    %2297 = vmatprep.subr.mxu0 0.0
    %2298 = vmatpush1.msra.mxu0 0.0
    %2299 = vmatprep.subr.mxu0 0.0
    %2300 = vmatpush1.msra.mxu0 0.0
    %2301 = vmatprep.subr.mxu0 0.0
    %2302 = vmatpush1.msra.mxu0 0.0
    %2303 = vmatprep.subr.mxu0 0.0
    %2304 = vmatpush1.msra.mxu0 0.0
    %2305 = vmatprep.subr.mxu0 %v728
    %2306 = vmatpush1.msra.mxu0 %v726
    %2307 = vmatprep.subr.mxu0 0.0
    %2308 = vmatpush2.msra.mxu0 0.0
    %2309 = vmatprep.subr.mxu0 0.0
    %2310 = vmatpush2.msra.mxu0 0.0
    %2311 = vmatprep.subr.mxu0 0.0
    %2312 = vmatpush2.msra.mxu0 0.0
    %2313 = vmatprep.subr.mxu0 0.0
    %2314 = vmatpush2.msra.mxu0 0.0
    %2315 = vmatprep.subr.mxu0 0.0
    %2316 = vmatpush2.msra.mxu0 0.0
    %2317 = vmatprep.subr.mxu0 0.0
    %2318 = vmatpush2.msra.mxu0 0.0
    %2319 = vmatprep.subr.mxu0 0.0
    %2320 = vmatpush2.msra.mxu0 0.0
    %2321 = vmatprep.subr.mxu0 0.0
    %2322 = vmatpush2.msra.mxu0 0.0
    %2323 = vmatprep.subr.mxu0 0.0
    %2324 = vmatpush2.msra.mxu0 0.0
    %2325 = vmatprep.subr.mxu0 0.0
    %2326 = vmatpush2.msra.mxu0 0.0
    %2327 = vmatprep.subr.mxu0 0.0
    %2328 = vmatpush2.msra.mxu0 0.0
    %2329 = vmatprep.subr.mxu0 0.0
    %2330 = vmatpush2.msra.mxu0 0.0
    %2331 = vmatprep.subr.mxu0 0.0
    %2332 = vmatpush2.msra.mxu0 0.0
    %2333 = vmatprep.subr.mxu0 0.0
    %2334 = vmatpush2.msra.mxu0 0.0
    %2335 = vmatprep.subr.mxu0 0.0
    %2336 = vmatpush2.msra.mxu0 0.0
    %2337 = vmatprep.subr.mxu0 0.0
    %2338 = vmatpush2.msra.mxu0 0.0
    %2339 = vmatprep.mubr.f32.mxu0 0.0
    %2340 = vmatmul.mubr.f32.gmra.mxu0 %v2273
    %v2341 = vpop.f32.mrf.mxu0
    %v2342 = vadd.f32 0.0, %v2341
    %v2343 = vpop.f32.mrf.mxu0
    %v2344 = vadd.f32 0.0, %v2343
    %2345 = vdwg.mxu0
    %v2346 = vlaneseq
    %v2347 = vshrl.u32 %v2346, 7
    %v2348 = vsub.s32 0, %v2347
    %v2349 = vrot.slane %v2267, %v2348
    %v2350 = vlaneseq
    %v2351 = vshrl.u32 %v2350, 7
    %v2352 = vsub.s32 0, %v2351
    %v2353 = vrot.slane %v2269, %v2352
    %v2354 = vmul.f32 %v2100, %v2349
    %v2355 = vmul.f32 %v2101, %v2353
    %v2356 = vmul.f32 %v2102, %v2349
    %v2357 = vmul.f32 %v2103, %v2353
    %v2358 = vlaneseq
    %v2359 = vshrl.u32 %v2358, 7
    %v2360 = vsub.s32 0, %v2359
    %v2361 = vrot.slane %v2342, %v2360
    %v2362 = vlaneseq
    %v2363 = vshrl.u32 %v2362, 7
    %v2364 = vsub.s32 0, %v2363
    %v2365 = vrot.slane %v2344, %v2364
    %v2366 = vadd.f32 %v2354, %v2361
    %v2367 = vadd.f32 %v2355, %v2365
    %v2368 = vadd.f32 %v2356, %v2361
    %v2369 = vadd.f32 %v2357, %v2365
    %2370 = vmatprep.subr.mxu0 %v1110
    %2371 = vmatpush1.msra.mxu0 %v1109
    %2372 = vmatprep.subr.mxu0 %v1108
    %2373 = vmatpush1.msra.mxu0 %v1107
    %2374 = vmatprep.subr.mxu0 %v1106
    %2375 = vmatpush1.msra.mxu0 %v1105
    %2376 = vmatprep.subr.mxu0 %v1104
    %2377 = vmatpush1.msra.mxu0 %v1103
    %2378 = vmatprep.subr.mxu0 %v1102
    %2379 = vmatpush1.msra.mxu0 %v1101
    %2380 = vmatprep.subr.mxu0 %v1100
    %2381 = vmatpush1.msra.mxu0 %v1099
    %2382 = vmatprep.subr.mxu0 %v1098
    %2383 = vmatpush1.msra.mxu0 %v1097
    %2384 = vmatprep.subr.mxu0 %v1096
    %2385 = vmatpush1.msra.mxu0 %v1095
    %2386 = vmatprep.subr.mxu0 %v1094
    %2387 = vmatpush1.msra.mxu0 %v1093
    %2388 = vmatprep.subr.mxu0 %v1092
    %2389 = vmatpush1.msra.mxu0 %v1091
    %2390 = vmatprep.subr.mxu0 %v1090
    %2391 = vmatpush1.msra.mxu0 %v1089
    %2392 = vmatprep.subr.mxu0 %v1088
    %2393 = vmatpush1.msra.mxu0 %v1087
    %2394 = vmatprep.subr.mxu0 %v1086
    %2395 = vmatpush1.msra.mxu0 %v1085
    %2396 = vmatprep.subr.mxu0 %v1084
    %2397 = vmatpush1.msra.mxu0 %v1083
    %2398 = vmatprep.subr.mxu0 %v1082
    %2399 = vmatpush1.msra.mxu0 %v1081
    %2400 = vmatprep.subr.mxu0 %v1080
    %2401 = vmatpush1.msra.mxu0 %v1079
    %2402 = vmatprep.subr.mxu0 %v1142
    %2403 = vmatpush2.msra.mxu0 %v1141
    %2404 = vmatprep.subr.mxu0 %v1140
    %2405 = vmatpush2.msra.mxu0 %v1139
    %2406 = vmatprep.subr.mxu0 %v1138
    %2407 = vmatpush2.msra.mxu0 %v1137
    %2408 = vmatprep.subr.mxu0 %v1136
    %2409 = vmatpush2.msra.mxu0 %v1135
    %2410 = vmatprep.subr.mxu0 %v1134
    %2411 = vmatpush2.msra.mxu0 %v1133
    %2412 = vmatprep.subr.mxu0 %v1132
    %2413 = vmatpush2.msra.mxu0 %v1131
    %2414 = vmatprep.subr.mxu0 %v1130
    %2415 = vmatpush2.msra.mxu0 %v1129
    %2416 = vmatprep.subr.mxu0 %v1128
    %2417 = vmatpush2.msra.mxu0 %v1127
    %2418 = vmatprep.subr.mxu0 %v1126
    %2419 = vmatpush2.msra.mxu0 %v1125
    %2420 = vmatprep.subr.mxu0 %v1124
    %2421 = vmatpush2.msra.mxu0 %v1123
    %2422 = vmatprep.subr.mxu0 %v1122
    %2423 = vmatpush2.msra.mxu0 %v1121
    %2424 = vmatprep.subr.mxu0 %v1120
    %2425 = vmatpush2.msra.mxu0 %v1119
    %2426 = vmatprep.subr.mxu0 %v1118
    %2427 = vmatpush2.msra.mxu0 %v1117
    %2428 = vmatprep.subr.mxu0 %v1116
    %2429 = vmatpush2.msra.mxu0 %v1115
    %2430 = vmatprep.subr.mxu0 %v1114
    %2431 = vmatpush2.msra.mxu0 %v1113
    %2432 = vmatprep.subr.mxu0 %v1112
    %2433 = vmatpush2.msra.mxu0 %v1111
    %2434 = vmatprep.mubr.f32.mxu0 %v2367
    %2435 = vmatmul.mubr.f32.gmra.mxu0 %v2366
    %v2436 = vpop.f32.mrf.mxu0
    %v2437 = vadd.f32 0.0, %v2436
    %v2438 = vpop.f32.mrf.mxu0
    %v2439 = vadd.f32 0.0, %v2438
    %2440 = vmatprep.mubr.f32.mxu0 %v2369
    %2441 = vmatmul.mubr.f32.gmra.mxu0 %v2368
    %v2442 = vpop.f32.mrf.mxu0
    %v2443 = vadd.f32 0.0, %v2442
    %v2444 = vpop.f32.mrf.mxu0
    %v2445 = vadd.f32 0.0, %v2444
    %2446 = vdwg.mxu0
    %v2447 = vmul.f32 %v2366, %v2437
    %v2448 = vmul.f32 %v2367, %v2439
    %v2449 = vmul.f32 %v2368, %v2443
    %v2450 = vmul.f32 %v2369, %v2445
    %2451 = vmatprep.subr.mxu0 0.0
    %2452 = vmatpush1.msra.mxu0 0.0
    %2453 = vmatprep.subr.mxu0 0.0
    %2454 = vmatpush1.msra.mxu0 0.0
    %2455 = vmatprep.subr.mxu0 0.0
    %2456 = vmatpush1.msra.mxu0 0.0
    %2457 = vmatprep.subr.mxu0 0.0
    %2458 = vmatpush1.msra.mxu0 0.0
    %2459 = vmatprep.subr.mxu0 0.0
    %2460 = vmatpush1.msra.mxu0 0.0
    %2461 = vmatprep.subr.mxu0 0.0
    %2462 = vmatpush1.msra.mxu0 0.0
    %2463 = vmatprep.subr.mxu0 0.0
    %2464 = vmatpush1.msra.mxu0 0.0
    %2465 = vmatprep.subr.mxu0 0.0
    %2466 = vmatpush1.msra.mxu0 0.0
    %2467 = vmatprep.subr.mxu0 0.0
    %2468 = vmatpush1.msra.mxu0 0.0
    %2469 = vmatprep.subr.mxu0 0.0
    %2470 = vmatpush1.msra.mxu0 0.0
    %2471 = vmatprep.subr.mxu0 0.0
    %2472 = vmatpush1.msra.mxu0 0.0
    %2473 = vmatprep.subr.mxu0 0.0
    %2474 = vmatpush1.msra.mxu0 0.0
    %2475 = vmatprep.subr.mxu0 0.0
    %2476 = vmatpush1.msra.mxu0 0.0
    %2477 = vmatprep.subr.mxu0 0.0
    %2478 = vmatpush1.msra.mxu0 0.0
    %2479 = vmatprep.subr.mxu0 %v2450
    %2480 = vmatpush1.msra.mxu0 %v2449
    %2481 = vmatprep.subr.mxu0 %v2448
    %2482 = vmatpush1.msra.mxu0 %v2447
    %2483 = vmatprep.subr.mxu0 0.0
    %2484 = vmatpush2.msra.mxu0 0.0
    %2485 = vmatprep.subr.mxu0 0.0
    %2486 = vmatpush2.msra.mxu0 0.0
    %2487 = vmatprep.subr.mxu0 0.0
    %2488 = vmatpush2.msra.mxu0 0.0
    %2489 = vmatprep.subr.mxu0 0.0
    %2490 = vmatpush2.msra.mxu0 0.0
    %2491 = vmatprep.subr.mxu0 0.0
    %2492 = vmatpush2.msra.mxu0 0.0
    %2493 = vmatprep.subr.mxu0 0.0
    %2494 = vmatpush2.msra.mxu0 0.0
    %2495 = vmatprep.subr.mxu0 0.0
    %2496 = vmatpush2.msra.mxu0 0.0
    %2497 = vmatprep.subr.mxu0 0.0
    %2498 = vmatpush2.msra.mxu0 0.0
    %2499 = vmatprep.subr.mxu0 0.0
    %2500 = vmatpush2.msra.mxu0 0.0
    %2501 = vmatprep.subr.mxu0 0.0
    %2502 = vmatpush2.msra.mxu0 0.0
    %2503 = vmatprep.subr.mxu0 0.0
    %2504 = vmatpush2.msra.mxu0 0.0
    %2505 = vmatprep.subr.mxu0 0.0
    %2506 = vmatpush2.msra.mxu0 0.0
    %2507 = vmatprep.subr.mxu0 0.0
    %2508 = vmatpush2.msra.mxu0 0.0
    %2509 = vmatprep.subr.mxu0 0.0
    %2510 = vmatpush2.msra.mxu0 0.0
    %2511 = vmatprep.subr.mxu0 0.0
    %2512 = vmatpush2.msra.mxu0 0.0
    %2513 = vmatprep.subr.mxu0 0.0
    %2514 = vmatpush2.msra.mxu0 0.0
    %2515 = vmatprep.mubr.f32.mxu0 0.0
    %2516 = vmatmul.mubr.f32.gmra.mxu0 %v1228
    %v2517 = vpop.f32.mrf.mxu0
    %v2518 = vadd.f32 0.0, %v2517
    %v2519 = vpop.f32.mrf.mxu0
    %v2520 = vadd.f32 0.0, %v2519
    %2521 = vmatprep.mubr.f32.mxu0 0.0
    %2522 = vmatmul.mubr.f32.gmra.mxu0 %v1231
    %v2523 = vpop.f32.mrf.mxu0
    %v2524 = vadd.f32 0.0, %v2523
    %v2525 = vpop.f32.mrf.mxu0
    %v2526 = vadd.f32 0.0, %v2525
    %2527 = vdwg.mxu0
    %v2528 = vmul.f32 %v2437, %v2437
    %v2529 = vmul.f32 %v2439, %v2439
    %v2530 = vmul.f32 %v2443, %v2443
    %v2531 = vmul.f32 %v2445, %v2445
    %2532 = vmatprep.subr.mxu0 0.0
    %2533 = vmatpush1.msra.mxu0 0.0
    %2534 = vmatprep.subr.mxu0 0.0
    %2535 = vmatpush1.msra.mxu0 0.0
    %2536 = vmatprep.subr.mxu0 0.0
    %2537 = vmatpush1.msra.mxu0 0.0
    %2538 = vmatprep.subr.mxu0 0.0
    %2539 = vmatpush1.msra.mxu0 0.0
    %2540 = vmatprep.subr.mxu0 0.0
    %2541 = vmatpush1.msra.mxu0 0.0
    %2542 = vmatprep.subr.mxu0 0.0
    %2543 = vmatpush1.msra.mxu0 0.0
    %2544 = vmatprep.subr.mxu0 0.0
    %2545 = vmatpush1.msra.mxu0 0.0
    %2546 = vmatprep.subr.mxu0 0.0
    %2547 = vmatpush1.msra.mxu0 0.0
    %2548 = vmatprep.subr.mxu0 0.0
    %2549 = vmatpush1.msra.mxu0 0.0
    %2550 = vmatprep.subr.mxu0 0.0
    %2551 = vmatpush1.msra.mxu0 0.0
    %2552 = vmatprep.subr.mxu0 0.0
    %2553 = vmatpush1.msra.mxu0 0.0
    %2554 = vmatprep.subr.mxu0 0.0
    %2555 = vmatpush1.msra.mxu0 0.0
    %2556 = vmatprep.subr.mxu0 0.0
    %2557 = vmatpush1.msra.mxu0 0.0
    %2558 = vmatprep.subr.mxu0 0.0
    %2559 = vmatpush1.msra.mxu0 0.0
    %2560 = vmatprep.subr.mxu0 %v2531
    %2561 = vmatpush1.msra.mxu0 %v2530
    %2562 = vmatprep.subr.mxu0 %v2529
    %2563 = vmatpush1.msra.mxu0 %v2528
    %2564 = vmatprep.subr.mxu0 0.0
    %2565 = vmatpush2.msra.mxu0 0.0
    %2566 = vmatprep.subr.mxu0 0.0
    %2567 = vmatpush2.msra.mxu0 0.0
    %2568 = vmatprep.subr.mxu0 0.0
    %2569 = vmatpush2.msra.mxu0 0.0
    %2570 = vmatprep.subr.mxu0 0.0
    %2571 = vmatpush2.msra.mxu0 0.0
    %2572 = vmatprep.subr.mxu0 0.0
    %2573 = vmatpush2.msra.mxu0 0.0
    %2574 = vmatprep.subr.mxu0 0.0
    %2575 = vmatpush2.msra.mxu0 0.0
    %2576 = vmatprep.subr.mxu0 0.0
    %2577 = vmatpush2.msra.mxu0 0.0
    %2578 = vmatprep.subr.mxu0 0.0
    %2579 = vmatpush2.msra.mxu0 0.0
    %2580 = vmatprep.subr.mxu0 0.0
    %2581 = vmatpush2.msra.mxu0 0.0
    %2582 = vmatprep.subr.mxu0 0.0
    %2583 = vmatpush2.msra.mxu0 0.0
    %2584 = vmatprep.subr.mxu0 0.0
    %2585 = vmatpush2.msra.mxu0 0.0
    %2586 = vmatprep.subr.mxu0 0.0
    %2587 = vmatpush2.msra.mxu0 0.0
    %2588 = vmatprep.subr.mxu0 0.0
    %2589 = vmatpush2.msra.mxu0 0.0
    %2590 = vmatprep.subr.mxu0 0.0
    %2591 = vmatpush2.msra.mxu0 0.0
    %2592 = vmatprep.subr.mxu0 0.0
    %2593 = vmatpush2.msra.mxu0 0.0
    %2594 = vmatprep.subr.mxu0 0.0
    %2595 = vmatpush2.msra.mxu0 0.0
    %2596 = vmatprep.mubr.f32.mxu0 0.0
    %2597 = vmatmul.mubr.f32.gmra.mxu0 %v1228
    %v2598 = vpop.f32.mrf.mxu0
    %v2599 = vadd.f32 1e-06, %v2598
    %v2600 = vpop.f32.mrf.mxu0
    %v2601 = vadd.f32 1e-06, %v2600
    %2602 = vmatprep.mubr.f32.mxu0 0.0
    %2603 = vmatmul.mubr.f32.gmra.mxu0 %v1231
    %v2604 = vpop.f32.mrf.mxu0
    %v2605 = vadd.f32 1e-06, %v2604
    %v2606 = vpop.f32.mrf.mxu0
    %v2607 = vadd.f32 1e-06, %v2606
    %2608 = vdwg.mxu0
    %v2609 = vrcp.pop %v2599
    %v2610 = vmul.f32 %v2518, %v2609
    %v2611 = vrcp.pop %v2601
    %v2612 = vmul.f32 %v2520, %v2611
    %v2613 = vrcp.pop %v2605
    %v2614 = vmul.f32 %v2524, %v2613
    %v2615 = vrcp.pop %v2607
    %v2616 = vmul.f32 %v2526, %v2615
    %v2617 = vmul.f32 %v2610, %v2437
    %v2618 = vmul.f32 %v2612, %v2439
    %v2619 = vmul.f32 %v2614, %v2443
    %v2620 = vmul.f32 %v2616, %v2445
    %v2621 = vsub.f32 %v2366, %v2617
    %v2622 = vsub.f32 %v2367, %v2618
    %v2623 = vsub.f32 %v2368, %v2619
    %v2624 = vsub.f32 %v2369, %v2620
    %v2625 = vmul.f32 %v2366, 0.2
    %v2626 = vmul.f32 %v2367, 0.2
    %v2627 = vmul.f32 %v2368, 0.2
    %v2628 = vmul.f32 %v2369, 0.2
    %vm2629 = vcmp.ge.f32.partialorder %v2518, 0.0
    %vm2630 = vcmp.ge.f32.partialorder %v2520, 0.0
    %vm2631 = vcmp.ge.f32.partialorder %v2524, 0.0
    %vm2632 = vcmp.ge.f32.partialorder %v2526, 0.0
    %v2633 = vsel %vm2629, %v2366, %v2621
    %v2634 = vsel %vm2630, %v2367, %v2622
    %v2635 = vsel %vm2631, %v2368, %v2623
    %v2636 = vsel %vm2632, %v2369, %v2624
    %v2637 = vmul.f32 %v2633, 0.8
    %v2638 = vmul.f32 %v2634, 0.8
    %v2639 = vmul.f32 %v2635, 0.8
    %v2640 = vmul.f32 %v2636, 0.8
    %v2641 = vadd.f32 %v2625, %v2637
    %v2642 = vadd.f32 %v2626, %v2638
    %v2643 = vadd.f32 %v2627, %v2639
    %v2644 = vadd.f32 %v2628, %v2640
    %v2645 = vld [vmem:[#allocation8] sm:$0xff]
    %v2646 = vld [vmem:[#allocation8 + $0x8] sm:$0xff]
    %v2647 = vld [vmem:[#allocation8 + $0x10] sm:$0xff]
    %v2648 = vld [vmem:[#allocation8 + $0x18] sm:$0xff]
    %v2649 = vld [vmem:[#allocation8 + $0x20] sm:$0xff]
    %v2650 = vld [vmem:[#allocation8 + $0x28] sm:$0xff]
    %v2651 = vld [vmem:[#allocation8 + $0x30] sm:$0xff]
    %v2652 = vld [vmem:[#allocation8 + $0x38] sm:$0xff]
    %v2653 = vld [vmem:[#allocation8 + $0x40] sm:$0xff]
    %v2654 = vld [vmem:[#allocation8 + $0x48] sm:$0xff]
    %v2655 = vld [vmem:[#allocation8 + $0x50] sm:$0xff]
    %v2656 = vld [vmem:[#allocation8 + $0x58] sm:$0xff]
    %v2657 = vld [vmem:[#allocation8 + $0x60] sm:$0xff]
    %v2658 = vld [vmem:[#allocation8 + $0x68] sm:$0xff]
    %v2659 = vld [vmem:[#allocation8 + $0x70] sm:$0xff]
    %v2660 = vld [vmem:[#allocation8 + $0x78] sm:$0xff]
    %v2661 = vld [vmem:[#allocation8 + $0x80] sm:$0xff]
    %v2662 = vld [vmem:[#allocation8 + $0x88] sm:$0xff]
    %v2663 = vld [vmem:[#allocation8 + $0x90] sm:$0xff]
    %v2664 = vld [vmem:[#allocation8 + $0x98] sm:$0xff]
    %v2665 = vld [vmem:[#allocation8 + $0xa0] sm:$0xff]
    %v2666 = vld [vmem:[#allocation8 + $0xa8] sm:$0xff]
    %v2667 = vld [vmem:[#allocation8 + $0xb0] sm:$0xff]
    %v2668 = vld [vmem:[#allocation8 + $0xb8] sm:$0xff]
    %v2669 = vld [vmem:[#allocation8 + $0xc0] sm:$0xff]
    %v2670 = vld [vmem:[#allocation8 + $0xc8] sm:$0xff]
    %v2671 = vld [vmem:[#allocation8 + $0xd0] sm:$0xff]
    %v2672 = vld [vmem:[#allocation8 + $0xd8] sm:$0xff]
    %v2673 = vld [vmem:[#allocation8 + $0xe0] sm:$0xff]
    %v2674 = vld [vmem:[#allocation8 + $0xe8] sm:$0xff]
    %v2675 = vld [vmem:[#allocation8 + $0xf0] sm:$0xff]
    %v2676 = vld [vmem:[#allocation8 + $0xf8] sm:$0xff]
    %v2677 = vld [vmem:[#allocation8 + $0x100] sm:$0xff]
    %v2678 = vld [vmem:[#allocation8 + $0x108] sm:$0xff]
    %v2679 = vld [vmem:[#allocation8 + $0x110] sm:$0xff]
    %v2680 = vld [vmem:[#allocation8 + $0x118] sm:$0xff]
    %v2681 = vld [vmem:[#allocation8 + $0x120] sm:$0xff]
    %v2682 = vld [vmem:[#allocation8 + $0x128] sm:$0xff]
    %v2683 = vld [vmem:[#allocation8 + $0x130] sm:$0xff]
    %v2684 = vld [vmem:[#allocation8 + $0x138] sm:$0xff]
    %v2685 = vld [vmem:[#allocation8 + $0x140] sm:$0xff]
    %v2686 = vld [vmem:[#allocation8 + $0x148] sm:$0xff]
    %v2687 = vld [vmem:[#allocation8 + $0x150] sm:$0xff]
    %v2688 = vld [vmem:[#allocation8 + $0x158] sm:$0xff]
    %v2689 = vld [vmem:[#allocation8 + $0x160] sm:$0xff]
    %v2690 = vld [vmem:[#allocation8 + $0x168] sm:$0xff]
    %v2691 = vld [vmem:[#allocation8 + $0x170] sm:$0xff]
    %v2692 = vld [vmem:[#allocation8 + $0x178] sm:$0xff]
    %v2693 = vld [vmem:[#allocation8 + $0x180] sm:$0xff]
    %v2694 = vld [vmem:[#allocation8 + $0x188] sm:$0xff]
    %v2695 = vld [vmem:[#allocation8 + $0x190] sm:$0xff]
    %v2696 = vld [vmem:[#allocation8 + $0x198] sm:$0xff]
    %v2697 = vld [vmem:[#allocation8 + $0x1a0] sm:$0xff]
    %v2698 = vld [vmem:[#allocation8 + $0x1a8] sm:$0xff]
    %v2699 = vld [vmem:[#allocation8 + $0x1b0] sm:$0xff]
    %v2700 = vld [vmem:[#allocation8 + $0x1b8] sm:$0xff]
    %v2701 = vld [vmem:[#allocation8 + $0x1c0] sm:$0xff]
    %v2702 = vld [vmem:[#allocation8 + $0x1c8] sm:$0xff]
    %v2703 = vld [vmem:[#allocation8 + $0x1d0] sm:$0xff]
    %v2704 = vld [vmem:[#allocation8 + $0x1d8] sm:$0xff]
    %v2705 = vld [vmem:[#allocation8 + $0x1e0] sm:$0xff]
    %v2706 = vld [vmem:[#allocation8 + $0x1e8] sm:$0xff]
    %v2707 = vld [vmem:[#allocation8 + $0x1f0] sm:$0xff]
    %v2708 = vld [vmem:[#allocation8 + $0x1f8] sm:$0xff]
    %v2709 = vld [vmem:[#allocation8 + $0x200] sm:$0xff]
    %v2710 = vld [vmem:[#allocation8 + $0x208] sm:$0xff]
    %v2711 = vld [vmem:[#allocation8 + $0x210] sm:$0xff]
    %v2712 = vld [vmem:[#allocation8 + $0x218] sm:$0xff]
    %v2713 = vld [vmem:[#allocation8 + $0x220] sm:$0xff]
    %v2714 = vld [vmem:[#allocation8 + $0x228] sm:$0xff]
    %v2715 = vld [vmem:[#allocation8 + $0x230] sm:$0xff]
    %v2716 = vld [vmem:[#allocation8 + $0x238] sm:$0xff]
    %v2717 = vld [vmem:[#allocation8 + $0x240] sm:$0xff]
    %v2718 = vld [vmem:[#allocation8 + $0x248] sm:$0xff]
    %v2719 = vld [vmem:[#allocation8 + $0x250] sm:$0xff]
    %v2720 = vld [vmem:[#allocation8 + $0x258] sm:$0xff]
    %v2721 = vld [vmem:[#allocation8 + $0x260] sm:$0xff]
    %v2722 = vld [vmem:[#allocation8 + $0x268] sm:$0xff]
    %v2723 = vld [vmem:[#allocation8 + $0x270] sm:$0xff]
    %v2724 = vld [vmem:[#allocation8 + $0x278] sm:$0xff]
    %v2725 = vld [vmem:[#allocation8 + $0x280] sm:$0xff]
    %v2726 = vld [vmem:[#allocation8 + $0x288] sm:$0xff]
    %v2727 = vld [vmem:[#allocation8 + $0x290] sm:$0xff]
    %v2728 = vld [vmem:[#allocation8 + $0x298] sm:$0xff]
    %v2729 = vld [vmem:[#allocation8 + $0x2a0] sm:$0xff]
    %v2730 = vld [vmem:[#allocation8 + $0x2a8] sm:$0xff]
    %v2731 = vld [vmem:[#allocation8 + $0x2b0] sm:$0xff]
    %v2732 = vld [vmem:[#allocation8 + $0x2b8] sm:$0xff]
    %v2733 = vld [vmem:[#allocation8 + $0x2c0] sm:$0xff]
    %v2734 = vld [vmem:[#allocation8 + $0x2c8] sm:$0xff]
    %v2735 = vld [vmem:[#allocation8 + $0x2d0] sm:$0xff]
    %v2736 = vld [vmem:[#allocation8 + $0x2d8] sm:$0xff]
    %v2737 = vld [vmem:[#allocation8 + $0x2e0] sm:$0xff]
    %v2738 = vld [vmem:[#allocation8 + $0x2e8] sm:$0xff]
    %v2739 = vld [vmem:[#allocation8 + $0x2f0] sm:$0xff]
    %v2740 = vld [vmem:[#allocation8 + $0x2f8] sm:$0xff]
    %v2741 = vld [vmem:[#allocation8 + $0x300] sm:$0xff]
    %v2742 = vld [vmem:[#allocation8 + $0x308] sm:$0xff]
    %v2743 = vld [vmem:[#allocation8 + $0x310] sm:$0xff]
    %v2744 = vld [vmem:[#allocation8 + $0x318] sm:$0xff]
    %v2745 = vld [vmem:[#allocation8 + $0x320] sm:$0xff]
    %v2746 = vld [vmem:[#allocation8 + $0x328] sm:$0xff]
    %v2747 = vld [vmem:[#allocation8 + $0x330] sm:$0xff]
    %v2748 = vld [vmem:[#allocation8 + $0x338] sm:$0xff]
    %v2749 = vld [vmem:[#allocation8 + $0x340] sm:$0xff]
    %v2750 = vld [vmem:[#allocation8 + $0x348] sm:$0xff]
    %v2751 = vld [vmem:[#allocation8 + $0x350] sm:$0xff]
    %v2752 = vld [vmem:[#allocation8 + $0x358] sm:$0xff]
    %v2753 = vld [vmem:[#allocation8 + $0x360] sm:$0xff]
    %v2754 = vld [vmem:[#allocation8 + $0x368] sm:$0xff]
    %v2755 = vld [vmem:[#allocation8 + $0x370] sm:$0xff]
    %v2756 = vld [vmem:[#allocation8 + $0x378] sm:$0xff]
    %v2757 = vld [vmem:[#allocation8 + $0x380] sm:$0xff]
    %v2758 = vld [vmem:[#allocation8 + $0x388] sm:$0xff]
    %v2759 = vld [vmem:[#allocation8 + $0x390] sm:$0xff]
    %v2760 = vld [vmem:[#allocation8 + $0x398] sm:$0xff]
    %v2761 = vld [vmem:[#allocation8 + $0x3a0] sm:$0xff]
    %v2762 = vld [vmem:[#allocation8 + $0x3a8] sm:$0xff]
    %v2763 = vld [vmem:[#allocation8 + $0x3b0] sm:$0xff]
    %v2764 = vld [vmem:[#allocation8 + $0x3b8] sm:$0xff]
    %v2765 = vld [vmem:[#allocation8 + $0x3c0] sm:$0xff]
    %v2766 = vld [vmem:[#allocation8 + $0x3c8] sm:$0xff]
    %v2767 = vld [vmem:[#allocation8 + $0x3d0] sm:$0xff]
    %v2768 = vld [vmem:[#allocation8 + $0x3d8] sm:$0xff]
    %v2769 = vld [vmem:[#allocation8 + $0x3e0] sm:$0xff]
    %v2770 = vld [vmem:[#allocation8 + $0x3e8] sm:$0xff]
    %v2771 = vld [vmem:[#allocation8 + $0x3f0] sm:$0xff]
    %v2772 = vld [vmem:[#allocation8 + $0x3f8] sm:$0xff]
    %v2773 = vld [vmem:[#allocation8 + $0x400] sm:$0xff]
    %v2774 = vld [vmem:[#allocation8 + $0x408] sm:$0xff]
    %v2775 = vld [vmem:[#allocation8 + $0x410] sm:$0xff]
    %v2776 = vld [vmem:[#allocation8 + $0x418] sm:$0xff]
    %v2777 = vld [vmem:[#allocation8 + $0x420] sm:$0xff]
    %v2778 = vld [vmem:[#allocation8 + $0x428] sm:$0xff]
    %v2779 = vld [vmem:[#allocation8 + $0x430] sm:$0xff]
    %v2780 = vld [vmem:[#allocation8 + $0x438] sm:$0xff]
    %v2781 = vld [vmem:[#allocation8 + $0x440] sm:$0xff]
    %v2782 = vld [vmem:[#allocation8 + $0x448] sm:$0xff]
    %v2783 = vld [vmem:[#allocation8 + $0x450] sm:$0xff]
    %v2784 = vld [vmem:[#allocation8 + $0x458] sm:$0xff]
    %v2785 = vld [vmem:[#allocation8 + $0x460] sm:$0xff]
    %v2786 = vld [vmem:[#allocation8 + $0x468] sm:$0xff]
    %v2787 = vld [vmem:[#allocation8 + $0x470] sm:$0xff]
    %v2788 = vld [vmem:[#allocation8 + $0x478] sm:$0xff]
    %v2789 = vld [vmem:[#allocation8 + $0x480] sm:$0xff]
    %v2790 = vld [vmem:[#allocation8 + $0x488] sm:$0xff]
    %v2791 = vld [vmem:[#allocation8 + $0x490] sm:$0xff]
    %v2792 = vld [vmem:[#allocation8 + $0x498] sm:$0xff]
    %v2793 = vld [vmem:[#allocation8 + $0x4a0] sm:$0xff]
    %v2794 = vld [vmem:[#allocation8 + $0x4a8] sm:$0xff]
    %v2795 = vld [vmem:[#allocation8 + $0x4b0] sm:$0xff]
    %v2796 = vld [vmem:[#allocation8 + $0x4b8] sm:$0xff]
    %v2797 = vld [vmem:[#allocation8 + $0x4c0] sm:$0xff]
    %v2798 = vld [vmem:[#allocation8 + $0x4c8] sm:$0xff]
    %v2799 = vld [vmem:[#allocation8 + $0x4d0] sm:$0xff]
    %v2800 = vld [vmem:[#allocation8 + $0x4d8] sm:$0xff]
    %v2801 = vld [vmem:[#allocation8 + $0x4e0] sm:$0xff]
    %v2802 = vld [vmem:[#allocation8 + $0x4e8] sm:$0xff]
    %v2803 = vld [vmem:[#allocation8 + $0x4f0] sm:$0xff]
    %v2804 = vld [vmem:[#allocation8 + $0x4f8] sm:$0xff]
    %v2805 = vld [vmem:[#allocation8 + $0x500] sm:$0xff]
    %v2806 = vld [vmem:[#allocation8 + $0x508] sm:$0xff]
    %v2807 = vld [vmem:[#allocation8 + $0x510] sm:$0xff]
    %v2808 = vld [vmem:[#allocation8 + $0x518] sm:$0xff]
    %v2809 = vld [vmem:[#allocation8 + $0x520] sm:$0xff]
    %v2810 = vld [vmem:[#allocation8 + $0x528] sm:$0xff]
    %v2811 = vld [vmem:[#allocation8 + $0x530] sm:$0xff]
    %v2812 = vld [vmem:[#allocation8 + $0x538] sm:$0xff]
    %v2813 = vld [vmem:[#allocation8 + $0x540] sm:$0xff]
    %v2814 = vld [vmem:[#allocation8 + $0x548] sm:$0xff]
    %v2815 = vld [vmem:[#allocation8 + $0x550] sm:$0xff]
    %v2816 = vld [vmem:[#allocation8 + $0x558] sm:$0xff]
    %v2817 = vld [vmem:[#allocation8 + $0x560] sm:$0xff]
    %v2818 = vld [vmem:[#allocation8 + $0x568] sm:$0xff]
    %v2819 = vld [vmem:[#allocation8 + $0x570] sm:$0xff]
    %v2820 = vld [vmem:[#allocation8 + $0x578] sm:$0xff]
    %v2821 = vld [vmem:[#allocation8 + $0x580] sm:$0xff]
    %v2822 = vld [vmem:[#allocation8 + $0x588] sm:$0xff]
    %v2823 = vld [vmem:[#allocation8 + $0x590] sm:$0xff]
    %v2824 = vld [vmem:[#allocation8 + $0x598] sm:$0xff]
    %v2825 = vld [vmem:[#allocation8 + $0x5a0] sm:$0xff]
    %v2826 = vld [vmem:[#allocation8 + $0x5a8] sm:$0xff]
    %v2827 = vld [vmem:[#allocation8 + $0x5b0] sm:$0xff]
    %v2828 = vld [vmem:[#allocation8 + $0x5b8] sm:$0xff]
    %v2829 = vld [vmem:[#allocation8 + $0x5c0] sm:$0xff]
    %v2830 = vld [vmem:[#allocation8 + $0x5c8] sm:$0xff]
    %v2831 = vld [vmem:[#allocation8 + $0x5d0] sm:$0xff]
    %v2832 = vld [vmem:[#allocation8 + $0x5d8] sm:$0xff]
    %v2833 = vld [vmem:[#allocation8 + $0x5e0] sm:$0xff]
    %v2834 = vld [vmem:[#allocation8 + $0x5e8] sm:$0xff]
    %v2835 = vld [vmem:[#allocation8 + $0x5f0] sm:$0xff]
    %v2836 = vld [vmem:[#allocation8 + $0x5f8] sm:$0xff]
    %v2837 = vld [vmem:[#allocation8 + $0x600] sm:$0xff]
    %v2838 = vld [vmem:[#allocation8 + $0x608] sm:$0xff]
    %v2839 = vld [vmem:[#allocation8 + $0x610] sm:$0xff]
    %v2840 = vld [vmem:[#allocation8 + $0x618] sm:$0xff]
    %v2841 = vld [vmem:[#allocation8 + $0x620] sm:$0xff]
    %v2842 = vld [vmem:[#allocation8 + $0x628] sm:$0xff]
    %v2843 = vld [vmem:[#allocation8 + $0x630] sm:$0xff]
    %v2844 = vld [vmem:[#allocation8 + $0x638] sm:$0xff]
    %v2845 = vld [vmem:[#allocation8 + $0x640] sm:$0xff]
    %v2846 = vld [vmem:[#allocation8 + $0x648] sm:$0xff]
    %v2847 = vld [vmem:[#allocation8 + $0x650] sm:$0xff]
    %v2848 = vld [vmem:[#allocation8 + $0x658] sm:$0xff]
    %v2849 = vld [vmem:[#allocation8 + $0x660] sm:$0xff]
    %v2850 = vld [vmem:[#allocation8 + $0x668] sm:$0xff]
    %v2851 = vld [vmem:[#allocation8 + $0x670] sm:$0xff]
    %v2852 = vld [vmem:[#allocation8 + $0x678] sm:$0xff]
    %v2853 = vld [vmem:[#allocation8 + $0x680] sm:$0xff]
    %v2854 = vld [vmem:[#allocation8 + $0x688] sm:$0xff]
    %v2855 = vld [vmem:[#allocation8 + $0x690] sm:$0xff]
    %v2856 = vld [vmem:[#allocation8 + $0x698] sm:$0xff]
    %v2857 = vld [vmem:[#allocation8 + $0x6a0] sm:$0xff]
    %v2858 = vld [vmem:[#allocation8 + $0x6a8] sm:$0xff]
    %v2859 = vld [vmem:[#allocation8 + $0x6b0] sm:$0xff]
    %v2860 = vld [vmem:[#allocation8 + $0x6b8] sm:$0xff]
    %v2861 = vld [vmem:[#allocation8 + $0x6c0] sm:$0xff]
    %v2862 = vld [vmem:[#allocation8 + $0x6c8] sm:$0xff]
    %v2863 = vld [vmem:[#allocation8 + $0x6d0] sm:$0xff]
    %v2864 = vld [vmem:[#allocation8 + $0x6d8] sm:$0xff]
    %v2865 = vld [vmem:[#allocation8 + $0x6e0] sm:$0xff]
    %v2866 = vld [vmem:[#allocation8 + $0x6e8] sm:$0xff]
    %v2867 = vld [vmem:[#allocation8 + $0x6f0] sm:$0xff]
    %v2868 = vld [vmem:[#allocation8 + $0x6f8] sm:$0xff]
    %v2869 = vld [vmem:[#allocation8 + $0x700] sm:$0xff]
    %v2870 = vld [vmem:[#allocation8 + $0x708] sm:$0xff]
    %v2871 = vld [vmem:[#allocation8 + $0x710] sm:$0xff]
    %v2872 = vld [vmem:[#allocation8 + $0x718] sm:$0xff]
    %v2873 = vld [vmem:[#allocation8 + $0x720] sm:$0xff]
    %v2874 = vld [vmem:[#allocation8 + $0x728] sm:$0xff]
    %v2875 = vld [vmem:[#allocation8 + $0x730] sm:$0xff]
    %v2876 = vld [vmem:[#allocation8 + $0x738] sm:$0xff]
    %v2877 = vld [vmem:[#allocation8 + $0x740] sm:$0xff]
    %v2878 = vld [vmem:[#allocation8 + $0x748] sm:$0xff]
    %v2879 = vld [vmem:[#allocation8 + $0x750] sm:$0xff]
    %v2880 = vld [vmem:[#allocation8 + $0x758] sm:$0xff]
    %v2881 = vld [vmem:[#allocation8 + $0x760] sm:$0xff]
    %v2882 = vld [vmem:[#allocation8 + $0x768] sm:$0xff]
    %v2883 = vld [vmem:[#allocation8 + $0x770] sm:$0xff]
    %v2884 = vld [vmem:[#allocation8 + $0x778] sm:$0xff]
    %v2885 = vld [vmem:[#allocation8 + $0x780] sm:$0xff]
    %v2886 = vld [vmem:[#allocation8 + $0x788] sm:$0xff]
    %v2887 = vld [vmem:[#allocation8 + $0x790] sm:$0xff]
    %v2888 = vld [vmem:[#allocation8 + $0x798] sm:$0xff]
    %v2889 = vld [vmem:[#allocation8 + $0x7a0] sm:$0xff]
    %v2890 = vld [vmem:[#allocation8 + $0x7a8] sm:$0xff]
    %v2891 = vld [vmem:[#allocation8 + $0x7b0] sm:$0xff]
    %v2892 = vld [vmem:[#allocation8 + $0x7b8] sm:$0xff]
    %v2893 = vld [vmem:[#allocation8 + $0x7c0] sm:$0xff]
    %v2894 = vld [vmem:[#allocation8 + $0x7c8] sm:$0xff]
    %v2895 = vld [vmem:[#allocation8 + $0x7d0] sm:$0xff]
    %v2896 = vld [vmem:[#allocation8 + $0x7d8] sm:$0xff]
    %v2897 = vld [vmem:[#allocation8 + $0x7e0] sm:$0xff]
    %v2898 = vld [vmem:[#allocation8 + $0x7e8] sm:$0xff]
    %v2899 = vld [vmem:[#allocation8 + $0x7f0] sm:$0xff]
    %v2900 = vld [vmem:[#allocation8 + $0x7f8] sm:$0xff]
    %2901 = vmatprep.subr.mxu0 %v2766
    %2902 = vmatpush1.msra.mxu0 %v2765
    %2903 = vmatprep.subr.mxu0 %v2758
    %2904 = vmatpush1.msra.mxu0 %v2757
    %2905 = vmatprep.subr.mxu0 %v2750
    %2906 = vmatpush1.msra.mxu0 %v2749
    %2907 = vmatprep.subr.mxu0 %v2742
    %2908 = vmatpush1.msra.mxu0 %v2741
    %2909 = vmatprep.subr.mxu0 %v2734
    %2910 = vmatpush1.msra.mxu0 %v2733
    %2911 = vmatprep.subr.mxu0 %v2726
    %2912 = vmatpush1.msra.mxu0 %v2725
    %2913 = vmatprep.subr.mxu0 %v2718
    %2914 = vmatpush1.msra.mxu0 %v2717
    %2915 = vmatprep.subr.mxu0 %v2710
    %2916 = vmatpush1.msra.mxu0 %v2709
    %2917 = vmatprep.subr.mxu0 %v2702
    %2918 = vmatpush1.msra.mxu0 %v2701
    %2919 = vmatprep.subr.mxu0 %v2694
    %2920 = vmatpush1.msra.mxu0 %v2693
    %2921 = vmatprep.subr.mxu0 %v2686
    %2922 = vmatpush1.msra.mxu0 %v2685
    %2923 = vmatprep.subr.mxu0 %v2678
    %2924 = vmatpush1.msra.mxu0 %v2677
    %2925 = vmatprep.subr.mxu0 %v2670
    %2926 = vmatpush1.msra.mxu0 %v2669
    %2927 = vmatprep.subr.mxu0 %v2662
    %2928 = vmatpush1.msra.mxu0 %v2661
    %2929 = vmatprep.subr.mxu0 %v2654
    %2930 = vmatpush1.msra.mxu0 %v2653
    %2931 = vmatprep.subr.mxu0 %v2646
    %2932 = vmatpush1.msra.mxu0 %v2645
    %2933 = vmatprep.subr.mxu0 %v2894
    %2934 = vmatpush2.msra.mxu0 %v2893
    %2935 = vmatprep.subr.mxu0 %v2886
    %2936 = vmatpush2.msra.mxu0 %v2885
    %2937 = vmatprep.subr.mxu0 %v2878
    %2938 = vmatpush2.msra.mxu0 %v2877
    %2939 = vmatprep.subr.mxu0 %v2870
    %2940 = vmatpush2.msra.mxu0 %v2869
    %2941 = vmatprep.subr.mxu0 %v2862
    %2942 = vmatpush2.msra.mxu0 %v2861
    %2943 = vmatprep.subr.mxu0 %v2854
    %2944 = vmatpush2.msra.mxu0 %v2853
    %2945 = vmatprep.subr.mxu0 %v2846
    %2946 = vmatpush2.msra.mxu0 %v2845
    %2947 = vmatprep.subr.mxu0 %v2838
    %2948 = vmatpush2.msra.mxu0 %v2837
    %2949 = vmatprep.subr.mxu0 %v2830
    %2950 = vmatpush2.msra.mxu0 %v2829
    %2951 = vmatprep.subr.mxu0 %v2822
    %2952 = vmatpush2.msra.mxu0 %v2821
    %2953 = vmatprep.subr.mxu0 %v2814
    %2954 = vmatpush2.msra.mxu0 %v2813
    %2955 = vmatprep.subr.mxu0 %v2806
    %2956 = vmatpush2.msra.mxu0 %v2805
    %2957 = vmatprep.subr.mxu0 %v2798
    %2958 = vmatpush2.msra.mxu0 %v2797
    %2959 = vmatprep.subr.mxu0 %v2790
    %2960 = vmatpush2.msra.mxu0 %v2789
    %2961 = vmatprep.subr.mxu0 %v2782
    %2962 = vmatpush2.msra.mxu0 %v2781
    %2963 = vmatprep.subr.mxu0 %v2774
    %2964 = vmatpush2.msra.mxu0 %v2773
    %2965 = vmatprep.mubr.f32.mxu0 %v2642
    %2966 = vmatmul.mubr.f32.gmra.mxu0 %v2641
    %v2967 = vpop.f32.mrf.mxu0
    %v2968 = vadd.f32 0.0, %v2967
    %v2969 = vpop.f32.mrf.mxu0
    %v2970 = vadd.f32 0.0, %v2969
    %2971 = vmatprep.mubr.f32.mxu0 %v2644
    %2972 = vmatmul.mubr.f32.gmra.mxu0 %v2643
    %v2973 = vpop.f32.mrf.mxu0
    %v2974 = vadd.f32 0.0, %v2973
    %v2975 = vpop.f32.mrf.mxu0
    %v2976 = vadd.f32 0.0, %v2975
    %2977 = vdwg.mxu0
    %2978 = vmatprep.subr.mxu0 %v2768
    %2979 = vmatpush1.msra.mxu0 %v2767
    %2980 = vmatprep.subr.mxu0 %v2760
    %2981 = vmatpush1.msra.mxu0 %v2759
    %2982 = vmatprep.subr.mxu0 %v2752
    %2983 = vmatpush1.msra.mxu0 %v2751
    %2984 = vmatprep.subr.mxu0 %v2744
    %2985 = vmatpush1.msra.mxu0 %v2743
    %2986 = vmatprep.subr.mxu0 %v2736
    %2987 = vmatpush1.msra.mxu0 %v2735
    %2988 = vmatprep.subr.mxu0 %v2728
    %2989 = vmatpush1.msra.mxu0 %v2727
    %2990 = vmatprep.subr.mxu0 %v2720
    %2991 = vmatpush1.msra.mxu0 %v2719
    %2992 = vmatprep.subr.mxu0 %v2712
    %2993 = vmatpush1.msra.mxu0 %v2711
    %2994 = vmatprep.subr.mxu0 %v2704
    %2995 = vmatpush1.msra.mxu0 %v2703
    %2996 = vmatprep.subr.mxu0 %v2696
    %2997 = vmatpush1.msra.mxu0 %v2695
    %2998 = vmatprep.subr.mxu0 %v2688
    %2999 = vmatpush1.msra.mxu0 %v2687
    %3000 = vmatprep.subr.mxu0 %v2680
    %3001 = vmatpush1.msra.mxu0 %v2679
    %3002 = vmatprep.subr.mxu0 %v2672
    %3003 = vmatpush1.msra.mxu0 %v2671
    %3004 = vmatprep.subr.mxu0 %v2664
    %3005 = vmatpush1.msra.mxu0 %v2663
    %3006 = vmatprep.subr.mxu0 %v2656
    %3007 = vmatpush1.msra.mxu0 %v2655
    %3008 = vmatprep.subr.mxu0 %v2648
    %3009 = vmatpush1.msra.mxu0 %v2647
    %3010 = vmatprep.subr.mxu0 %v2896
    %3011 = vmatpush2.msra.mxu0 %v2895
    %3012 = vmatprep.subr.mxu0 %v2888
    %3013 = vmatpush2.msra.mxu0 %v2887
    %3014 = vmatprep.subr.mxu0 %v2880
    %3015 = vmatpush2.msra.mxu0 %v2879
    %3016 = vmatprep.subr.mxu0 %v2872
    %3017 = vmatpush2.msra.mxu0 %v2871
    %3018 = vmatprep.subr.mxu0 %v2864
    %3019 = vmatpush2.msra.mxu0 %v2863
    %3020 = vmatprep.subr.mxu0 %v2856
    %3021 = vmatpush2.msra.mxu0 %v2855
    %3022 = vmatprep.subr.mxu0 %v2848
    %3023 = vmatpush2.msra.mxu0 %v2847
    %3024 = vmatprep.subr.mxu0 %v2840
    %3025 = vmatpush2.msra.mxu0 %v2839
    %3026 = vmatprep.subr.mxu0 %v2832
    %3027 = vmatpush2.msra.mxu0 %v2831
    %3028 = vmatprep.subr.mxu0 %v2824
    %3029 = vmatpush2.msra.mxu0 %v2823
    %3030 = vmatprep.subr.mxu0 %v2816
    %3031 = vmatpush2.msra.mxu0 %v2815
    %3032 = vmatprep.subr.mxu0 %v2808
    %3033 = vmatpush2.msra.mxu0 %v2807
    %3034 = vmatprep.subr.mxu0 %v2800
    %3035 = vmatpush2.msra.mxu0 %v2799
    %3036 = vmatprep.subr.mxu0 %v2792
    %3037 = vmatpush2.msra.mxu0 %v2791
    %3038 = vmatprep.subr.mxu0 %v2784
    %3039 = vmatpush2.msra.mxu0 %v2783
    %3040 = vmatprep.subr.mxu0 %v2776
    %3041 = vmatpush2.msra.mxu0 %v2775
    %3042 = vmatprep.mubr.f32.mxu0 %v2642
    %3043 = vmatmul.mubr.f32.gmra.mxu0 %v2641
    %v3044 = vpop.f32.mrf.mxu0
    %v3045 = vadd.f32 0.0, %v3044
    %v3046 = vpop.f32.mrf.mxu0
    %v3047 = vadd.f32 0.0, %v3046
    %3048 = vmatprep.mubr.f32.mxu0 %v2644
    %3049 = vmatmul.mubr.f32.gmra.mxu0 %v2643
    %v3050 = vpop.f32.mrf.mxu0
    %v3051 = vadd.f32 0.0, %v3050
    %v3052 = vpop.f32.mrf.mxu0
    %v3053 = vadd.f32 0.0, %v3052
    %3054 = vdwg.mxu0
    %3055 = vmatprep.subr.mxu0 %v2770
    %3056 = vmatpush1.msra.mxu0 %v2769
    %3057 = vmatprep.subr.mxu0 %v2762
    %3058 = vmatpush1.msra.mxu0 %v2761
    %3059 = vmatprep.subr.mxu0 %v2754
    %3060 = vmatpush1.msra.mxu0 %v2753
    %3061 = vmatprep.subr.mxu0 %v2746
    %3062 = vmatpush1.msra.mxu0 %v2745
    %3063 = vmatprep.subr.mxu0 %v2738
    %3064 = vmatpush1.msra.mxu0 %v2737
    %3065 = vmatprep.subr.mxu0 %v2730
    %3066 = vmatpush1.msra.mxu0 %v2729
    %3067 = vmatprep.subr.mxu0 %v2722
    %3068 = vmatpush1.msra.mxu0 %v2721
    %3069 = vmatprep.subr.mxu0 %v2714
    %3070 = vmatpush1.msra.mxu0 %v2713
    %3071 = vmatprep.subr.mxu0 %v2706
    %3072 = vmatpush1.msra.mxu0 %v2705
    %3073 = vmatprep.subr.mxu0 %v2698
    %3074 = vmatpush1.msra.mxu0 %v2697
    %3075 = vmatprep.subr.mxu0 %v2690
    %3076 = vmatpush1.msra.mxu0 %v2689
    %3077 = vmatprep.subr.mxu0 %v2682
    %3078 = vmatpush1.msra.mxu0 %v2681
    %3079 = vmatprep.subr.mxu0 %v2674
    %3080 = vmatpush1.msra.mxu0 %v2673
    %3081 = vmatprep.subr.mxu0 %v2666
    %3082 = vmatpush1.msra.mxu0 %v2665
    %3083 = vmatprep.subr.mxu0 %v2658
    %3084 = vmatpush1.msra.mxu0 %v2657
    %3085 = vmatprep.subr.mxu0 %v2650
    %3086 = vmatpush1.msra.mxu0 %v2649
    %3087 = vmatprep.subr.mxu0 %v2898
    %3088 = vmatpush2.msra.mxu0 %v2897
    %3089 = vmatprep.subr.mxu0 %v2890
    %3090 = vmatpush2.msra.mxu0 %v2889
    %3091 = vmatprep.subr.mxu0 %v2882
    %3092 = vmatpush2.msra.mxu0 %v2881
    %3093 = vmatprep.subr.mxu0 %v2874
    %3094 = vmatpush2.msra.mxu0 %v2873
    %3095 = vmatprep.subr.mxu0 %v2866
    %3096 = vmatpush2.msra.mxu0 %v2865
    %3097 = vmatprep.subr.mxu0 %v2858
    %3098 = vmatpush2.msra.mxu0 %v2857
    %3099 = vmatprep.subr.mxu0 %v2850
    %3100 = vmatpush2.msra.mxu0 %v2849
    %3101 = vmatprep.subr.mxu0 %v2842
    %3102 = vmatpush2.msra.mxu0 %v2841
    %3103 = vmatprep.subr.mxu0 %v2834
    %3104 = vmatpush2.msra.mxu0 %v2833
    %3105 = vmatprep.subr.mxu0 %v2826
    %3106 = vmatpush2.msra.mxu0 %v2825
    %3107 = vmatprep.subr.mxu0 %v2818
    %3108 = vmatpush2.msra.mxu0 %v2817
    %3109 = vmatprep.subr.mxu0 %v2810
    %3110 = vmatpush2.msra.mxu0 %v2809
    %3111 = vmatprep.subr.mxu0 %v2802
    %3112 = vmatpush2.msra.mxu0 %v2801
    %3113 = vmatprep.subr.mxu0 %v2794
    %3114 = vmatpush2.msra.mxu0 %v2793
    %3115 = vmatprep.subr.mxu0 %v2786
    %3116 = vmatpush2.msra.mxu0 %v2785
    %3117 = vmatprep.subr.mxu0 %v2778
    %3118 = vmatpush2.msra.mxu0 %v2777
    %3119 = vmatprep.mubr.f32.mxu0 %v2642
    %3120 = vmatmul.mubr.f32.gmra.mxu0 %v2641
    %v3121 = vpop.f32.mrf.mxu0
    %v3122 = vadd.f32 0.0, %v3121
    %v3123 = vpop.f32.mrf.mxu0
    %v3124 = vadd.f32 0.0, %v3123
    %3125 = vmatprep.mubr.f32.mxu0 %v2644
    %3126 = vmatmul.mubr.f32.gmra.mxu0 %v2643
    %v3127 = vpop.f32.mrf.mxu0
    %v3128 = vadd.f32 0.0, %v3127
    %v3129 = vpop.f32.mrf.mxu0
    %v3130 = vadd.f32 0.0, %v3129
    %3131 = vdwg.mxu0
    %3132 = vmatprep.subr.mxu0 %v2772
    %3133 = vmatpush1.msra.mxu0 %v2771
    %3134 = vmatprep.subr.mxu0 %v2764
    %3135 = vmatpush1.msra.mxu0 %v2763
    %3136 = vmatprep.subr.mxu0 %v2756
    %3137 = vmatpush1.msra.mxu0 %v2755
    %3138 = vmatprep.subr.mxu0 %v2748
    %3139 = vmatpush1.msra.mxu0 %v2747
    %3140 = vmatprep.subr.mxu0 %v2740
    %3141 = vmatpush1.msra.mxu0 %v2739
    %3142 = vmatprep.subr.mxu0 %v2732
    %3143 = vmatpush1.msra.mxu0 %v2731
    %3144 = vmatprep.subr.mxu0 %v2724
    %3145 = vmatpush1.msra.mxu0 %v2723
    %3146 = vmatprep.subr.mxu0 %v2716
    %3147 = vmatpush1.msra.mxu0 %v2715
    %3148 = vmatprep.subr.mxu0 %v2708
    %3149 = vmatpush1.msra.mxu0 %v2707
    %3150 = vmatprep.subr.mxu0 %v2700
    %3151 = vmatpush1.msra.mxu0 %v2699
    %3152 = vmatprep.subr.mxu0 %v2692
    %3153 = vmatpush1.msra.mxu0 %v2691
    %3154 = vmatprep.subr.mxu0 %v2684
    %3155 = vmatpush1.msra.mxu0 %v2683
    %3156 = vmatprep.subr.mxu0 %v2676
    %3157 = vmatpush1.msra.mxu0 %v2675
    %3158 = vmatprep.subr.mxu0 %v2668
    %3159 = vmatpush1.msra.mxu0 %v2667
    %3160 = vmatprep.subr.mxu0 %v2660
    %3161 = vmatpush1.msra.mxu0 %v2659
    %3162 = vmatprep.subr.mxu0 %v2652
    %3163 = vmatpush1.msra.mxu0 %v2651
    %3164 = vmatprep.subr.mxu0 %v2900
    %3165 = vmatpush2.msra.mxu0 %v2899
    %3166 = vmatprep.subr.mxu0 %v2892
    %3167 = vmatpush2.msra.mxu0 %v2891
    %3168 = vmatprep.subr.mxu0 %v2884
    %3169 = vmatpush2.msra.mxu0 %v2883
    %3170 = vmatprep.subr.mxu0 %v2876
    %3171 = vmatpush2.msra.mxu0 %v2875
    %3172 = vmatprep.subr.mxu0 %v2868
    %3173 = vmatpush2.msra.mxu0 %v2867
    %3174 = vmatprep.subr.mxu0 %v2860
    %3175 = vmatpush2.msra.mxu0 %v2859
    %3176 = vmatprep.subr.mxu0 %v2852
    %3177 = vmatpush2.msra.mxu0 %v2851
    %3178 = vmatprep.subr.mxu0 %v2844
    %3179 = vmatpush2.msra.mxu0 %v2843
    %3180 = vmatprep.subr.mxu0 %v2836
    %3181 = vmatpush2.msra.mxu0 %v2835
    %3182 = vmatprep.subr.mxu0 %v2828
    %3183 = vmatpush2.msra.mxu0 %v2827
    %3184 = vmatprep.subr.mxu0 %v2820
    %3185 = vmatpush2.msra.mxu0 %v2819
    %3186 = vmatprep.subr.mxu0 %v2812
    %3187 = vmatpush2.msra.mxu0 %v2811
    %3188 = vmatprep.subr.mxu0 %v2804
    %3189 = vmatpush2.msra.mxu0 %v2803
    %3190 = vmatprep.subr.mxu0 %v2796
    %3191 = vmatpush2.msra.mxu0 %v2795
    %3192 = vmatprep.subr.mxu0 %v2788
    %3193 = vmatpush2.msra.mxu0 %v2787
    %3194 = vmatprep.subr.mxu0 %v2780
    %3195 = vmatpush2.msra.mxu0 %v2779
    %3196 = vmatprep.mubr.f32.mxu0 %v2642
    %3197 = vmatmul.mubr.f32.gmra.mxu0 %v2641
    %v3198 = vpop.f32.mrf.mxu0
    %v3199 = vadd.f32 0.0, %v3198
    %v3200 = vpop.f32.mrf.mxu0
    %v3201 = vadd.f32 0.0, %v3200
    %3202 = vmatprep.mubr.f32.mxu0 %v2644
    %3203 = vmatmul.mubr.f32.gmra.mxu0 %v2643
    %v3204 = vpop.f32.mrf.mxu0
    %v3205 = vadd.f32 0.0, %v3204
    %v3206 = vpop.f32.mrf.mxu0
    %v3207 = vadd.f32 0.0, %v3206
    %3208 = vdwg.mxu0
    %v3209 = vld [vmem:[%s14] sm:$0xff]
    %v3210 = vld [vmem:[%s14 + $0x8] sm:$0xff]
    %v3211 = vld [vmem:[%s14 + $0x10] sm:$0xff]
    %v3212 = vld [vmem:[%s14 + $0x18] sm:$0xff]
    %v3214 = vsel %vm1226, %v3209, 0
    %v3217 = vsel %vm1226, %v3210, 0
    %v3220 = vsel %vm1226, %v3211, 0
    %v3223 = vsel %vm1226, %v3212, 0
    %3225 = vmatprep.subr.mxu0 0.0
    %3226 = vmatpush1.msra.mxu0 0.0
    %3227 = vmatprep.subr.mxu0 0.0
    %3228 = vmatpush1.msra.mxu0 0.0
    %3229 = vmatprep.subr.mxu0 0.0
    %3230 = vmatpush1.msra.mxu0 0.0
    %3231 = vmatprep.subr.mxu0 0.0
    %3232 = vmatpush1.msra.mxu0 0.0
    %3233 = vmatprep.subr.mxu0 0.0
    %3234 = vmatpush1.msra.mxu0 0.0
    %3235 = vmatprep.subr.mxu0 0.0
    %3236 = vmatpush1.msra.mxu0 0.0
    %3237 = vmatprep.subr.mxu0 0.0
    %3238 = vmatpush1.msra.mxu0 0.0
    %3239 = vmatprep.subr.mxu0 0.0
    %3240 = vmatpush1.msra.mxu0 0.0
    %3241 = vmatprep.subr.mxu0 0.0
    %3242 = vmatpush1.msra.mxu0 0.0
    %3243 = vmatprep.subr.mxu0 0.0
    %3244 = vmatpush1.msra.mxu0 0.0
    %3245 = vmatprep.subr.mxu0 0.0
    %3246 = vmatpush1.msra.mxu0 0.0
    %3247 = vmatprep.subr.mxu0 0.0
    %3248 = vmatpush1.msra.mxu0 0.0
    %3249 = vmatprep.subr.mxu0 0.0
    %3250 = vmatpush1.msra.mxu0 0.0
    %3251 = vmatprep.subr.mxu0 0.0
    %3252 = vmatpush1.msra.mxu0 0.0
    %3253 = vmatprep.subr.mxu0 %v2976
    %3254 = vmatpush1.msra.mxu0 %v2974
    %3255 = vmatprep.subr.mxu0 %v2970
    %3256 = vmatpush1.msra.mxu0 %v2968
    %3257 = vmatprep.subr.mxu0 0.0
    %3258 = vmatpush2.msra.mxu0 0.0
    %3259 = vmatprep.subr.mxu0 0.0
    %3260 = vmatpush2.msra.mxu0 0.0
    %3261 = vmatprep.subr.mxu0 0.0
    %3262 = vmatpush2.msra.mxu0 0.0
    %3263 = vmatprep.subr.mxu0 0.0
    %3264 = vmatpush2.msra.mxu0 0.0
    %3265 = vmatprep.subr.mxu0 0.0
    %3266 = vmatpush2.msra.mxu0 0.0
    %3267 = vmatprep.subr.mxu0 0.0
    %3268 = vmatpush2.msra.mxu0 0.0
    %3269 = vmatprep.subr.mxu0 0.0
    %3270 = vmatpush2.msra.mxu0 0.0
    %3271 = vmatprep.subr.mxu0 0.0
    %3272 = vmatpush2.msra.mxu0 0.0
    %3273 = vmatprep.subr.mxu0 0.0
    %3274 = vmatpush2.msra.mxu0 0.0
    %3275 = vmatprep.subr.mxu0 0.0
    %3276 = vmatpush2.msra.mxu0 0.0
    %3277 = vmatprep.subr.mxu0 0.0
    %3278 = vmatpush2.msra.mxu0 0.0
    %3279 = vmatprep.subr.mxu0 0.0
    %3280 = vmatpush2.msra.mxu0 0.0
    %3281 = vmatprep.subr.mxu0 0.0
    %3282 = vmatpush2.msra.mxu0 0.0
    %3283 = vmatprep.subr.mxu0 0.0
    %3284 = vmatpush2.msra.mxu0 0.0
    %3285 = vmatprep.subr.mxu0 0.0
    %3286 = vmatpush2.msra.mxu0 0.0
    %3287 = vmatprep.subr.mxu0 0.0
    %3288 = vmatpush2.msra.mxu0 0.0
    %3289 = vmatprep.mubr.f32.mxu0 0.0
    %3290 = vmatmul.mubr.f32.gmra.mxu0 %v3214
    %v3291 = vpop.f32.mrf.mxu0
    %v3292 = vadd.f32 0.0, %v3291
    %v3293 = vpop.f32.mrf.mxu0
    %v3294 = vadd.f32 0.0, %v3293
    %3295 = vmatprep.mubr.f32.mxu0 0.0
    %3296 = vmatmul.mubr.f32.gmra.mxu0 %v3217
    %v3297 = vpop.f32.mrf.mxu0
    %v3298 = vadd.f32 0.0, %v3297
    %v3299 = vpop.f32.mrf.mxu0
    %v3300 = vadd.f32 0.0, %v3299
    %3301 = vmatprep.mubr.f32.mxu0 0.0
    %3302 = vmatmul.mubr.f32.gmra.mxu0 %v3220
    %v3303 = vpop.f32.mrf.mxu0
    %v3304 = vadd.f32 0.0, %v3303
    %v3305 = vpop.f32.mrf.mxu0
    %v3306 = vadd.f32 0.0, %v3305
    %3307 = vmatprep.mubr.f32.mxu0 0.0
    %3308 = vmatmul.mubr.f32.gmra.mxu0 %v3223
    %v3309 = vpop.f32.mrf.mxu0
    %v3310 = vadd.f32 0.0, %v3309
    %v3311 = vpop.f32.mrf.mxu0
    %v3312 = vadd.f32 0.0, %v3311
    %3313 = vdwg.mxu0
    %3314 = vmatprep.subr.mxu0 0.0
    %3315 = vmatpush1.msra.mxu0 0.0
    %3316 = vmatprep.subr.mxu0 0.0
    %3317 = vmatpush1.msra.mxu0 0.0
    %3318 = vmatprep.subr.mxu0 0.0
    %3319 = vmatpush1.msra.mxu0 0.0
    %3320 = vmatprep.subr.mxu0 0.0
    %3321 = vmatpush1.msra.mxu0 0.0
    %3322 = vmatprep.subr.mxu0 0.0
    %3323 = vmatpush1.msra.mxu0 0.0
    %3324 = vmatprep.subr.mxu0 0.0
    %3325 = vmatpush1.msra.mxu0 0.0
    %3326 = vmatprep.subr.mxu0 0.0
    %3327 = vmatpush1.msra.mxu0 0.0
    %3328 = vmatprep.subr.mxu0 0.0
    %3329 = vmatpush1.msra.mxu0 0.0
    %3330 = vmatprep.subr.mxu0 0.0
    %3331 = vmatpush1.msra.mxu0 0.0
    %3332 = vmatprep.subr.mxu0 0.0
    %3333 = vmatpush1.msra.mxu0 0.0
    %3334 = vmatprep.subr.mxu0 0.0
    %3335 = vmatpush1.msra.mxu0 0.0
    %3336 = vmatprep.subr.mxu0 0.0
    %3337 = vmatpush1.msra.mxu0 0.0
    %3338 = vmatprep.subr.mxu0 0.0
    %3339 = vmatpush1.msra.mxu0 0.0
    %3340 = vmatprep.subr.mxu0 0.0
    %3341 = vmatpush1.msra.mxu0 0.0
    %3342 = vmatprep.subr.mxu0 %v3053
    %3343 = vmatpush1.msra.mxu0 %v3051
    %3344 = vmatprep.subr.mxu0 %v3047
    %3345 = vmatpush1.msra.mxu0 %v3045
    %3346 = vmatprep.subr.mxu0 0.0
    %3347 = vmatpush2.msra.mxu0 0.0
    %3348 = vmatprep.subr.mxu0 0.0
    %3349 = vmatpush2.msra.mxu0 0.0
    %3350 = vmatprep.subr.mxu0 0.0
    %3351 = vmatpush2.msra.mxu0 0.0
    %3352 = vmatprep.subr.mxu0 0.0
    %3353 = vmatpush2.msra.mxu0 0.0
    %3354 = vmatprep.subr.mxu0 0.0
    %3355 = vmatpush2.msra.mxu0 0.0
    %3356 = vmatprep.subr.mxu0 0.0
    %3357 = vmatpush2.msra.mxu0 0.0
    %3358 = vmatprep.subr.mxu0 0.0
    %3359 = vmatpush2.msra.mxu0 0.0
    %3360 = vmatprep.subr.mxu0 0.0
    %3361 = vmatpush2.msra.mxu0 0.0
    %3362 = vmatprep.subr.mxu0 0.0
    %3363 = vmatpush2.msra.mxu0 0.0
    %3364 = vmatprep.subr.mxu0 0.0
    %3365 = vmatpush2.msra.mxu0 0.0
    %3366 = vmatprep.subr.mxu0 0.0
    %3367 = vmatpush2.msra.mxu0 0.0
    %3368 = vmatprep.subr.mxu0 0.0
    %3369 = vmatpush2.msra.mxu0 0.0
    %3370 = vmatprep.subr.mxu0 0.0
    %3371 = vmatpush2.msra.mxu0 0.0
    %3372 = vmatprep.subr.mxu0 0.0
    %3373 = vmatpush2.msra.mxu0 0.0
    %3374 = vmatprep.subr.mxu0 0.0
    %3375 = vmatpush2.msra.mxu0 0.0
    %3376 = vmatprep.subr.mxu0 0.0
    %3377 = vmatpush2.msra.mxu0 0.0
    %3378 = vmatprep.mubr.f32.mxu0 0.0
    %3379 = vmatmul.mubr.f32.gmra.mxu0 %v3214
    %v3380 = vpop.f32.mrf.mxu0
    %v3381 = vadd.f32 0.0, %v3380
    %v3382 = vpop.f32.mrf.mxu0
    %v3383 = vadd.f32 0.0, %v3382
    %3384 = vmatprep.mubr.f32.mxu0 0.0
    %3385 = vmatmul.mubr.f32.gmra.mxu0 %v3217
    %v3386 = vpop.f32.mrf.mxu0
    %v3387 = vadd.f32 0.0, %v3386
    %v3388 = vpop.f32.mrf.mxu0
    %v3389 = vadd.f32 0.0, %v3388
    %3390 = vmatprep.mubr.f32.mxu0 0.0
    %3391 = vmatmul.mubr.f32.gmra.mxu0 %v3220
    %v3392 = vpop.f32.mrf.mxu0
    %v3393 = vadd.f32 0.0, %v3392
    %v3394 = vpop.f32.mrf.mxu0
    %v3395 = vadd.f32 0.0, %v3394
    %3396 = vmatprep.mubr.f32.mxu0 0.0
    %3397 = vmatmul.mubr.f32.gmra.mxu0 %v3223
    %v3398 = vpop.f32.mrf.mxu0
    %v3399 = vadd.f32 0.0, %v3398
    %v3400 = vpop.f32.mrf.mxu0
    %v3401 = vadd.f32 0.0, %v3400
    %3402 = vdwg.mxu0
    %3403 = vmatprep.subr.mxu0 0.0
    %3404 = vmatpush1.msra.mxu0 0.0
    %3405 = vmatprep.subr.mxu0 0.0
    %3406 = vmatpush1.msra.mxu0 0.0
    %3407 = vmatprep.subr.mxu0 0.0
    %3408 = vmatpush1.msra.mxu0 0.0
    %3409 = vmatprep.subr.mxu0 0.0
    %3410 = vmatpush1.msra.mxu0 0.0
    %3411 = vmatprep.subr.mxu0 0.0
    %3412 = vmatpush1.msra.mxu0 0.0
    %3413 = vmatprep.subr.mxu0 0.0
    %3414 = vmatpush1.msra.mxu0 0.0
    %3415 = vmatprep.subr.mxu0 0.0
    %3416 = vmatpush1.msra.mxu0 0.0
    %3417 = vmatprep.subr.mxu0 0.0
    %3418 = vmatpush1.msra.mxu0 0.0
    %3419 = vmatprep.subr.mxu0 0.0
    %3420 = vmatpush1.msra.mxu0 0.0
    %3421 = vmatprep.subr.mxu0 0.0
    %3422 = vmatpush1.msra.mxu0 0.0
    %3423 = vmatprep.subr.mxu0 0.0
    %3424 = vmatpush1.msra.mxu0 0.0
    %3425 = vmatprep.subr.mxu0 0.0
    %3426 = vmatpush1.msra.mxu0 0.0
    %3427 = vmatprep.subr.mxu0 0.0
    %3428 = vmatpush1.msra.mxu0 0.0
    %3429 = vmatprep.subr.mxu0 0.0
    %3430 = vmatpush1.msra.mxu0 0.0
    %3431 = vmatprep.subr.mxu0 %v3130
    %3432 = vmatpush1.msra.mxu0 %v3128
    %3433 = vmatprep.subr.mxu0 %v3124
    %3434 = vmatpush1.msra.mxu0 %v3122
    %3435 = vmatprep.subr.mxu0 0.0
    %3436 = vmatpush2.msra.mxu0 0.0
    %3437 = vmatprep.subr.mxu0 0.0
    %3438 = vmatpush2.msra.mxu0 0.0
    %3439 = vmatprep.subr.mxu0 0.0
    %3440 = vmatpush2.msra.mxu0 0.0
    %3441 = vmatprep.subr.mxu0 0.0
    %3442 = vmatpush2.msra.mxu0 0.0
    %3443 = vmatprep.subr.mxu0 0.0
    %3444 = vmatpush2.msra.mxu0 0.0
    %3445 = vmatprep.subr.mxu0 0.0
    %3446 = vmatpush2.msra.mxu0 0.0
    %3447 = vmatprep.subr.mxu0 0.0
    %3448 = vmatpush2.msra.mxu0 0.0
    %3449 = vmatprep.subr.mxu0 0.0
    %3450 = vmatpush2.msra.mxu0 0.0
    %3451 = vmatprep.subr.mxu0 0.0
    %3452 = vmatpush2.msra.mxu0 0.0
    %3453 = vmatprep.subr.mxu0 0.0
    %3454 = vmatpush2.msra.mxu0 0.0
    %3455 = vmatprep.subr.mxu0 0.0
    %3456 = vmatpush2.msra.mxu0 0.0
    %3457 = vmatprep.subr.mxu0 0.0
    %3458 = vmatpush2.msra.mxu0 0.0
    %3459 = vmatprep.subr.mxu0 0.0
    %3460 = vmatpush2.msra.mxu0 0.0
    %3461 = vmatprep.subr.mxu0 0.0
    %3462 = vmatpush2.msra.mxu0 0.0
    %3463 = vmatprep.subr.mxu0 0.0
    %3464 = vmatpush2.msra.mxu0 0.0
    %3465 = vmatprep.subr.mxu0 0.0
    %3466 = vmatpush2.msra.mxu0 0.0
    %3467 = vmatprep.mubr.f32.mxu0 0.0
    %3468 = vmatmul.mubr.f32.gmra.mxu0 %v3214
    %v3469 = vpop.f32.mrf.mxu0
    %v3470 = vadd.f32 0.0, %v3469
    %v3471 = vpop.f32.mrf.mxu0
    %v3472 = vadd.f32 0.0, %v3471
    %3473 = vmatprep.mubr.f32.mxu0 0.0
    %3474 = vmatmul.mubr.f32.gmra.mxu0 %v3217
    %v3475 = vpop.f32.mrf.mxu0
    %v3476 = vadd.f32 0.0, %v3475
    %v3477 = vpop.f32.mrf.mxu0
    %v3478 = vadd.f32 0.0, %v3477
    %3479 = vmatprep.mubr.f32.mxu0 0.0
    %3480 = vmatmul.mubr.f32.gmra.mxu0 %v3220
    %v3481 = vpop.f32.mrf.mxu0
    %v3482 = vadd.f32 0.0, %v3481
    %v3483 = vpop.f32.mrf.mxu0
    %v3484 = vadd.f32 0.0, %v3483
    %3485 = vmatprep.mubr.f32.mxu0 0.0
    %3486 = vmatmul.mubr.f32.gmra.mxu0 %v3223
    %v3487 = vpop.f32.mrf.mxu0
    %v3488 = vadd.f32 0.0, %v3487
    %v3489 = vpop.f32.mrf.mxu0
    %v3490 = vadd.f32 0.0, %v3489
    %3491 = vdwg.mxu0
    %3492 = vmatprep.subr.mxu0 0.0
    %3493 = vmatpush1.msra.mxu0 0.0
    %3494 = vmatprep.subr.mxu0 0.0
    %3495 = vmatpush1.msra.mxu0 0.0
    %3496 = vmatprep.subr.mxu0 0.0
    %3497 = vmatpush1.msra.mxu0 0.0
    %3498 = vmatprep.subr.mxu0 0.0
    %3499 = vmatpush1.msra.mxu0 0.0
    %3500 = vmatprep.subr.mxu0 0.0
    %3501 = vmatpush1.msra.mxu0 0.0
    %3502 = vmatprep.subr.mxu0 0.0
    %3503 = vmatpush1.msra.mxu0 0.0
    %3504 = vmatprep.subr.mxu0 0.0
    %3505 = vmatpush1.msra.mxu0 0.0
    %3506 = vmatprep.subr.mxu0 0.0
    %3507 = vmatpush1.msra.mxu0 0.0
    %3508 = vmatprep.subr.mxu0 0.0
    %3509 = vmatpush1.msra.mxu0 0.0
    %3510 = vmatprep.subr.mxu0 0.0
    %3511 = vmatpush1.msra.mxu0 0.0
    %3512 = vmatprep.subr.mxu0 0.0
    %3513 = vmatpush1.msra.mxu0 0.0
    %3514 = vmatprep.subr.mxu0 0.0
    %3515 = vmatpush1.msra.mxu0 0.0
    %3516 = vmatprep.subr.mxu0 0.0
    %3517 = vmatpush1.msra.mxu0 0.0
    %3518 = vmatprep.subr.mxu0 0.0
    %3519 = vmatpush1.msra.mxu0 0.0
    %3520 = vmatprep.subr.mxu0 %v3207
    %3521 = vmatpush1.msra.mxu0 %v3205
    %3522 = vmatprep.subr.mxu0 %v3201
    %3523 = vmatpush1.msra.mxu0 %v3199
    %3524 = vmatprep.subr.mxu0 0.0
    %3525 = vmatpush2.msra.mxu0 0.0
    %3526 = vmatprep.subr.mxu0 0.0
    %3527 = vmatpush2.msra.mxu0 0.0
    %3528 = vmatprep.subr.mxu0 0.0
    %3529 = vmatpush2.msra.mxu0 0.0
    %3530 = vmatprep.subr.mxu0 0.0
    %3531 = vmatpush2.msra.mxu0 0.0
    %3532 = vmatprep.subr.mxu0 0.0
    %3533 = vmatpush2.msra.mxu0 0.0
    %3534 = vmatprep.subr.mxu0 0.0
    %3535 = vmatpush2.msra.mxu0 0.0
    %3536 = vmatprep.subr.mxu0 0.0
    %3537 = vmatpush2.msra.mxu0 0.0
    %3538 = vmatprep.subr.mxu0 0.0
    %3539 = vmatpush2.msra.mxu0 0.0
    %3540 = vmatprep.subr.mxu0 0.0
    %3541 = vmatpush2.msra.mxu0 0.0
    %3542 = vmatprep.subr.mxu0 0.0
    %3543 = vmatpush2.msra.mxu0 0.0
    %3544 = vmatprep.subr.mxu0 0.0
    %3545 = vmatpush2.msra.mxu0 0.0
    %3546 = vmatprep.subr.mxu0 0.0
    %3547 = vmatpush2.msra.mxu0 0.0
    %3548 = vmatprep.subr.mxu0 0.0
    %3549 = vmatpush2.msra.mxu0 0.0
    %3550 = vmatprep.subr.mxu0 0.0
    %3551 = vmatpush2.msra.mxu0 0.0
    %3552 = vmatprep.subr.mxu0 0.0
    %3553 = vmatpush2.msra.mxu0 0.0
    %3554 = vmatprep.subr.mxu0 0.0
    %3555 = vmatpush2.msra.mxu0 0.0
    %3556 = vmatprep.mubr.f32.mxu0 0.0
    %3557 = vmatmul.mubr.f32.gmra.mxu0 %v3214
    %v3558 = vpop.f32.mrf.mxu0
    %v3559 = vadd.f32 0.0, %v3558
    %v3560 = vpop.f32.mrf.mxu0
    %v3561 = vadd.f32 0.0, %v3560
    %3562 = vmatprep.mubr.f32.mxu0 0.0
    %3563 = vmatmul.mubr.f32.gmra.mxu0 %v3217
    %v3564 = vpop.f32.mrf.mxu0
    %v3565 = vadd.f32 0.0, %v3564
    %v3566 = vpop.f32.mrf.mxu0
    %v3567 = vadd.f32 0.0, %v3566
    %3568 = vmatprep.mubr.f32.mxu0 0.0
    %3569 = vmatmul.mubr.f32.gmra.mxu0 %v3220
    %v3570 = vpop.f32.mrf.mxu0
    %v3571 = vadd.f32 0.0, %v3570
    %v3572 = vpop.f32.mrf.mxu0
    %v3573 = vadd.f32 0.0, %v3572
    %3574 = vmatprep.mubr.f32.mxu0 0.0
    %3575 = vmatmul.mubr.f32.gmra.mxu0 %v3223
    %v3576 = vpop.f32.mrf.mxu0
    %v3577 = vadd.f32 0.0, %v3576
    %v3578 = vpop.f32.mrf.mxu0
    %v3579 = vadd.f32 0.0, %v3578
    %3580 = vdwg.mxu0
    %3581 = vst [vmem:[#allocation10] sm:$0xff] %v3292
    %3582 = vst [vmem:[#allocation10 + $0x8] sm:$0xff] %v3294
    %3583 = vst [vmem:[#allocation10 + $0x10] sm:$0xff] %v3381
    %3584 = vst [vmem:[#allocation10 + $0x18] sm:$0xff] %v3383
    %3585 = vst [vmem:[#allocation10 + $0x20] sm:$0xff] %v3470
    %3586 = vst [vmem:[#allocation10 + $0x28] sm:$0xff] %v3472
    %3587 = vst [vmem:[#allocation10 + $0x30] sm:$0xff] %v3559
    %3588 = vst [vmem:[#allocation10 + $0x38] sm:$0xff] %v3561
    %3589 = vst [vmem:[#allocation10 + $0x40] sm:$0xff] %v3298
    %3590 = vst [vmem:[#allocation10 + $0x48] sm:$0xff] %v3300
    %3591 = vst [vmem:[#allocation10 + $0x50] sm:$0xff] %v3387
    %3592 = vst [vmem:[#allocation10 + $0x58] sm:$0xff] %v3389
    %3593 = vst [vmem:[#allocation10 + $0x60] sm:$0xff] %v3476
    %3594 = vst [vmem:[#allocation10 + $0x68] sm:$0xff] %v3478
    %3595 = vst [vmem:[#allocation10 + $0x70] sm:$0xff] %v3565
    %3596 = vst [vmem:[#allocation10 + $0x78] sm:$0xff] %v3567
    %3597 = vst [vmem:[#allocation10 + $0x80] sm:$0xff] %v3304
    %3598 = vst [vmem:[#allocation10 + $0x88] sm:$0xff] %v3306
    %3599 = vst [vmem:[#allocation10 + $0x90] sm:$0xff] %v3393
    %3600 = vst [vmem:[#allocation10 + $0x98] sm:$0xff] %v3395
    %3601 = vst [vmem:[#allocation10 + $0xa0] sm:$0xff] %v3482
    %3602 = vst [vmem:[#allocation10 + $0xa8] sm:$0xff] %v3484
    %3603 = vst [vmem:[#allocation10 + $0xb0] sm:$0xff] %v3571
    %3604 = vst [vmem:[#allocation10 + $0xb8] sm:$0xff] %v3573
    %3605 = vst [vmem:[#allocation10 + $0xc0] sm:$0xff] %v3310
    %3606 = vst [vmem:[#allocation10 + $0xc8] sm:$0xff] %v3312
    %3607 = vst [vmem:[#allocation10 + $0xd0] sm:$0xff] %v3399
    %3608 = vst [vmem:[#allocation10 + $0xd8] sm:$0xff] %v3401
    %3609 = vst [vmem:[#allocation10 + $0xe0] sm:$0xff] %v3488
    %3610 = vst [vmem:[#allocation10 + $0xe8] sm:$0xff] %v3490
    %3611 = vst [vmem:[#allocation10 + $0xf0] sm:$0xff] %v3577
    %3612 = vst [vmem:[#allocation10 + $0xf8] sm:$0xff] %v3579
    // Predicated region
    $region78: #{tpu_custom_call.1} parent=1 // pred_check
      _
    $region79: #{tpu_custom_call.1} parent=1 // pred_check_branch
      %3614 = sbr.rel (0) target = $region81
    $region80: #{tpu_custom_call.1} parent=1 // pred_region
      %s3616 = ssub.s32 4096, 4096
      %3617 = vsyncadd [#allocation4], %s3616
      %s3618 = sshll.u32 [#allocation10], 4
      %s3619 = int_to_ptr.vmem [resolvable:$true] %s3618
      %3624 = dma.vmem_to_hbm [thread:$0]  %s3619, 4096, %s15, [#allocation4], 1024, 1024, 64
    $region81: #{tpu_custom_call.1} parent=1 // pred_fallthru
      _
    // Predicated region
    $region82: #{tpu_custom_call.1} parent=1 // pred_check
      _
    $region83: #{tpu_custom_call.1} parent=1 // pred_check_branch
      %3626 = sbr.rel (0) target = $region85
    $region84: #{tpu_custom_call.1} parent=1 // pred_region
      %3627 = dma.done [#allocation4], 4096
    $region85: #{tpu_custom_call.1} parent=1 // pred_fallthru
      _
    %3628 = vsyncpa [#allocation3], 1
    %3629 = vsyncpa [#allocation6], 1
    %3630 = vsyncpa [#allocation9], 1
    %3631 = vsyncpa [#allocation4], 1

</llo_original>
